<compile_context>
chip_gen: v7x
topology: tpu7x:2x2x1
jax: 0.10.0
libtpu: 0.0.40
codegen_flags: <defaults>
</compile_context>

<pallas_src>
import functools

import jax
import jax.numpy as jnp
from jax.experimental import pallas as pl
from jax.experimental.pallas import tpu as pltpu


# ------------------------------------------------------------------- kernel --

def _small_conv_kernel(xcol_ref, rhs1_ref, b1t_ref, rhs2_ref, b2t_ref,
                       w1_ref, fb1_ref, fw2_ref, fb2_ref, o_ref, *, blk):
    """Fused SmallConvMNIST forward for one batch chunk of `blk` images.

    xcol_ref : (4, 8*blk, 128) bf16  stage-1 im2col rows; dim0 = 2*a + par where
               a = conv row-phase, par = parity slab (0 -> O, 1 -> E); row
               k*blk + b holds the im2col of pooled row i (i = 2k for O, 2k-1
               for E) of image b; lanes = dy*32 + padded-col (96..127 zero).
    rhs1_ref : (128, 512) bf16  banded conv1 weights, col = s*256 + (j+1)*16 + c.
    b1t_ref  : (1, 256) f32     conv1 bias tile (zero on pad lanes).
    rhs2_ref : (3, 256, 512) bf16 banded conv2 weights per dy, col = s*256+j*32+c.
    b2t_ref  : (1, 256) f32     conv2 bias tile.
    w1_ref   : (7, 256, 64) bf16  fc1 weights per p2 row (torch flatten absorbed).
    fb1_ref  : (1, 64) f32, fw2_ref : (1, 64) f32, fb2_ref : (1, 1) f32.
    o_ref    : (blk, 1) f32 output logits.
    """
    f32, bf16 = jnp.float32, jnp.bfloat16
    m = 8 * blk

    # ---------------- stage 1: conv1 + bias + ReLU + 2x2 max-pool ----------------
    # Two parity slabs so the result is already in conv2's padded-row layout:
    #   par=0 -> O[k] = P[2k+1] = p1 row 2k   (k=0..6, k=7 must be 0)
    #   par=1 -> E[k] = P[2k]   = p1 row 2k-1 (k=1..7, k=0 must be 0)
    slabs = []
    for par in (0, 1):
        acc = None
        for a in (0, 1):                        # conv row phase inside pool window
            lhs = xcol_ref[2 * a + par]         # (8*blk, 128) bf16
            part = jnp.dot(lhs, rhs1_ref[...], preferred_element_type=f32)
            acc = part if acc is None else jnp.maximum(acc, part)
        pooled = jnp.maximum(acc[:, :256], acc[:, 256:])      # max over col phase
        slabs.append(jnp.maximum(pooled + b1t_ref[...], 0.0))  # bias + ReLU (f32)
    o_slab, e_slab = slabs                                     # (m, 256) f32 each

    # Force the conv2 H-padding rows (P[15] in O block 7, P[0] in E block 0) to 0.
    ridx = jax.lax.broadcasted_iota(jnp.int32, (m, 256), 0)
    o_slab = jnp.where(ridx < 7 * blk, o_slab, 0.0)
    e_slab = jnp.where(ridx >= blk, e_slab, 0.0)

    # blk-aligned "shift up by one block" views: X_shift[k] = X[k+1].
    zeros_blk = jnp.zeros((blk, 256), f32)
    e_shift = jnp.concatenate([e_slab[blk:], zeros_blk], axis=0)
    o_shift = jnp.concatenate([o_slab[blk:], zeros_blk], axis=0)

    e_slab = e_slab.astype(bf16)
    o_slab = o_slab.astype(bf16)
    e_shift = e_shift.astype(bf16)
    o_shift = o_shift.astype(bf16)

    # ---------------- stage 2: conv2 + bias + ReLU + 2x2 max-pool ----------------
    # out_a[i] = sum_dy P[2i+a+dy] @ W2[dy]:
    #   a=0: E@W0 + O@W1 + Eshift@W2 ;  a=1: O@W0 + Eshift@W1 + Oshift@W2
    def mm2(x, dy):
        return jnp.dot(x, rhs2_ref[dy], preferred_element_type=f32)

    acc0 = mm2(e_slab, 0) + mm2(o_slab, 1) + mm2(e_shift, 2)
    acc1 = mm2(o_slab, 0) + mm2(e_shift, 1) + mm2(o_shift, 2)
    acc = jnp.maximum(acc0, acc1)                               # max over row phase
    pooled2 = jnp.maximum(acc[:, :256], acc[:, 256:])           # max over col phase
    p2 = jnp.maximum(pooled2 + b2t_ref[...], 0.0)               # (m, 256) f32
    # p2 block k (rows k*blk..), lane j*32+c  ==  p2[image, h=k, w=j, ch=c]; the
    # k=7 block and lanes >= 224 are junk/zero and are skipped by the FC weights.

    # ---------------- FC head: fc1 + bias + ReLU + fc2 + bias --------------------
    h = None
    for i in range(7):                                          # p2 spatial row h=i
        rows = p2[i * blk:(i + 1) * blk, :].astype(bf16)        # (blk, 256)
        part = jnp.dot(rows, w1_ref[i], preferred_element_type=f32)
        h = part if h is None else h + part
    h = jnp.maximum(h + fb1_ref[...], 0.0)                      # (blk, 64)
    out = jnp.sum(h * fw2_ref[...], axis=-1, keepdims=True) + fb2_ref[...]
    o_ref[...] = out.astype(o_ref.dtype)


# --------------------------------------------------- one-time weight repack --

def prepare_params(params):
    """Repack torch-shaped params into the banded / lane-dense kernel layouts."""
    f32, bf16 = jnp.float32, jnp.bfloat16
    w1c = params["conv1_w"].astype(f32)            # (16, 1, 3, 3)
    w2c = params["conv2_w"].astype(f32)            # (32, 16, 3, 3)

    # conv1 banded RHS: (128, 512); row = dy*32 + padded-col w (rows 96.. zero);
    # col = s*256 + (j+1)*16 + co  (output stored pre-shifted for conv2's W pad).
    row = jnp.arange(128)[:, None]
    dy = row // 32
    w = row % 32
    col = jnp.arange(512)[None, :]
    s = col // 256
    r = col % 256
    j = r // 16 - 1
    co = r % 16
    kx = w - (2 * j + s)
    valid = (row < 96) & (j >= 0) & (j <= 13) & (kx >= 0) & (kx <= 2)
    vals = w1c[co, 0, jnp.clip(dy, 0, 2), jnp.clip(kx, 0, 2)]
    rhs1 = jnp.where(valid, vals, 0.0).astype(bf16)

    # conv2 banded RHS: (3, 256, 512); row = wp*16 + ci (padded cols, wp=0..15);
    # col = s*256 + j*32 + co, j=0..6 (lanes 224..255 zero).
    dy3 = jnp.arange(3)[:, None, None]
    row = jnp.arange(256)[None, :, None]
    wp = row // 16
    ci = row % 16
    col = jnp.arange(512)[None, None, :]
    s = col // 256
    r = col % 256
    j = r // 32
    co = r % 32
    kx = wp - (2 * j + s)
    valid = (j <= 6) & (kx >= 0) & (kx <= 2)
    vals = w2c[co, ci, dy3, jnp.clip(kx, 0, 2)]
    rhs2 = jnp.where(valid, vals, 0.0).astype(bf16)

    # bias tiles (zero on padding lanes)
    b1t = jnp.concatenate([jnp.zeros(16), jnp.tile(params["conv1_b"], 14),
                           jnp.zeros(16)])[None, :].astype(f32)       # (1, 256)
    b2t = jnp.concatenate([jnp.tile(params["conv2_b"], 7),
                           jnp.zeros(32)])[None, :].astype(f32)       # (1, 256)

    # fc1: (7, 256, 64); [i, j*32+ci, m] = fc1_w[m, ci*49 + i*7 + j] (torch NCHW
    # flatten order absorbed here); lanes >= 224 zero; p2 junk row i=7 never used.
    i = jnp.arange(7)[:, None, None]
    l = jnp.arange(256)[None, :, None]
    mm = jnp.arange(64)[None, None, :]
    j = l // 32
    ci = l % 32
    idx = ci * 49 + i * 7 + j
    valid = j <= 6
    vals = params["fc1_w"][mm, jnp.clip(idx, 0, 1567)]
    w1p = jnp.where(valid, vals, 0.0).astype(bf16)                    # (7, 256, 64)

    return {
        "rhs1": rhs1, "b1t": b1t, "rhs2": rhs2, "b2t": b2t, "w1": w1p,
        "fc1_b": params["fc1_b"][None, :].astype(f32),                # (1, 64)
        "fc2_w": params["fc2_w"].astype(f32),                         # (1, 64)
        "fc2_b": params["fc2_b"].reshape(1, 1).astype(f32),           # (1, 1)
    }


def init_params(key):
    """Deterministic params with the exact torch shapes (kaiming-uniform-ish)."""
    ks = jax.random.split(key, 8)

    def u(k, shape, fan_in):
        bound = 1.0 / jnp.sqrt(float(fan_in))
        return jax.random.uniform(k, shape, jnp.float32, -bound, bound)

    return {
        "conv1_w": u(ks[0], (16, 1, 3, 3), 1 * 9),
        "conv1_b": u(ks[1], (16,), 1 * 9),
        "conv2_w": u(ks[2], (32, 16, 3, 3), 16 * 9),
        "conv2_b": u(ks[3], (32,), 16 * 9),
        "fc1_w": u(ks[4], (64, 7 * 7 * 32), 7 * 7 * 32),
        "fc1_b": u(ks[5], (64,), 7 * 7 * 32),
        "fc2_w": u(ks[6], (1, 64), 64),
        "fc2_b": u(ks[7], (1,), 64),
    }


# ------------------------------------------------------------------ forward --

def _pick_block(n):
    """Images per grid step: multiple of 8, <=64, keeping >=2 grid steps (v7x)."""
    for b in (64, 32, 16, 8):
        if n >= 2 * b:
            return b
    return 8


def _build_xcol(x_nchw, blk):
    """Raw images -> stage-1 im2col slabs, shape (n/blk, 4, 8*blk, 128) bf16."""
    n = x_nchw.shape[0]
    npad = ((n + blk - 1) // blk) * blk
    x = x_nchw[:, 0, :, :]                                    # (n, 28, 28)
    if npad != n:
        x = jnp.pad(x, ((0, npad - n), (0, 0), (0, 0)))
    xpad = jnp.pad(x, ((0, 0), (1, 1), (1, 3)))               # (npad, 30, 32)

    a = jnp.arange(2).reshape(2, 1, 1, 1)        # conv row phase
    par = jnp.arange(2).reshape(1, 2, 1, 1)      # parity slab (0->O, 1->E)
    k = jnp.arange(8).reshape(1, 1, 8, 1)        # slab block index
    lane = jnp.arange(128).reshape(1, 1, 1, 128)
    dy = lane // 32
    w = lane % 32
    i = 2 * k - par                              # pooled row fed to this block
    h = 2 * i + a + dy                           # padded input row
    valid = (i >= 0) & (i <= 13) & (lane < 96)
    g = xpad[:, jnp.clip(h, 0, 29), w]           # (npad, 2, 2, 8, 128)
    g = jnp.where(valid[None], g, 0.0)
    g = g.reshape(npad // blk, blk, 2, 2, 8, 128)
    g = g.transpose(0, 2, 3, 4, 1, 5)            # (nb, a, par, k, bi, lane)
    xcol = g.reshape(npad // blk, 4, 8 * blk, 128)
    return xcol.astype(jnp.bfloat16), npad


def small_conv_mnist_forward(pp, x_nchw):
    n = x_nchw.shape[0]
    assert x_nchw.shape[1:] == (1, 28, 28)
    blk = _pick_block(n)
    xcol, npad = _build_xcol(x_nchw, blk)
    grid = npad // blk

    kernel = functools.partial(_small_conv_kernel, blk=blk)
    out = pl.pallas_call(
        kernel,
        out_shape=jax.ShapeDtypeStruct((npad, 1), jnp.float32),
        grid=(grid,),
        in_specs=[
            pl.BlockSpec((None, 4, 8 * blk, 128), lambda i: (i, 0, 0, 0)),
            pl.BlockSpec((128, 512), lambda i: (0, 0)),
            pl.BlockSpec((1, 256), lambda i: (0, 0)),
            pl.BlockSpec((3, 256, 512), lambda i: (0, 0, 0)),
            pl.BlockSpec((1, 256), lambda i: (0, 0)),
            pl.BlockSpec((7, 256, 64), lambda i: (0, 0, 0)),
            pl.BlockSpec((1, 64), lambda i: (0, 0)),
            pl.BlockSpec((1, 64), lambda i: (0, 0)),
            pl.BlockSpec((1, 1), lambda i: (0, 0)),
        ],
        out_specs=pl.BlockSpec((blk, 1), lambda i: (i, 0)),
        compiler_params=pltpu.CompilerParams(
            dimension_semantics=("parallel",)),
    )(xcol, pp["rhs1"], pp["b1t"], pp["rhs2"], pp["b2t"],
      pp["w1"], pp["fc1_b"], pp["fc2_w"], pp["fc2_b"])
    return out[:n]


if __name__ == "__main__":
    key = jax.random.PRNGKey(0)
    pkey, xkey = jax.random.split(key)
    params = init_params(pkey)
    pp = prepare_params(params)          # one-time weight repack (outside jit)
    # FC head hard-codes 7*7*32 features, so spatial must be 28x28 (MNIST shape).
    x = jax.random.normal(xkey, (16, 1, 28, 28), jnp.float32)
    fwd = jax.jit(small_conv_mnist_forward)
    y = fwd(pp, x)
    jax.block_until_ready(y)
    assert y.shape == (16, 1) and y.dtype == jnp.float32
    assert bool(jnp.all(jnp.isfinite(y)))
    print("KERNEL_OK")
</pallas_src>

<mosaic_0001>
module attributes {stable_mosaic.version = 11 : i64} {
  func.func @_small_conv_kernel(%arg0: i32, %arg1: memref<1x4x64x128xbf16, #tpu.memory_space<vmem>>, %arg2: memref<128x512xbf16, #tpu.memory_space<vmem>>, %arg3: memref<1x256xf32, #tpu.memory_space<vmem>>, %arg4: memref<3x256x512xbf16, #tpu.memory_space<vmem>>, %arg5: memref<1x256xf32, #tpu.memory_space<vmem>>, %arg6: memref<7x256x64xbf16, #tpu.memory_space<vmem>>, %arg7: memref<1x64xf32, #tpu.memory_space<vmem>>, %arg8: memref<1x64xf32, #tpu.memory_space<vmem>>, %arg9: memref<1x1xf32, #tpu.memory_space<vmem>>, %arg10: memref<8x1xf32, #tpu.memory_space<vmem>>) attributes {dimension_semantics = [#tpu.dimension_semantics<parallel>], iteration_bounds = array<i64: 2>, scalar_prefetch = 0 : i64, scratch_operands = 0 : i64, tpu.core_type = #tpu.core_type<tc>, window_params = [{transform_indices = @transform_0, window_bounds = array<i64: 1, 4, 64, 128>}, {pipeline_mode = #tpu.pipeline_mode<synchronous>, transform_indices = @transform_1, window_bounds = array<i64: 128, 512>}, {pipeline_mode = #tpu.pipeline_mode<synchronous>, transform_indices = @transform_2, window_bounds = array<i64: 1, 256>}, {pipeline_mode = #tpu.pipeline_mode<synchronous>, transform_indices = @transform_3, window_bounds = array<i64: 3, 256, 512>}, {pipeline_mode = #tpu.pipeline_mode<synchronous>, transform_indices = @transform_4, window_bounds = array<i64: 1, 256>}, {pipeline_mode = #tpu.pipeline_mode<synchronous>, transform_indices = @transform_5, window_bounds = array<i64: 7, 256, 64>}, {pipeline_mode = #tpu.pipeline_mode<synchronous>, transform_indices = @transform_6, window_bounds = array<i64: 1, 64>}, {pipeline_mode = #tpu.pipeline_mode<synchronous>, transform_indices = @transform_7, window_bounds = array<i64: 1, 64>}, {pipeline_mode = #tpu.pipeline_mode<synchronous>, transform_indices = @transform_8, window_bounds = array<i64: 1, 1>}, {transform_indices = @transform_9, window_bounds = array<i64: 8, 1>}]} {
    %c0 = arith.constant 0 : index
    %c0_0 = arith.constant 0 : index
    %c0_1 = arith.constant 0 : index
    %c0_2 = arith.constant 0 : index
    %0 = vector.load %arg1[%c0, %c0_0, %c0_1, %c0_2] : memref<1x4x64x128xbf16, #tpu.memory_space<vmem>>, vector<1x1x64x128xbf16>
    %1 = vector.shape_cast %0 : vector<1x1x64x128xbf16> to vector<64x128xbf16>
    %c0_3 = arith.constant 0 : index
    %c0_4 = arith.constant 0 : index
    %2 = vector.load %arg2[%c0_3, %c0_4] : memref<128x512xbf16, #tpu.memory_space<vmem>>, vector<128x512xbf16>
    %cst = arith.constant dense<0.000000e+00> : vector<64x512xf32>
    %3 = tpu.matmul %1, %2, %cst {dimension_numbers = #tpu.dot_dimension_numbers<[1], [0], [0], [1], [0, 0, 1, 1], [], []>} : vector<64x128xbf16>, vector<128x512xbf16>, vector<64x512xf32> -> vector<64x512xf32>
    %c0_5 = arith.constant 0 : index
    %c2 = arith.constant 2 : index
    %c0_6 = arith.constant 0 : index
    %c0_7 = arith.constant 0 : index
    %4 = vector.load %arg1[%c0_5, %c2, %c0_6, %c0_7] : memref<1x4x64x128xbf16, #tpu.memory_space<vmem>>, vector<1x1x64x128xbf16>
    %5 = vector.shape_cast %4 : vector<1x1x64x128xbf16> to vector<64x128xbf16>
    %c0_8 = arith.constant 0 : index
    %c0_9 = arith.constant 0 : index
    %6 = vector.load %arg2[%c0_8, %c0_9] : memref<128x512xbf16, #tpu.memory_space<vmem>>, vector<128x512xbf16>
    %cst_10 = arith.constant dense<0.000000e+00> : vector<64x512xf32>
    %7 = tpu.matmul %5, %6, %cst_10 {dimension_numbers = #tpu.dot_dimension_numbers<[1], [0], [0], [1], [0, 0, 1, 1], [], []>} : vector<64x128xbf16>, vector<128x512xbf16>, vector<64x512xf32> -> vector<64x512xf32>
    %8 = arith.maximumf %3, %7 : vector<64x512xf32>
    %9 = vector.extract_strided_slice %8 {offsets = [0, 0], sizes = [64, 256], strides = [1, 1]} : vector<64x512xf32> to vector<64x256xf32>
    %10 = vector.extract_strided_slice %8 {offsets = [0, 256], sizes = [64, 256], strides = [1, 1]} : vector<64x512xf32> to vector<64x256xf32>
    %11 = arith.maximumf %9, %10 : vector<64x256xf32>
    %c0_11 = arith.constant 0 : index
    %c0_12 = arith.constant 0 : index
    %12 = vector.load %arg3[%c0_11, %c0_12] : memref<1x256xf32, #tpu.memory_space<vmem>>, vector<1x256xf32>
    %13 = vector.broadcast %12 : vector<1x256xf32> to vector<64x256xf32>
    %14 = arith.addf %11, %13 : vector<64x256xf32>
    %cst_13 = arith.constant 0.000000e+00 : f32
    %15 = vector.broadcast %cst_13 : f32 to vector<64x256xf32>
    %16 = arith.maximumf %14, %15 : vector<64x256xf32>
    %c0_14 = arith.constant 0 : index
    %c1 = arith.constant 1 : index
    %c0_15 = arith.constant 0 : index
    %c0_16 = arith.constant 0 : index
    %17 = vector.load %arg1[%c0_14, %c1, %c0_15, %c0_16] : memref<1x4x64x128xbf16, #tpu.memory_space<vmem>>, vector<1x1x64x128xbf16>
    %18 = vector.shape_cast %17 : vector<1x1x64x128xbf16> to vector<64x128xbf16>
    %c0_17 = arith.constant 0 : index
    %c0_18 = arith.constant 0 : index
    %19 = vector.load %arg2[%c0_17, %c0_18] : memref<128x512xbf16, #tpu.memory_space<vmem>>, vector<128x512xbf16>
    %cst_19 = arith.constant dense<0.000000e+00> : vector<64x512xf32>
    %20 = tpu.matmul %18, %19, %cst_19 {dimension_numbers = #tpu.dot_dimension_numbers<[1], [0], [0], [1], [0, 0, 1, 1], [], []>} : vector<64x128xbf16>, vector<128x512xbf16>, vector<64x512xf32> -> vector<64x512xf32>
    %c0_20 = arith.constant 0 : index
    %c3 = arith.constant 3 : index
    %c0_21 = arith.constant 0 : index
    %c0_22 = arith.constant 0 : index
    %21 = vector.load %arg1[%c0_20, %c3, %c0_21, %c0_22] : memref<1x4x64x128xbf16, #tpu.memory_space<vmem>>, vector<1x1x64x128xbf16>
    %22 = vector.shape_cast %21 : vector<1x1x64x128xbf16> to vector<64x128xbf16>
    %c0_23 = arith.constant 0 : index
    %c0_24 = arith.constant 0 : index
    %23 = vector.load %arg2[%c0_23, %c0_24] : memref<128x512xbf16, #tpu.memory_space<vmem>>, vector<128x512xbf16>
    %cst_25 = arith.constant dense<0.000000e+00> : vector<64x512xf32>
    %24 = tpu.matmul %22, %23, %cst_25 {dimension_numbers = #tpu.dot_dimension_numbers<[1], [0], [0], [1], [0, 0, 1, 1], [], []>} : vector<64x128xbf16>, vector<128x512xbf16>, vector<64x512xf32> -> vector<64x512xf32>
    %25 = arith.maximumf %20, %24 : vector<64x512xf32>
    %26 = vector.extract_strided_slice %25 {offsets = [0, 0], sizes = [64, 256], strides = [1, 1]} : vector<64x512xf32> to vector<64x256xf32>
    %27 = vector.extract_strided_slice %25 {offsets = [0, 256], sizes = [64, 256], strides = [1, 1]} : vector<64x512xf32> to vector<64x256xf32>
    %28 = arith.maximumf %26, %27 : vector<64x256xf32>
    %c0_26 = arith.constant 0 : index
    %c0_27 = arith.constant 0 : index
    %29 = vector.load %arg3[%c0_26, %c0_27] : memref<1x256xf32, #tpu.memory_space<vmem>>, vector<1x256xf32>
    %30 = vector.broadcast %29 : vector<1x256xf32> to vector<64x256xf32>
    %31 = arith.addf %28, %30 : vector<64x256xf32>
    %cst_28 = arith.constant 0.000000e+00 : f32
    %32 = vector.broadcast %cst_28 : f32 to vector<64x256xf32>
    %33 = arith.maximumf %31, %32 : vector<64x256xf32>
    %34 = tpu.iota {dimensions = array<i32: 0>} : vector<64x256xi32>
    %c56_i32 = arith.constant 56 : i32
    %35 = vector.broadcast %c56_i32 : i32 to vector<64x256xi32>
    %36 = arith.cmpi slt, %34, %35 : vector<64x256xi32>
    %cst_29 = arith.constant 0.000000e+00 : f32
    %37 = vector.broadcast %cst_29 : f32 to vector<64x256xf32>
    %38 = arith.select %36, %16, %37 : vector<64x256xi1>, vector<64x256xf32>
    %c8_i32 = arith.constant 8 : i32
    %39 = vector.broadcast %c8_i32 : i32 to vector<64x256xi32>
    %40 = arith.cmpi sge, %34, %39 : vector<64x256xi32>
    %cst_30 = arith.constant 0.000000e+00 : f32
    %41 = vector.broadcast %cst_30 : f32 to vector<64x256xf32>
    %42 = arith.select %40, %33, %41 : vector<64x256xi1>, vector<64x256xf32>
    %cst_31 = arith.constant 0.000000e+00 : f32
    %43 = vector.broadcast %cst_31 : f32 to vector<8x256xf32>
    %44 = vector.extract_strided_slice %42 {offsets = [8, 0], sizes = [56, 256], strides = [1, 1]} : vector<64x256xf32> to vector<56x256xf32>
    %45 = tpu.concatenate %44, %43 in 0 : vector<56x256xf32>, vector<8x256xf32> -> vector<64x256xf32>
    %46 = vector.extract_strided_slice %38 {offsets = [8, 0], sizes = [56, 256], strides = [1, 1]} : vector<64x256xf32> to vector<56x256xf32>
    %47 = tpu.concatenate %46, %43 in 0 : vector<56x256xf32>, vector<8x256xf32> -> vector<64x256xf32>
    %48 = arith.truncf %42 : vector<64x256xf32> to vector<64x256xbf16>
    %49 = arith.truncf %38 : vector<64x256xf32> to vector<64x256xbf16>
    %50 = arith.truncf %45 : vector<64x256xf32> to vector<64x256xbf16>
    %51 = arith.truncf %47 : vector<64x256xf32> to vector<64x256xbf16>
    %c0_32 = arith.constant 0 : index
    %c0_33 = arith.constant 0 : index
    %c0_34 = arith.constant 0 : index
    %52 = vector.load %arg4[%c0_32, %c0_33, %c0_34] : memref<3x256x512xbf16, #tpu.memory_space<vmem>>, vector<1x256x512xbf16>
    %53 = vector.shape_cast %52 : vector<1x256x512xbf16> to vector<256x512xbf16>
    %cst_35 = arith.constant dense<0.000000e+00> : vector<64x512xf32>
    %54 = tpu.matmul %48, %53, %cst_35 {dimension_numbers = #tpu.dot_dimension_numbers<[1], [0], [0], [1], [0, 0, 1, 1], [], []>} : vector<64x256xbf16>, vector<256x512xbf16>, vector<64x512xf32> -> vector<64x512xf32>
    %c1_36 = arith.constant 1 : index
    %c0_37 = arith.constant 0 : index
    %c0_38 = arith.constant 0 : index
    %55 = vector.load %arg4[%c1_36, %c0_37, %c0_38] : memref<3x256x512xbf16, #tpu.memory_space<vmem>>, vector<1x256x512xbf16>
    %56 = vector.shape_cast %55 : vector<1x256x512xbf16> to vector<256x512xbf16>
    %cst_39 = arith.constant dense<0.000000e+00> : vector<64x512xf32>
    %57 = tpu.matmul %49, %56, %cst_39 {dimension_numbers = #tpu.dot_dimension_numbers<[1], [0], [0], [1], [0, 0, 1, 1], [], []>} : vector<64x256xbf16>, vector<256x512xbf16>, vector<64x512xf32> -> vector<64x512xf32>
    %58 = arith.addf %54, %57 : vector<64x512xf32>
    %c2_40 = arith.constant 2 : index
    %c0_41 = arith.constant 0 : index
    %c0_42 = arith.constant 0 : index
    %59 = vector.load %arg4[%c2_40, %c0_41, %c0_42] : memref<3x256x512xbf16, #tpu.memory_space<vmem>>, vector<1x256x512xbf16>
    %60 = vector.shape_cast %59 : vector<1x256x512xbf16> to vector<256x512xbf16>
    %cst_43 = arith.constant dense<0.000000e+00> : vector<64x512xf32>
    %61 = tpu.matmul %50, %60, %cst_43 {dimension_numbers = #tpu.dot_dimension_numbers<[1], [0], [0], [1], [0, 0, 1, 1], [], []>} : vector<64x256xbf16>, vector<256x512xbf16>, vector<64x512xf32> -> vector<64x512xf32>
    %62 = arith.addf %58, %61 : vector<64x512xf32>
    %c0_44 = arith.constant 0 : index
    %c0_45 = arith.constant 0 : index
    %c0_46 = arith.constant 0 : index
    %63 = vector.load %arg4[%c0_44, %c0_45, %c0_46] : memref<3x256x512xbf16, #tpu.memory_space<vmem>>, vector<1x256x512xbf16>
    %64 = vector.shape_cast %63 : vector<1x256x512xbf16> to vector<256x512xbf16>
    %cst_47 = arith.constant dense<0.000000e+00> : vector<64x512xf32>
    %65 = tpu.matmul %49, %64, %cst_47 {dimension_numbers = #tpu.dot_dimension_numbers<[1], [0], [0], [1], [0, 0, 1, 1], [], []>} : vector<64x256xbf16>, vector<256x512xbf16>, vector<64x512xf32> -> vector<64x512xf32>
    %c1_48 = arith.constant 1 : index
    %c0_49 = arith.constant 0 : index
    %c0_50 = arith.constant 0 : index
    %66 = vector.load %arg4[%c1_48, %c0_49, %c0_50] : memref<3x256x512xbf16, #tpu.memory_space<vmem>>, vector<1x256x512xbf16>
    %67 = vector.shape_cast %66 : vector<1x256x512xbf16> to vector<256x512xbf16>
    %cst_51 = arith.constant dense<0.000000e+00> : vector<64x512xf32>
    %68 = tpu.matmul %50, %67, %cst_51 {dimension_numbers = #tpu.dot_dimension_numbers<[1], [0], [0], [1], [0, 0, 1, 1], [], []>} : vector<64x256xbf16>, vector<256x512xbf16>, vector<64x512xf32> -> vector<64x512xf32>
    %69 = arith.addf %65, %68 : vector<64x512xf32>
    %c2_52 = arith.constant 2 : index
    %c0_53 = arith.constant 0 : index
    %c0_54 = arith.constant 0 : index
    %70 = vector.load %arg4[%c2_52, %c0_53, %c0_54] : memref<3x256x512xbf16, #tpu.memory_space<vmem>>, vector<1x256x512xbf16>
    %71 = vector.shape_cast %70 : vector<1x256x512xbf16> to vector<256x512xbf16>
    %cst_55 = arith.constant dense<0.000000e+00> : vector<64x512xf32>
    %72 = tpu.matmul %51, %71, %cst_55 {dimension_numbers = #tpu.dot_dimension_numbers<[1], [0], [0], [1], [0, 0, 1, 1], [], []>} : vector<64x256xbf16>, vector<256x512xbf16>, vector<64x512xf32> -> vector<64x512xf32>
    %73 = arith.addf %69, %72 : vector<64x512xf32>
    %74 = arith.maximumf %62, %73 : vector<64x512xf32>
    %75 = vector.extract_strided_slice %74 {offsets = [0, 0], sizes = [64, 256], strides = [1, 1]} : vector<64x512xf32> to vector<64x256xf32>
    %76 = vector.extract_strided_slice %74 {offsets = [0, 256], sizes = [64, 256], strides = [1, 1]} : vector<64x512xf32> to vector<64x256xf32>
    %77 = arith.maximumf %75, %76 : vector<64x256xf32>
    %c0_56 = arith.constant 0 : index
    %c0_57 = arith.constant 0 : index
    %78 = vector.load %arg5[%c0_56, %c0_57] : memref<1x256xf32, #tpu.memory_space<vmem>>, vector<1x256xf32>
    %79 = vector.broadcast %78 : vector<1x256xf32> to vector<64x256xf32>
    %80 = arith.addf %77, %79 : vector<64x256xf32>
    %cst_58 = arith.constant 0.000000e+00 : f32
    %81 = vector.broadcast %cst_58 : f32 to vector<64x256xf32>
    %82 = arith.maximumf %80, %81 : vector<64x256xf32>
    %83 = vector.extract_strided_slice %82 {offsets = [0, 0], sizes = [8, 256], strides = [1, 1]} : vector<64x256xf32> to vector<8x256xf32>
    %84 = arith.truncf %83 : vector<8x256xf32> to vector<8x256xbf16>
    %c0_59 = arith.constant 0 : index
    %c0_60 = arith.constant 0 : index
    %c0_61 = arith.constant 0 : index
    %85 = vector.load %arg6[%c0_59, %c0_60, %c0_61] : memref<7x256x64xbf16, #tpu.memory_space<vmem>>, vector<1x256x64xbf16>
    %86 = vector.shape_cast %85 : vector<1x256x64xbf16> to vector<256x64xbf16>
    %cst_62 = arith.constant dense<0.000000e+00> : vector<8x64xf32>
    %87 = tpu.matmul %84, %86, %cst_62 {dimension_numbers = #tpu.dot_dimension_numbers<[1], [0], [0], [1], [0, 0, 1, 1], [], []>} : vector<8x256xbf16>, vector<256x64xbf16>, vector<8x64xf32> -> vector<8x64xf32>
    %88 = vector.extract_strided_slice %82 {offsets = [8, 0], sizes = [8, 256], strides = [1, 1]} : vector<64x256xf32> to vector<8x256xf32>
    %89 = arith.truncf %88 : vector<8x256xf32> to vector<8x256xbf16>
    %c1_63 = arith.constant 1 : index
    %c0_64 = arith.constant 0 : index
    %c0_65 = arith.constant 0 : index
    %90 = vector.load %arg6[%c1_63, %c0_64, %c0_65] : memref<7x256x64xbf16, #tpu.memory_space<vmem>>, vector<1x256x64xbf16>
    %91 = vector.shape_cast %90 : vector<1x256x64xbf16> to vector<256x64xbf16>
    %cst_66 = arith.constant dense<0.000000e+00> : vector<8x64xf32>
    %92 = tpu.matmul %89, %91, %cst_66 {dimension_numbers = #tpu.dot_dimension_numbers<[1], [0], [0], [1], [0, 0, 1, 1], [], []>} : vector<8x256xbf16>, vector<256x64xbf16>, vector<8x64xf32> -> vector<8x64xf32>
    %93 = arith.addf %87, %92 : vector<8x64xf32>
    %94 = vector.extract_strided_slice %82 {offsets = [16, 0], sizes = [8, 256], strides = [1, 1]} : vector<64x256xf32> to vector<8x256xf32>
    %95 = arith.truncf %94 : vector<8x256xf32> to vector<8x256xbf16>
    %c2_67 = arith.constant 2 : index
    %c0_68 = arith.constant 0 : index
    %c0_69 = arith.constant 0 : index
    %96 = vector.load %arg6[%c2_67, %c0_68, %c0_69] : memref<7x256x64xbf16, #tpu.memory_space<vmem>>, vector<1x256x64xbf16>
    %97 = vector.shape_cast %96 : vector<1x256x64xbf16> to vector<256x64xbf16>
    %cst_70 = arith.constant dense<0.000000e+00> : vector<8x64xf32>
    %98 = tpu.matmul %95, %97, %cst_70 {dimension_numbers = #tpu.dot_dimension_numbers<[1], [0], [0], [1], [0, 0, 1, 1], [], []>} : vector<8x256xbf16>, vector<256x64xbf16>, vector<8x64xf32> -> vector<8x64xf32>
    %99 = arith.addf %93, %98 : vector<8x64xf32>
    %100 = vector.extract_strided_slice %82 {offsets = [24, 0], sizes = [8, 256], strides = [1, 1]} : vector<64x256xf32> to vector<8x256xf32>
    %101 = arith.truncf %100 : vector<8x256xf32> to vector<8x256xbf16>
    %c3_71 = arith.constant 3 : index
    %c0_72 = arith.constant 0 : index
    %c0_73 = arith.constant 0 : index
    %102 = vector.load %arg6[%c3_71, %c0_72, %c0_73] : memref<7x256x64xbf16, #tpu.memory_space<vmem>>, vector<1x256x64xbf16>
    %103 = vector.shape_cast %102 : vector<1x256x64xbf16> to vector<256x64xbf16>
    %cst_74 = arith.constant dense<0.000000e+00> : vector<8x64xf32>
    %104 = tpu.matmul %101, %103, %cst_74 {dimension_numbers = #tpu.dot_dimension_numbers<[1], [0], [0], [1], [0, 0, 1, 1], [], []>} : vector<8x256xbf16>, vector<256x64xbf16>, vector<8x64xf32> -> vector<8x64xf32>
    %105 = arith.addf %99, %104 : vector<8x64xf32>
    %106 = vector.extract_strided_slice %82 {offsets = [32, 0], sizes = [8, 256], strides = [1, 1]} : vector<64x256xf32> to vector<8x256xf32>
    %107 = arith.truncf %106 : vector<8x256xf32> to vector<8x256xbf16>
    %c4 = arith.constant 4 : index
    %c0_75 = arith.constant 0 : index
    %c0_76 = arith.constant 0 : index
    %108 = vector.load %arg6[%c4, %c0_75, %c0_76] : memref<7x256x64xbf16, #tpu.memory_space<vmem>>, vector<1x256x64xbf16>
    %109 = vector.shape_cast %108 : vector<1x256x64xbf16> to vector<256x64xbf16>
    %cst_77 = arith.constant dense<0.000000e+00> : vector<8x64xf32>
    %110 = tpu.matmul %107, %109, %cst_77 {dimension_numbers = #tpu.dot_dimension_numbers<[1], [0], [0], [1], [0, 0, 1, 1], [], []>} : vector<8x256xbf16>, vector<256x64xbf16>, vector<8x64xf32> -> vector<8x64xf32>
    %111 = arith.addf %105, %110 : vector<8x64xf32>
    %112 = vector.extract_strided_slice %82 {offsets = [40, 0], sizes = [8, 256], strides = [1, 1]} : vector<64x256xf32> to vector<8x256xf32>
    %113 = arith.truncf %112 : vector<8x256xf32> to vector<8x256xbf16>
    %c5 = arith.constant 5 : index
    %c0_78 = arith.constant 0 : index
    %c0_79 = arith.constant 0 : index
    %114 = vector.load %arg6[%c5, %c0_78, %c0_79] : memref<7x256x64xbf16, #tpu.memory_space<vmem>>, vector<1x256x64xbf16>
    %115 = vector.shape_cast %114 : vector<1x256x64xbf16> to vector<256x64xbf16>
    %cst_80 = arith.constant dense<0.000000e+00> : vector<8x64xf32>
    %116 = tpu.matmul %113, %115, %cst_80 {dimension_numbers = #tpu.dot_dimension_numbers<[1], [0], [0], [1], [0, 0, 1, 1], [], []>} : vector<8x256xbf16>, vector<256x64xbf16>, vector<8x64xf32> -> vector<8x64xf32>
    %117 = arith.addf %111, %116 : vector<8x64xf32>
    %118 = vector.extract_strided_slice %82 {offsets = [48, 0], sizes = [8, 256], strides = [1, 1]} : vector<64x256xf32> to vector<8x256xf32>
    %119 = arith.truncf %118 : vector<8x256xf32> to vector<8x256xbf16>
    %c6 = arith.constant 6 : index
    %c0_81 = arith.constant 0 : index
    %c0_82 = arith.constant 0 : index
    %120 = vector.load %arg6[%c6, %c0_81, %c0_82] : memref<7x256x64xbf16, #tpu.memory_space<vmem>>, vector<1x256x64xbf16>
    %121 = vector.shape_cast %120 : vector<1x256x64xbf16> to vector<256x64xbf16>
    %cst_83 = arith.constant dense<0.000000e+00> : vector<8x64xf32>
    %122 = tpu.matmul %119, %121, %cst_83 {dimension_numbers = #tpu.dot_dimension_numbers<[1], [0], [0], [1], [0, 0, 1, 1], [], []>} : vector<8x256xbf16>, vector<256x64xbf16>, vector<8x64xf32> -> vector<8x64xf32>
    %123 = arith.addf %117, %122 : vector<8x64xf32>
    %c0_84 = arith.constant 0 : index
    %c0_85 = arith.constant 0 : index
    %124 = vector.load %arg7[%c0_84, %c0_85] : memref<1x64xf32, #tpu.memory_space<vmem>>, vector<1x64xf32>
    %125 = vector.broadcast %124 : vector<1x64xf32> to vector<8x64xf32>
    %126 = arith.addf %123, %125 : vector<8x64xf32>
    %cst_86 = arith.constant 0.000000e+00 : f32
    %127 = vector.broadcast %cst_86 : f32 to vector<8x64xf32>
    %128 = arith.maximumf %126, %127 : vector<8x64xf32>
    %c0_87 = arith.constant 0 : index
    %c0_88 = arith.constant 0 : index
    %129 = vector.load %arg8[%c0_87, %c0_88] : memref<1x64xf32, #tpu.memory_space<vmem>>, vector<1x64xf32>
    %130 = vector.broadcast %129 : vector<1x64xf32> to vector<8x64xf32>
    %131 = arith.mulf %128, %130 : vector<8x64xf32>
    %cst_89 = arith.constant dense<0.000000e+00> : vector<8xf32>
    %132 = vector.multi_reduction <add>, %131, %cst_89 [1] : vector<8x64xf32> to vector<8xf32>
    %133 = vector.shape_cast %132 : vector<8xf32> to vector<8x1xf32>
    %c0_90 = arith.constant 0 : index
    %c0_91 = arith.constant 0 : index
    %134 = vector.load %arg9[%c0_90, %c0_91] : memref<1x1xf32, #tpu.memory_space<vmem>>, vector<1x1xf32>
    %135 = vector.broadcast %134 : vector<1x1xf32> to vector<8x1xf32>
    %136 = arith.addf %133, %135 : vector<8x1xf32>
    %c0_92 = arith.constant 0 : index
    %c0_93 = arith.constant 0 : index
    %137 = vector.load %arg10[%c0_92, %c0_93] : memref<8x1xf32, #tpu.memory_space<vmem>>, vector<8x1xf32>
    tpu.vector_store %arg10[%c0_92, %c0_93], %136 {strides = array<i32>} : memref<8x1xf32, #tpu.memory_space<vmem>>, vector<8x1xf32>,
    return
  }
  func.func @transform_0(%arg0: i32) -> (i32, i32, i32, i32) {
    %c0_i32 = arith.constant 0 : i32
    %c0_i32_0 = arith.constant 0 : i32
    %c0_i32_1 = arith.constant 0 : i32
    %c0_i32_2 = arith.constant 0 : i32
    return %arg0, %c0_i32, %c0_i32_0, %c0_i32_1 : i32, i32, i32, i32
  }
  func.func @transform_1(%arg0: i32) -> (i32, i32) {
    %c0_i32 = arith.constant 0 : i32
    %c0_i32_0 = arith.constant 0 : i32
    %c0_i32_1 = arith.constant 0 : i32
    return %c0_i32, %c0_i32_0 : i32, i32
  }
  func.func @transform_2(%arg0: i32) -> (i32, i32) {
    %c0_i32 = arith.constant 0 : i32
    %c0_i32_0 = arith.constant 0 : i32
    %c0_i32_1 = arith.constant 0 : i32
    return %c0_i32, %c0_i32_0 : i32, i32
  }
  func.func @transform_3(%arg0: i32) -> (i32, i32, i32) {
    %c0_i32 = arith.constant 0 : i32
    %c0_i32_0 = arith.constant 0 : i32
    %c0_i32_1 = arith.constant 0 : i32
    %c0_i32_2 = arith.constant 0 : i32
    return %c0_i32, %c0_i32_0, %c0_i32_1 : i32, i32, i32
  }
  func.func @transform_4(%arg0: i32) -> (i32, i32) {
    %c0_i32 = arith.constant 0 : i32
    %c0_i32_0 = arith.constant 0 : i32
    %c0_i32_1 = arith.constant 0 : i32
    return %c0_i32, %c0_i32_0 : i32, i32
  }
  func.func @transform_5(%arg0: i32) -> (i32, i32, i32) {
    %c0_i32 = arith.constant 0 : i32
    %c0_i32_0 = arith.constant 0 : i32
    %c0_i32_1 = arith.constant 0 : i32
    %c0_i32_2 = arith.constant 0 : i32
    return %c0_i32, %c0_i32_0, %c0_i32_1 : i32, i32, i32
  }
  func.func @transform_6(%arg0: i32) -> (i32, i32) {
    %c0_i32 = arith.constant 0 : i32
    %c0_i32_0 = arith.constant 0 : i32
    %c0_i32_1 = arith.constant 0 : i32
    return %c0_i32, %c0_i32_0 : i32, i32
  }
  func.func @transform_7(%arg0: i32) -> (i32, i32) {
    %c0_i32 = arith.constant 0 : i32
    %c0_i32_0 = arith.constant 0 : i32
    %c0_i32_1 = arith.constant 0 : i32
    return %c0_i32, %c0_i32_0 : i32, i32
  }
  func.func @transform_8(%arg0: i32) -> (i32, i32) {
    %c0_i32 = arith.constant 0 : i32
    %c0_i32_0 = arith.constant 0 : i32
    %c0_i32_1 = arith.constant 0 : i32
    return %c0_i32, %c0_i32_0 : i32, i32
  }
  func.func @transform_9(%arg0: i32) -> (i32, i32) {
    %c0_i32 = arith.constant 0 : i32
    %c0_i32_0 = arith.constant 0 : i32
    return %arg0, %c0_i32 : i32, i32
  }
}

</mosaic_0001>

<llo_original>
// kernel: small_conv_mnist_forward.1
$region0: #{small_conv_mnist_forward.1}
  #allocation0 [shape = 'u32[]', space=smem, size = 0x4, offset = 0x4, fixed_abs, tag = 'smem constant byte address 0x4 - core index']
  #allocation1 [shape = 'u32[144,128]{1,0:T(1,128)}', space=vmem, size = 0x12000, scoped, tag = 'internal scratch']
  #allocation2 [shape = 'f32[1,1]{1,0:T(1,128)S(1)}', space=vmem, size = 0x200, scoped, tag = 'scoped memory for small_conv_mnist_forward.1']
  %s0 = inlined_call_operand.vmem [shape: bf16[2,4,64,128], index: 0, kind: input, shape index: {}]
  %s1 = inlined_call_operand.vmem [shape: bf16[128,512], index: 1, kind: input, shape index: {}]
  %s2 = inlined_call_operand.vmem [shape: f32[1,256], index: 2, kind: input, shape index: {}]
  %s3 = inlined_call_operand.vmem [shape: bf16[3,256,512], index: 3, kind: input, shape index: {}]
  %s4 = inlined_call_operand.vmem [shape: f32[1,256], index: 4, kind: input, shape index: {}]
  %s5 = inlined_call_operand.vmem [shape: bf16[7,256,64], index: 5, kind: input, shape index: {}]
  %s6 = inlined_call_operand.vmem [shape: f32[1,64], index: 6, kind: input, shape index: {}]
  %s7 = inlined_call_operand.vmem [shape: f32[1,64], index: 7, kind: input, shape index: {}]
  %s8 = inlined_call_operand.<no memory space> [shape: f32[1,1], index: 8, kind: input, shape index: {}]
  %s9 = inlined_call_operand.vmem [shape: f32[16,1], index: 9, kind: output, shape index: {}]
  %s10 = sld [smem:[#allocation0]]
  $region69: #{small_conv_mnist_forward.1} parent=0
    _
  %s12 = ssub.s32 1, %s10
  %s13 = scalar_select 0, %s12, %s10
  %v14 = vstv %s8
  %15 = vst [vmem:[#allocation2] sm:$0x1] %v14
  loop: start=0, step=1, limit=4
  $region2: #{small_conv_mnist_forward.1} parent=0 // loop_pre_header
    _
  $region3: #{small_conv_mnist_forward.1} parent=0 // loop_header
    %s17 = sphi 0, %s21
    %p18 = scmp.ge.s32.totalorder %s17, 4
    %s27 = sphi 0, %s29
    %s30 = sphi 0, %s27
    %s31 = sphi 0, %s30
    %s47 = sphi 0, %s31
    %s51 = sphi 0, %s51
    %s53 = sphi 0, %s51
    %s54 = sphi 0, %s53
    %s68 = sphi 0, %s54
    %s72 = sphi 0, %s72
    %s74 = sphi 0, %s72
    %s75 = sphi 0, %s74
    %s89 = sphi 0, %s75
    %s93 = sphi 0, %s93
    %s95 = sphi 0, %s93
    %s96 = sphi 0, %s95
    %s110 = sphi 0, %s96
    %s114 = sphi 0, %s114
    %s116 = sphi 0, %s114
    %s117 = sphi 0, %s116
    %s131 = sphi 0, %s117
    %s135 = sphi 0, %s135
    %s137 = sphi 0, %s135
    %s138 = sphi 0, %s137
    %s152 = sphi 0, %s138
    %s156 = sphi 0, %s156
    %s158 = sphi 0, %s156
    %s159 = sphi 0, %s158
    %s173 = sphi 0, %s159
    %s177 = sphi 0, %s177
    %s179 = sphi 0, %s177
    %s180 = sphi 0, %s179
    %s194 = sphi 0, %s180
    %s198 = sphi 0, %s198
    %s200 = sphi 0, %s198
    %s201 = sphi 0, %s200
    %s215 = sphi 0, %s201
    %s221 = sphi 0, %s223
    %s224 = sphi 0, %s221
    %s225 = sphi 0, %s224
    %s241 = sphi 0, %s225
  $region4: #{small_conv_mnist_forward.1} parent=0 // loop_header_branch
    %20 = sbr.rel (%p18) target = $region8
  $region5: #{small_conv_mnist_forward.1} parent=0 // loop_body
    %s22 = ssub.s32 %s17, 1
    %s23 = ssub.s32 %s17, 2
    %s24 = sadd.s32 %s17, 1
    %s25 = ssub.s32 %s17, %s24
    %p26 = scmp.eq.s32.totalorder %s25, 0
    %s28 = sadd.s32 %s27, 1
    %s29 = scalar_select %p26, %s27, %s28
    %p32 = pneg %p26
    %p33 = scmp.eq.s32.totalorder %s17, 1
    %p34 = por %p32, %p33
    %p35 = scmp.ne.s32.totalorder %s27, %s30
    %p36 = scmp.eq.s32.totalorder %s17, 0
    %p37 = por %p35, %p36
    %p38 = scmp.ne.s32.totalorder %s27, %s30
    %p39 = scmp.eq.s32.totalorder %s22, 1
    %p40 = por %p38, %p39
    %p41 = scmp.ne.s32.totalorder %s30, %s31
    %p42 = scmp.eq.s32.totalorder %s22, 0
    %p43 = por %p41, %p42
    %p44 = scmp.ne.s32.totalorder %s30, %s31
    %p45 = scmp.eq.s32.totalorder %s23, 1
    %p46 = por %p44, %p45
    %p48 = scmp.ne.s32.totalorder %s31, %s47
    %p49 = scmp.eq.s32.totalorder %s23, 0
    %p50 = por %p48, %p49
    %s52 = sadd.s32 %s51, 1
    %p55 = scmp.eq.s32.totalorder %s17, 1
    %p56 = scmp.ne.s32.totalorder %s51, %s53
    %p57 = scmp.eq.s32.totalorder %s17, 0
    %p58 = por %p56, %p57
    %p59 = scmp.ne.s32.totalorder %s51, %s53
    %p60 = scmp.eq.s32.totalorder %s22, 1
    %p61 = por %p59, %p60
    %p62 = scmp.ne.s32.totalorder %s53, %s54
    %p63 = scmp.eq.s32.totalorder %s22, 0
    %p64 = por %p62, %p63
    %p65 = scmp.ne.s32.totalorder %s53, %s54
    %p66 = scmp.eq.s32.totalorder %s23, 1
    %p67 = por %p65, %p66
    %p69 = scmp.ne.s32.totalorder %s54, %s68
    %p70 = scmp.eq.s32.totalorder %s23, 0
    %p71 = por %p69, %p70
    %s73 = sadd.s32 %s72, 1
    %p76 = scmp.eq.s32.totalorder %s17, 1
    %p77 = scmp.ne.s32.totalorder %s72, %s74
    %p78 = scmp.eq.s32.totalorder %s17, 0
    %p79 = por %p77, %p78
    %p80 = scmp.ne.s32.totalorder %s72, %s74
    %p81 = scmp.eq.s32.totalorder %s22, 1
    %p82 = por %p80, %p81
    %p83 = scmp.ne.s32.totalorder %s74, %s75
    %p84 = scmp.eq.s32.totalorder %s22, 0
    %p85 = por %p83, %p84
    %p86 = scmp.ne.s32.totalorder %s74, %s75
    %p87 = scmp.eq.s32.totalorder %s23, 1
    %p88 = por %p86, %p87
    %p90 = scmp.ne.s32.totalorder %s75, %s89
    %p91 = scmp.eq.s32.totalorder %s23, 0
    %p92 = por %p90, %p91
    %s94 = sadd.s32 %s93, 1
    %p97 = scmp.eq.s32.totalorder %s17, 1
    %p98 = scmp.ne.s32.totalorder %s93, %s95
    %p99 = scmp.eq.s32.totalorder %s17, 0
    %p100 = por %p98, %p99
    %p101 = scmp.ne.s32.totalorder %s93, %s95
    %p102 = scmp.eq.s32.totalorder %s22, 1
    %p103 = por %p101, %p102
    %p104 = scmp.ne.s32.totalorder %s95, %s96
    %p105 = scmp.eq.s32.totalorder %s22, 0
    %p106 = por %p104, %p105
    %p107 = scmp.ne.s32.totalorder %s95, %s96
    %p108 = scmp.eq.s32.totalorder %s23, 1
    %p109 = por %p107, %p108
    %p111 = scmp.ne.s32.totalorder %s96, %s110
    %p112 = scmp.eq.s32.totalorder %s23, 0
    %p113 = por %p111, %p112
    %s115 = sadd.s32 %s114, 1
    %p118 = scmp.eq.s32.totalorder %s17, 1
    %p119 = scmp.ne.s32.totalorder %s114, %s116
    %p120 = scmp.eq.s32.totalorder %s17, 0
    %p121 = por %p119, %p120
    %p122 = scmp.ne.s32.totalorder %s114, %s116
    %p123 = scmp.eq.s32.totalorder %s22, 1
    %p124 = por %p122, %p123
    %p125 = scmp.ne.s32.totalorder %s116, %s117
    %p126 = scmp.eq.s32.totalorder %s22, 0
    %p127 = por %p125, %p126
    %p128 = scmp.ne.s32.totalorder %s116, %s117
    %p129 = scmp.eq.s32.totalorder %s23, 1
    %p130 = por %p128, %p129
    %p132 = scmp.ne.s32.totalorder %s117, %s131
    %p133 = scmp.eq.s32.totalorder %s23, 0
    %p134 = por %p132, %p133
    %s136 = sadd.s32 %s135, 1
    %p139 = scmp.eq.s32.totalorder %s17, 1
    %p140 = scmp.ne.s32.totalorder %s135, %s137
    %p141 = scmp.eq.s32.totalorder %s17, 0
    %p142 = por %p140, %p141
    %p143 = scmp.ne.s32.totalorder %s135, %s137
    %p144 = scmp.eq.s32.totalorder %s22, 1
    %p145 = por %p143, %p144
    %p146 = scmp.ne.s32.totalorder %s137, %s138
    %p147 = scmp.eq.s32.totalorder %s22, 0
    %p148 = por %p146, %p147
    %p149 = scmp.ne.s32.totalorder %s137, %s138
    %p150 = scmp.eq.s32.totalorder %s23, 1
    %p151 = por %p149, %p150
    %p153 = scmp.ne.s32.totalorder %s138, %s152
    %p154 = scmp.eq.s32.totalorder %s23, 0
    %p155 = por %p153, %p154
    %s157 = sadd.s32 %s156, 1
    %p160 = scmp.eq.s32.totalorder %s17, 1
    %p161 = scmp.ne.s32.totalorder %s156, %s158
    %p162 = scmp.eq.s32.totalorder %s17, 0
    %p163 = por %p161, %p162
    %p164 = scmp.ne.s32.totalorder %s156, %s158
    %p165 = scmp.eq.s32.totalorder %s22, 1
    %p166 = por %p164, %p165
    %p167 = scmp.ne.s32.totalorder %s158, %s159
    %p168 = scmp.eq.s32.totalorder %s22, 0
    %p169 = por %p167, %p168
    %p170 = scmp.ne.s32.totalorder %s158, %s159
    %p171 = scmp.eq.s32.totalorder %s23, 1
    %p172 = por %p170, %p171
    %p174 = scmp.ne.s32.totalorder %s159, %s173
    %p175 = scmp.eq.s32.totalorder %s23, 0
    %p176 = por %p174, %p175
    %s178 = sadd.s32 %s177, 1
    %p181 = scmp.eq.s32.totalorder %s17, 1
    %p182 = scmp.ne.s32.totalorder %s177, %s179
    %p183 = scmp.eq.s32.totalorder %s17, 0
    %p184 = por %p182, %p183
    %p185 = scmp.ne.s32.totalorder %s177, %s179
    %p186 = scmp.eq.s32.totalorder %s22, 1
    %p187 = por %p185, %p186
    %p188 = scmp.ne.s32.totalorder %s179, %s180
    %p189 = scmp.eq.s32.totalorder %s22, 0
    %p190 = por %p188, %p189
    %p191 = scmp.ne.s32.totalorder %s179, %s180
    %p192 = scmp.eq.s32.totalorder %s23, 1
    %p193 = por %p191, %p192
    %p195 = scmp.ne.s32.totalorder %s180, %s194
    %p196 = scmp.eq.s32.totalorder %s23, 0
    %p197 = por %p195, %p196
    %s199 = sadd.s32 %s198, 1
    %p202 = scmp.eq.s32.totalorder %s17, 1
    %p203 = scmp.ne.s32.totalorder %s198, %s200
    %p204 = scmp.eq.s32.totalorder %s17, 0
    %p205 = por %p203, %p204
    %p206 = scmp.ne.s32.totalorder %s198, %s200
    %p207 = scmp.eq.s32.totalorder %s22, 1
    %p208 = por %p206, %p207
    %p209 = scmp.ne.s32.totalorder %s200, %s201
    %p210 = scmp.eq.s32.totalorder %s22, 0
    %p211 = por %p209, %p210
    %p212 = scmp.ne.s32.totalorder %s200, %s201
    %p213 = scmp.eq.s32.totalorder %s23, 1
    %p214 = por %p212, %p213
    %p216 = scmp.ne.s32.totalorder %s201, %s215
    %p217 = scmp.eq.s32.totalorder %s23, 0
    %p218 = por %p216, %p217
    %s219 = ssub.s32 %s17, %s24
    %p220 = scmp.eq.s32.totalorder %s219, 0
    %s222 = sadd.s32 %s221, 1
    %s223 = scalar_select %p220, %s221, %s222
    %p226 = pneg %p220
    %p227 = scmp.eq.s32.totalorder %s17, 1
    %p228 = por %p226, %p227
    %p229 = scmp.ne.s32.totalorder %s221, %s224
    %p230 = scmp.eq.s32.totalorder %s17, 0
    %p231 = por %p229, %p230
    %p232 = scmp.ne.s32.totalorder %s221, %s224
    %p233 = scmp.eq.s32.totalorder %s22, 1
    %p234 = por %p232, %p233
    %p235 = scmp.ne.s32.totalorder %s224, %s225
    %p236 = scmp.eq.s32.totalorder %s22, 0
    %p237 = por %p235, %p236
    %p238 = scmp.ne.s32.totalorder %s224, %s225
    %p239 = scmp.eq.s32.totalorder %s23, 1
    %p240 = por %p238, %p239
    %p242 = scmp.ne.s32.totalorder %s225, %s241
    %p243 = scmp.eq.s32.totalorder %s23, 0
    %p244 = por %p242, %p243
    %p245 = scmp.le.s32.totalorder 1, %s17
    %p246 = scmp.lt.s32.totalorder %s17, 3
    %p247 = pnand %p245, %p246
    %p248 = pneg %p247
    // Predicated region
    $region9: #{small_conv_mnist_forward.1} parent=5 // pred_check
      _
    $region10: #{small_conv_mnist_forward.1} parent=5 // pred_check_branch
      %250 = sbr.rel (%p247) target = $region12
    $region11: #{small_conv_mnist_forward.1} parent=5 // pred_region
      %s251 = ssub.s32 %s17, 1
      // Predicated region
      $region13: #{small_conv_mnist_forward.1} parent=11 // pred_check
        %p252 = pneg %p64
      $region14: #{small_conv_mnist_forward.1} parent=11 // pred_check_branch
        %254 = sbr.rel (%p252) target = $region16
      $region15: #{small_conv_mnist_forward.1} parent=11 // pred_region
        _
      $region16: #{small_conv_mnist_forward.1} parent=11 // pred_fallthru
        _
      // Predicated region
      $region17: #{small_conv_mnist_forward.1} parent=11 // pred_check
        %p255 = pneg %p85
      $region18: #{small_conv_mnist_forward.1} parent=11 // pred_check_branch
        %257 = sbr.rel (%p255) target = $region20
      $region19: #{small_conv_mnist_forward.1} parent=11 // pred_region
        _
      $region20: #{small_conv_mnist_forward.1} parent=11 // pred_fallthru
        _
      // Predicated region
      $region21: #{small_conv_mnist_forward.1} parent=11 // pred_check
        %p258 = pneg %p106
      $region22: #{small_conv_mnist_forward.1} parent=11 // pred_check_branch
        %260 = sbr.rel (%p258) target = $region24
      $region23: #{small_conv_mnist_forward.1} parent=11 // pred_region
        _
      $region24: #{small_conv_mnist_forward.1} parent=11 // pred_fallthru
        _
      // Predicated region
      $region25: #{small_conv_mnist_forward.1} parent=11 // pred_check
        %p261 = pneg %p127
      $region26: #{small_conv_mnist_forward.1} parent=11 // pred_check_branch
        %263 = sbr.rel (%p261) target = $region28
      $region27: #{small_conv_mnist_forward.1} parent=11 // pred_region
        _
      $region28: #{small_conv_mnist_forward.1} parent=11 // pred_fallthru
        _
      // Predicated region
      $region29: #{small_conv_mnist_forward.1} parent=11 // pred_check
        %p264 = pneg %p148
      $region30: #{small_conv_mnist_forward.1} parent=11 // pred_check_branch
        %266 = sbr.rel (%p264) target = $region32
      $region31: #{small_conv_mnist_forward.1} parent=11 // pred_region
        _
      $region32: #{small_conv_mnist_forward.1} parent=11 // pred_fallthru
        _
      // Predicated region
      $region33: #{small_conv_mnist_forward.1} parent=11 // pred_check
        %p267 = pneg %p169
      $region34: #{small_conv_mnist_forward.1} parent=11 // pred_check_branch
        %269 = sbr.rel (%p267) target = $region36
      $region35: #{small_conv_mnist_forward.1} parent=11 // pred_region
        _
      $region36: #{small_conv_mnist_forward.1} parent=11 // pred_fallthru
        _
      // Predicated region
      $region37: #{small_conv_mnist_forward.1} parent=11 // pred_check
        %p270 = pneg %p190
      $region38: #{small_conv_mnist_forward.1} parent=11 // pred_check_branch
        %272 = sbr.rel (%p270) target = $region40
      $region39: #{small_conv_mnist_forward.1} parent=11 // pred_region
        _
      $region40: #{small_conv_mnist_forward.1} parent=11 // pred_fallthru
        _
      // Predicated region
      $region41: #{small_conv_mnist_forward.1} parent=11 // pred_check
        %p273 = pneg %p211
      $region42: #{small_conv_mnist_forward.1} parent=11 // pred_check_branch
        %275 = sbr.rel (%p273) target = $region44
      $region43: #{small_conv_mnist_forward.1} parent=11 // pred_region
        _
      $region44: #{small_conv_mnist_forward.1} parent=11 // pred_fallthru
        _
    $region12: #{small_conv_mnist_forward.1} parent=5 // pred_fallthru
      _
    %p276 = scmp.lt.s32.totalorder %s17, 2
    // Predicated region
    $region45: #{small_conv_mnist_forward.1} parent=5 // pred_check
      %p277 = pneg %p276
    $region46: #{small_conv_mnist_forward.1} parent=5 // pred_check_branch
      %279 = sbr.rel (%p277) target = $region48
    $region47: #{small_conv_mnist_forward.1} parent=5 // pred_region
      // Predicated region
      $region49: #{small_conv_mnist_forward.1} parent=47 // pred_check
        %p280 = pneg %p37
      $region50: #{small_conv_mnist_forward.1} parent=47 // pred_check_branch
        %282 = sbr.rel (%p280) target = $region52
      $region51: #{small_conv_mnist_forward.1} parent=47 // pred_region
        %p283 = scmp.lt.s32.totalorder %s17, 1
        %s284 = scalar_select %p283, %s17, 1
        %s285 = smul.addr %s284, 32
        %s286 = smul.addr %s285, 4
        %s287 = scalar_lea.vmem %s0, %s286
      $region52: #{small_conv_mnist_forward.1} parent=47 // pred_fallthru
        _
    $region48: #{small_conv_mnist_forward.1} parent=5 // pred_fallthru
      _
    %p288 = scmp.le.s32.totalorder 1, %s17
    %p289 = scmp.lt.s32.totalorder %s17, 3
    %p290 = pnand %p288, %p289
    %p291 = pneg %p290
    // Predicated region
    $region53: #{small_conv_mnist_forward.1} parent=5 // pred_check
      _
    $region54: #{small_conv_mnist_forward.1} parent=5 // pred_check_branch
      %293 = sbr.rel (%p290) target = $region56
    $region55: #{small_conv_mnist_forward.1} parent=5 // pred_region
      %s294 = ssub.s32 %s17, 1
      %p295 = scmp.lt.s32.totalorder %s22, 1
      %s296 = scalar_select %p295, %s22, 1
      %s297 = smul.addr %s296, 32
      %s298 = smul.addr %s297, 4
      %s299 = scalar_lea.vmem %s0, %s298
      %p300 = pneg %p43
      %p301 = pneg %p40
      %p302 = pneg %p64
      %p303 = pneg %p61
      %p304 = pneg %p85
      %p305 = pneg %p82
      %p306 = pneg %p106
      %p307 = pneg %p103
      %p308 = pneg %p127
      %p309 = pneg %p124
      %p310 = pneg %p148
      %p311 = pneg %p145
      %p312 = pneg %p169
      %p313 = pneg %p166
      %p314 = pneg %p190
      %p315 = pneg %p187
      %p316 = pneg %p211
      %p317 = pneg %p208
      %p318 = pneg %p237
      %p319 = pneg %p234
      %p320 = scmp.lt.s32.totalorder %s22, 1
      %s321 = scalar_select %p320, %s22, 1
      %s322 = smul.addr %s321, 8
      %s323 = scalar_lea.vmem %s9, %s322
      %p324 = scmp.lt.s32.totalorder %s22, 1
      %s325 = scalar_select %p324, %s22, 1
      %s326 = smul.addr %s325, 32
      %s327 = smul.addr %s326, 4
      %s328 = scalar_lea.vmem %s0, %s327
      %p329 = scmp.lt.s32.totalorder %s22, 1
      %s330 = scalar_select %p329, %s22, 1
      %s331 = smul.addr %s330, 8
      %s332 = scalar_lea.vmem %s9, %s331
      %v334 = vld [vmem:[%s328] sm:$0xf]
      %v335 = vld [vmem:[%s328 + $0x4] sm:$0xf]
      %v336 = vld [vmem:[%s328 + $0x8] sm:$0xf]
      %v337 = vld [vmem:[%s328 + $0xc] sm:$0xf]
      %v338 = vld [vmem:[%s328 + $0x10] sm:$0xf]
      %v339 = vld [vmem:[%s328 + $0x14] sm:$0xf]
      %v340 = vld [vmem:[%s328 + $0x18] sm:$0xf]
      %v341 = vld [vmem:[%s328 + $0x1c] sm:$0xf]
      %v342 = vld [vmem:[%s1] sm:$0xff]
      %v343 = vld [vmem:[%s1 + $0x8] sm:$0xff]
      %v344 = vld [vmem:[%s1 + $0x10] sm:$0xff]
      %v345 = vld [vmem:[%s1 + $0x18] sm:$0xff]
      %v346 = vld [vmem:[%s1 + $0x20] sm:$0xff]
      %v347 = vld [vmem:[%s1 + $0x28] sm:$0xff]
      %v348 = vld [vmem:[%s1 + $0x30] sm:$0xff]
      %v349 = vld [vmem:[%s1 + $0x38] sm:$0xff]
      %v350 = vld [vmem:[%s1 + $0x40] sm:$0xff]
      %v351 = vld [vmem:[%s1 + $0x48] sm:$0xff]
      %v352 = vld [vmem:[%s1 + $0x50] sm:$0xff]
      %v353 = vld [vmem:[%s1 + $0x58] sm:$0xff]
      %v354 = vld [vmem:[%s1 + $0x60] sm:$0xff]
      %v355 = vld [vmem:[%s1 + $0x68] sm:$0xff]
      %v356 = vld [vmem:[%s1 + $0x70] sm:$0xff]
      %v357 = vld [vmem:[%s1 + $0x78] sm:$0xff]
      %v358 = vld [vmem:[%s1 + $0x80] sm:$0xff]
      %v359 = vld [vmem:[%s1 + $0x88] sm:$0xff]
      %v360 = vld [vmem:[%s1 + $0x90] sm:$0xff]
      %v361 = vld [vmem:[%s1 + $0x98] sm:$0xff]
      %v362 = vld [vmem:[%s1 + $0xa0] sm:$0xff]
      %v363 = vld [vmem:[%s1 + $0xa8] sm:$0xff]
      %v364 = vld [vmem:[%s1 + $0xb0] sm:$0xff]
      %v365 = vld [vmem:[%s1 + $0xb8] sm:$0xff]
      %v366 = vld [vmem:[%s1 + $0xc0] sm:$0xff]
      %v367 = vld [vmem:[%s1 + $0xc8] sm:$0xff]
      %v368 = vld [vmem:[%s1 + $0xd0] sm:$0xff]
      %v369 = vld [vmem:[%s1 + $0xd8] sm:$0xff]
      %v370 = vld [vmem:[%s1 + $0xe0] sm:$0xff]
      %v371 = vld [vmem:[%s1 + $0xe8] sm:$0xff]
      %v372 = vld [vmem:[%s1 + $0xf0] sm:$0xff]
      %v373 = vld [vmem:[%s1 + $0xf8] sm:$0xff]
      %v382 = vunpack.c.l.b16 %v334
      %v383 = vunpack.c.l.b16 %v335
      %v384 = vunpack.c.l.b16 %v336
      %v385 = vunpack.c.l.b16 %v337
      %v386 = vunpack.c.l.b16 %v338
      %v387 = vunpack.c.l.b16 %v339
      %v388 = vunpack.c.l.b16 %v340
      %v389 = vunpack.c.l.b16 %v341
      %v390 = vpack.c.b16 %v383, %v382
      %v391 = vpack.c.b16 %v385, %v384
      %v392 = vpack.c.b16 %v387, %v386
      %v393 = vpack.c.b16 %v389, %v388
      %v430 = vunpack.c.l.b16 %v342
      %v431 = vunpack.c.h.b16 %v342
      %v432 = vunpack.c.l.b16 %v343
      %v433 = vunpack.c.h.b16 %v343
      %v434 = vunpack.c.l.b16 %v344
      %v435 = vunpack.c.h.b16 %v344
      %v436 = vunpack.c.l.b16 %v345
      %v437 = vunpack.c.h.b16 %v345
      %v438 = vunpack.c.l.b16 %v346
      %v439 = vunpack.c.h.b16 %v346
      %v440 = vunpack.c.l.b16 %v347
      %v441 = vunpack.c.h.b16 %v347
      %v442 = vunpack.c.l.b16 %v348
      %v443 = vunpack.c.h.b16 %v348
      %v444 = vunpack.c.l.b16 %v349
      %v445 = vunpack.c.h.b16 %v349
      %v446 = vunpack.c.l.b16 %v350
      %v447 = vunpack.c.h.b16 %v350
      %v448 = vunpack.c.l.b16 %v351
      %v449 = vunpack.c.h.b16 %v351
      %v450 = vunpack.c.l.b16 %v352
      %v451 = vunpack.c.h.b16 %v352
      %v452 = vunpack.c.l.b16 %v353
      %v453 = vunpack.c.h.b16 %v353
      %v454 = vunpack.c.l.b16 %v354
      %v455 = vunpack.c.h.b16 %v354
      %v456 = vunpack.c.l.b16 %v355
      %v457 = vunpack.c.h.b16 %v355
      %v458 = vunpack.c.l.b16 %v356
      %v459 = vunpack.c.h.b16 %v356
      %v460 = vunpack.c.l.b16 %v357
      %v461 = vunpack.c.h.b16 %v357
      %v462 = vunpack.c.l.b16 %v358
      %v463 = vunpack.c.h.b16 %v358
      %v464 = vunpack.c.l.b16 %v359
      %v465 = vunpack.c.h.b16 %v359
      %v466 = vunpack.c.l.b16 %v360
      %v467 = vunpack.c.h.b16 %v360
      %v468 = vunpack.c.l.b16 %v361
      %v469 = vunpack.c.h.b16 %v361
      %v470 = vunpack.c.l.b16 %v362
      %v471 = vunpack.c.h.b16 %v362
      %v472 = vunpack.c.l.b16 %v363
      %v473 = vunpack.c.h.b16 %v363
      %v474 = vunpack.c.l.b16 %v364
      %v475 = vunpack.c.h.b16 %v364
      %v476 = vunpack.c.l.b16 %v365
      %v477 = vunpack.c.h.b16 %v365
      %v478 = vunpack.c.l.b16 %v366
      %v479 = vunpack.c.h.b16 %v366
      %v480 = vunpack.c.l.b16 %v367
      %v481 = vunpack.c.h.b16 %v367
      %v482 = vunpack.c.l.b16 %v368
      %v483 = vunpack.c.h.b16 %v368
      %v484 = vunpack.c.l.b16 %v369
      %v485 = vunpack.c.h.b16 %v369
      %v486 = vunpack.c.l.b16 %v370
      %v487 = vunpack.c.h.b16 %v370
      %v488 = vunpack.c.l.b16 %v371
      %v489 = vunpack.c.h.b16 %v371
      %v490 = vunpack.c.l.b16 %v372
      %v491 = vunpack.c.h.b16 %v372
      %v492 = vunpack.c.l.b16 %v373
      %v493 = vunpack.c.h.b16 %v373
      %v494 = vpack.c.b16 %v434, %v430
      %v495 = vpack.c.b16 %v435, %v431
      %v496 = vpack.c.b16 %v436, %v432
      %v497 = vpack.c.b16 %v437, %v433
      %v498 = vpack.c.b16 %v442, %v438
      %v499 = vpack.c.b16 %v443, %v439
      %v500 = vpack.c.b16 %v444, %v440
      %v501 = vpack.c.b16 %v445, %v441
      %v502 = vpack.c.b16 %v450, %v446
      %v503 = vpack.c.b16 %v451, %v447
      %v504 = vpack.c.b16 %v452, %v448
      %v505 = vpack.c.b16 %v453, %v449
      %v506 = vpack.c.b16 %v458, %v454
      %v507 = vpack.c.b16 %v459, %v455
      %v508 = vpack.c.b16 %v460, %v456
      %v509 = vpack.c.b16 %v461, %v457
      %v510 = vpack.c.b16 %v466, %v462
      %v511 = vpack.c.b16 %v467, %v463
      %v512 = vpack.c.b16 %v468, %v464
      %v513 = vpack.c.b16 %v469, %v465
      %v514 = vpack.c.b16 %v474, %v470
      %v515 = vpack.c.b16 %v475, %v471
      %v516 = vpack.c.b16 %v476, %v472
      %v517 = vpack.c.b16 %v477, %v473
      %v518 = vpack.c.b16 %v482, %v478
      %v519 = vpack.c.b16 %v483, %v479
      %v520 = vpack.c.b16 %v484, %v480
      %v521 = vpack.c.b16 %v485, %v481
      %v522 = vpack.c.b16 %v490, %v486
      %v523 = vpack.c.b16 %v491, %v487
      %v524 = vpack.c.b16 %v492, %v488
      %v525 = vpack.c.b16 %v493, %v489
      %558 = vmatprep.subr.bf16.mxu0 %v495
      %559 = vmatpush1.bf16.msra.mxu0 %v494
      %560 = vmatprep.subr.bf16.mxu0 %v499
      %561 = vmatpush1.bf16.msra.mxu0 %v498
      %562 = vmatprep.subr.bf16.mxu0 %v503
      %563 = vmatpush1.bf16.msra.mxu0 %v502
      %564 = vmatprep.subr.bf16.mxu0 %v507
      %565 = vmatpush1.bf16.msra.mxu0 %v506
      %566 = vmatprep.subr.bf16.mxu0 %v511
      %567 = vmatpush1.bf16.msra.mxu0 %v510
      %568 = vmatprep.subr.bf16.mxu0 %v515
      %569 = vmatpush1.bf16.msra.mxu0 %v514
      %570 = vmatprep.subr.bf16.mxu0 %v519
      %571 = vmatpush1.bf16.msra.mxu0 %v518
      %572 = vmatprep.subr.bf16.mxu0 %v523
      %573 = vmatpush1.bf16.msra.mxu0 %v522
      %574 = vmatprep.subr.bf16.mxu0 0
      %575 = vmatpush1.bf16.msra.mxu0 0
      %576 = vmatprep.subr.bf16.mxu0 0
      %577 = vmatpush1.bf16.msra.mxu0 0
      %578 = vmatprep.subr.bf16.mxu0 0
      %579 = vmatpush1.bf16.msra.mxu0 0
      %580 = vmatprep.subr.bf16.mxu0 0
      %581 = vmatpush1.bf16.msra.mxu0 0
      %582 = vmatprep.subr.bf16.mxu0 0
      %583 = vmatpush1.bf16.msra.mxu0 0
      %584 = vmatprep.subr.bf16.mxu0 0
      %585 = vmatpush1.bf16.msra.mxu0 0
      %586 = vmatprep.subr.bf16.mxu0 0
      %587 = vmatpush1.bf16.msra.mxu0 0
      %588 = vmatprep.subr.bf16.mxu0 0
      %589 = vmatpush1.bf16.msra.mxu0 0
      %590 = vmatprep.mubr.bf16.mxu0 0
      %591 = vmatmul.mubr.bf16.gmra.mrb[0].mxu0 %v390
      %v592 = vpop.f32.mrb[0].mxu0
      %v593 = vadd.f32 0.0, %v592
      %v594 = vpop.f32.mrb[0].mxu0
      %v595 = vadd.f32 0.0, %v594
      %v596 = vpop.f32.mrb[0].mxu0
      %v597 = vadd.f32 0.0, %v596
      %v598 = vpop.f32.mrb[0].mxu0
      %v599 = vadd.f32 0.0, %v598
      %600 = vmatprep.mubr.bf16.mxu0 0
      %601 = vmatmul.mubr.bf16.gmra.mrb[0].mxu0 %v391
      %v602 = vpop.f32.mrb[0].mxu0
      %v603 = vadd.f32 0.0, %v602
      %v604 = vpop.f32.mrb[0].mxu0
      %v605 = vadd.f32 0.0, %v604
      %v606 = vpop.f32.mrb[0].mxu0
      %v607 = vadd.f32 0.0, %v606
      %v608 = vpop.f32.mrb[0].mxu0
      %v609 = vadd.f32 0.0, %v608
      %610 = vmatprep.mubr.bf16.mxu0 0
      %611 = vmatmul.mubr.bf16.gmra.mrb[0].mxu0 %v392
      %v612 = vpop.f32.mrb[0].mxu0
      %v613 = vadd.f32 0.0, %v612
      %v614 = vpop.f32.mrb[0].mxu0
      %v615 = vadd.f32 0.0, %v614
      %v616 = vpop.f32.mrb[0].mxu0
      %v617 = vadd.f32 0.0, %v616
      %v618 = vpop.f32.mrb[0].mxu0
      %v619 = vadd.f32 0.0, %v618
      %620 = vmatprep.mubr.bf16.mxu0 0
      %621 = vmatmul.mubr.bf16.gmra.mrb[0].mxu0 %v393
      %v622 = vpop.f32.mrb[0].mxu0
      %v623 = vadd.f32 0.0, %v622
      %v624 = vpop.f32.mrb[0].mxu0
      %v625 = vadd.f32 0.0, %v624
      %v626 = vpop.f32.mrb[0].mxu0
      %v627 = vadd.f32 0.0, %v626
      %v628 = vpop.f32.mrb[0].mxu0
      %v629 = vadd.f32 0.0, %v628
      %630 = vdwg.mxu0
      %631 = vmatprep.subr.bf16.mxu0 %v497
      %632 = vmatpush1.bf16.msra.mxu0 %v496
      %633 = vmatprep.subr.bf16.mxu0 %v501
      %634 = vmatpush1.bf16.msra.mxu0 %v500
      %635 = vmatprep.subr.bf16.mxu0 %v505
      %636 = vmatpush1.bf16.msra.mxu0 %v504
      %637 = vmatprep.subr.bf16.mxu0 %v509
      %638 = vmatpush1.bf16.msra.mxu0 %v508
      %639 = vmatprep.subr.bf16.mxu0 %v513
      %640 = vmatpush1.bf16.msra.mxu0 %v512
      %641 = vmatprep.subr.bf16.mxu0 %v517
      %642 = vmatpush1.bf16.msra.mxu0 %v516
      %643 = vmatprep.subr.bf16.mxu0 %v521
      %644 = vmatpush1.bf16.msra.mxu0 %v520
      %645 = vmatprep.subr.bf16.mxu0 %v525
      %646 = vmatpush1.bf16.msra.mxu0 %v524
      %647 = vmatprep.subr.bf16.mxu0 0
      %648 = vmatpush1.bf16.msra.mxu0 0
      %649 = vmatprep.subr.bf16.mxu0 0
      %650 = vmatpush1.bf16.msra.mxu0 0
      %651 = vmatprep.subr.bf16.mxu0 0
      %652 = vmatpush1.bf16.msra.mxu0 0
      %653 = vmatprep.subr.bf16.mxu0 0
      %654 = vmatpush1.bf16.msra.mxu0 0
      %655 = vmatprep.subr.bf16.mxu0 0
      %656 = vmatpush1.bf16.msra.mxu0 0
      %657 = vmatprep.subr.bf16.mxu0 0
      %658 = vmatpush1.bf16.msra.mxu0 0
      %659 = vmatprep.subr.bf16.mxu0 0
      %660 = vmatpush1.bf16.msra.mxu0 0
      %661 = vmatprep.subr.bf16.mxu0 0
      %662 = vmatpush1.bf16.msra.mxu0 0
      %663 = vmatprep.mubr.bf16.mxu0 0
      %664 = vmatmul.mubr.bf16.gmra.mrb[0].mxu0 %v390
      %v665 = vpop.f32.mrb[0].mxu0
      %v666 = vadd.f32 0.0, %v665
      %v667 = vpop.f32.mrb[0].mxu0
      %v668 = vadd.f32 0.0, %v667
      %v669 = vpop.f32.mrb[0].mxu0
      %v670 = vadd.f32 0.0, %v669
      %v671 = vpop.f32.mrb[0].mxu0
      %v672 = vadd.f32 0.0, %v671
      %673 = vmatprep.mubr.bf16.mxu0 0
      %674 = vmatmul.mubr.bf16.gmra.mrb[0].mxu0 %v391
      %v675 = vpop.f32.mrb[0].mxu0
      %v676 = vadd.f32 0.0, %v675
      %v677 = vpop.f32.mrb[0].mxu0
      %v678 = vadd.f32 0.0, %v677
      %v679 = vpop.f32.mrb[0].mxu0
      %v680 = vadd.f32 0.0, %v679
      %v681 = vpop.f32.mrb[0].mxu0
      %v682 = vadd.f32 0.0, %v681
      %683 = vmatprep.mubr.bf16.mxu0 0
      %684 = vmatmul.mubr.bf16.gmra.mrb[0].mxu0 %v392
      %v685 = vpop.f32.mrb[0].mxu0
      %v686 = vadd.f32 0.0, %v685
      %v687 = vpop.f32.mrb[0].mxu0
      %v688 = vadd.f32 0.0, %v687
      %v689 = vpop.f32.mrb[0].mxu0
      %v690 = vadd.f32 0.0, %v689
      %v691 = vpop.f32.mrb[0].mxu0
      %v692 = vadd.f32 0.0, %v691
      %693 = vmatprep.mubr.bf16.mxu0 0
      %694 = vmatmul.mubr.bf16.gmra.mrb[0].mxu0 %v393
      %v695 = vpop.f32.mrb[0].mxu0
      %v696 = vadd.f32 0.0, %v695
      %v697 = vpop.f32.mrb[0].mxu0
      %v698 = vadd.f32 0.0, %v697
      %v699 = vpop.f32.mrb[0].mxu0
      %v700 = vadd.f32 0.0, %v699
      %v701 = vpop.f32.mrb[0].mxu0
      %v702 = vadd.f32 0.0, %v701
      %703 = vdwg.mxu0
      %s704 = scalar_lea.vmem %s328, 64
      %v705 = vld [vmem:[%s704] sm:$0xf]
      %v706 = vld [vmem:[%s704 + $0x4] sm:$0xf]
      %v707 = vld [vmem:[%s704 + $0x8] sm:$0xf]
      %v708 = vld [vmem:[%s704 + $0xc] sm:$0xf]
      %v709 = vld [vmem:[%s704 + $0x10] sm:$0xf]
      %v710 = vld [vmem:[%s704 + $0x14] sm:$0xf]
      %v711 = vld [vmem:[%s704 + $0x18] sm:$0xf]
      %v712 = vld [vmem:[%s704 + $0x1c] sm:$0xf]
      %v721 = vunpack.c.l.b16 %v705
      %v722 = vunpack.c.l.b16 %v706
      %v723 = vunpack.c.l.b16 %v707
      %v724 = vunpack.c.l.b16 %v708
      %v725 = vunpack.c.l.b16 %v709
      %v726 = vunpack.c.l.b16 %v710
      %v727 = vunpack.c.l.b16 %v711
      %v728 = vunpack.c.l.b16 %v712
      %v729 = vpack.c.b16 %v722, %v721
      %v730 = vpack.c.b16 %v724, %v723
      %v731 = vpack.c.b16 %v726, %v725
      %v732 = vpack.c.b16 %v728, %v727
      %737 = vmatprep.subr.bf16.mxu0 %v495
      %738 = vmatpush1.bf16.msra.mxu0 %v494
      %739 = vmatprep.subr.bf16.mxu0 %v499
      %740 = vmatpush1.bf16.msra.mxu0 %v498
      %741 = vmatprep.subr.bf16.mxu0 %v503
      %742 = vmatpush1.bf16.msra.mxu0 %v502
      %743 = vmatprep.subr.bf16.mxu0 %v507
      %744 = vmatpush1.bf16.msra.mxu0 %v506
      %745 = vmatprep.subr.bf16.mxu0 %v511
      %746 = vmatpush1.bf16.msra.mxu0 %v510
      %747 = vmatprep.subr.bf16.mxu0 %v515
      %748 = vmatpush1.bf16.msra.mxu0 %v514
      %749 = vmatprep.subr.bf16.mxu0 %v519
      %750 = vmatpush1.bf16.msra.mxu0 %v518
      %751 = vmatprep.subr.bf16.mxu0 %v523
      %752 = vmatpush1.bf16.msra.mxu0 %v522
      %753 = vmatprep.subr.bf16.mxu0 0
      %754 = vmatpush1.bf16.msra.mxu0 0
      %755 = vmatprep.subr.bf16.mxu0 0
      %756 = vmatpush1.bf16.msra.mxu0 0
      %757 = vmatprep.subr.bf16.mxu0 0
      %758 = vmatpush1.bf16.msra.mxu0 0
      %759 = vmatprep.subr.bf16.mxu0 0
      %760 = vmatpush1.bf16.msra.mxu0 0
      %761 = vmatprep.subr.bf16.mxu0 0
      %762 = vmatpush1.bf16.msra.mxu0 0
      %763 = vmatprep.subr.bf16.mxu0 0
      %764 = vmatpush1.bf16.msra.mxu0 0
      %765 = vmatprep.subr.bf16.mxu0 0
      %766 = vmatpush1.bf16.msra.mxu0 0
      %767 = vmatprep.subr.bf16.mxu0 0
      %768 = vmatpush1.bf16.msra.mxu0 0
      %769 = vmatprep.mubr.bf16.mxu0 0
      %770 = vmatmul.mubr.bf16.gmra.mrb[0].mxu0 %v729
      %v771 = vpop.f32.mrb[0].mxu0
      %v772 = vadd.f32 0.0, %v771
      %v773 = vpop.f32.mrb[0].mxu0
      %v774 = vadd.f32 0.0, %v773
      %v775 = vpop.f32.mrb[0].mxu0
      %v776 = vadd.f32 0.0, %v775
      %v777 = vpop.f32.mrb[0].mxu0
      %v778 = vadd.f32 0.0, %v777
      %779 = vmatprep.mubr.bf16.mxu0 0
      %780 = vmatmul.mubr.bf16.gmra.mrb[0].mxu0 %v730
      %v781 = vpop.f32.mrb[0].mxu0
      %v782 = vadd.f32 0.0, %v781
      %v783 = vpop.f32.mrb[0].mxu0
      %v784 = vadd.f32 0.0, %v783
      %v785 = vpop.f32.mrb[0].mxu0
      %v786 = vadd.f32 0.0, %v785
      %v787 = vpop.f32.mrb[0].mxu0
      %v788 = vadd.f32 0.0, %v787
      %789 = vmatprep.mubr.bf16.mxu0 0
      %790 = vmatmul.mubr.bf16.gmra.mrb[0].mxu0 %v731
      %v791 = vpop.f32.mrb[0].mxu0
      %v792 = vadd.f32 0.0, %v791
      %v793 = vpop.f32.mrb[0].mxu0
      %v794 = vadd.f32 0.0, %v793
      %v795 = vpop.f32.mrb[0].mxu0
      %v796 = vadd.f32 0.0, %v795
      %v797 = vpop.f32.mrb[0].mxu0
      %v798 = vadd.f32 0.0, %v797
      %799 = vmatprep.mubr.bf16.mxu0 0
      %800 = vmatmul.mubr.bf16.gmra.mrb[0].mxu0 %v732
      %v801 = vpop.f32.mrb[0].mxu0
      %v802 = vadd.f32 0.0, %v801
      %v803 = vpop.f32.mrb[0].mxu0
      %v804 = vadd.f32 0.0, %v803
      %v805 = vpop.f32.mrb[0].mxu0
      %v806 = vadd.f32 0.0, %v805
      %v807 = vpop.f32.mrb[0].mxu0
      %v808 = vadd.f32 0.0, %v807
      %809 = vdwg.mxu0
      %810 = vmatprep.subr.bf16.mxu0 %v497
      %811 = vmatpush1.bf16.msra.mxu0 %v496
      %812 = vmatprep.subr.bf16.mxu0 %v501
      %813 = vmatpush1.bf16.msra.mxu0 %v500
      %814 = vmatprep.subr.bf16.mxu0 %v505
      %815 = vmatpush1.bf16.msra.mxu0 %v504
      %816 = vmatprep.subr.bf16.mxu0 %v509
      %817 = vmatpush1.bf16.msra.mxu0 %v508
      %818 = vmatprep.subr.bf16.mxu0 %v513
      %819 = vmatpush1.bf16.msra.mxu0 %v512
      %820 = vmatprep.subr.bf16.mxu0 %v517
      %821 = vmatpush1.bf16.msra.mxu0 %v516
      %822 = vmatprep.subr.bf16.mxu0 %v521
      %823 = vmatpush1.bf16.msra.mxu0 %v520
      %824 = vmatprep.subr.bf16.mxu0 %v525
      %825 = vmatpush1.bf16.msra.mxu0 %v524
      %826 = vmatprep.subr.bf16.mxu0 0
      %827 = vmatpush1.bf16.msra.mxu0 0
      %828 = vmatprep.subr.bf16.mxu0 0
      %829 = vmatpush1.bf16.msra.mxu0 0
      %830 = vmatprep.subr.bf16.mxu0 0
      %831 = vmatpush1.bf16.msra.mxu0 0
      %832 = vmatprep.subr.bf16.mxu0 0
      %833 = vmatpush1.bf16.msra.mxu0 0
      %834 = vmatprep.subr.bf16.mxu0 0
      %835 = vmatpush1.bf16.msra.mxu0 0
      %836 = vmatprep.subr.bf16.mxu0 0
      %837 = vmatpush1.bf16.msra.mxu0 0
      %838 = vmatprep.subr.bf16.mxu0 0
      %839 = vmatpush1.bf16.msra.mxu0 0
      %840 = vmatprep.subr.bf16.mxu0 0
      %841 = vmatpush1.bf16.msra.mxu0 0
      %842 = vmatprep.mubr.bf16.mxu0 0
      %843 = vmatmul.mubr.bf16.gmra.mrb[0].mxu0 %v729
      %v844 = vpop.f32.mrb[0].mxu0
      %v845 = vadd.f32 0.0, %v844
      %v846 = vpop.f32.mrb[0].mxu0
      %v847 = vadd.f32 0.0, %v846
      %v848 = vpop.f32.mrb[0].mxu0
      %v849 = vadd.f32 0.0, %v848
      %v850 = vpop.f32.mrb[0].mxu0
      %v851 = vadd.f32 0.0, %v850
      %852 = vmatprep.mubr.bf16.mxu0 0
      %853 = vmatmul.mubr.bf16.gmra.mrb[0].mxu0 %v730
      %v854 = vpop.f32.mrb[0].mxu0
      %v855 = vadd.f32 0.0, %v854
      %v856 = vpop.f32.mrb[0].mxu0
      %v857 = vadd.f32 0.0, %v856
      %v858 = vpop.f32.mrb[0].mxu0
      %v859 = vadd.f32 0.0, %v858
      %v860 = vpop.f32.mrb[0].mxu0
      %v861 = vadd.f32 0.0, %v860
      %862 = vmatprep.mubr.bf16.mxu0 0
      %863 = vmatmul.mubr.bf16.gmra.mrb[0].mxu0 %v731
      %v864 = vpop.f32.mrb[0].mxu0
      %v865 = vadd.f32 0.0, %v864
      %v866 = vpop.f32.mrb[0].mxu0
      %v867 = vadd.f32 0.0, %v866
      %v868 = vpop.f32.mrb[0].mxu0
      %v869 = vadd.f32 0.0, %v868
      %v870 = vpop.f32.mrb[0].mxu0
      %v871 = vadd.f32 0.0, %v870
      %872 = vmatprep.mubr.bf16.mxu0 0
      %873 = vmatmul.mubr.bf16.gmra.mrb[0].mxu0 %v732
      %v874 = vpop.f32.mrb[0].mxu0
      %v875 = vadd.f32 0.0, %v874
      %v876 = vpop.f32.mrb[0].mxu0
      %v877 = vadd.f32 0.0, %v876
      %v878 = vpop.f32.mrb[0].mxu0
      %v879 = vadd.f32 0.0, %v878
      %v880 = vpop.f32.mrb[0].mxu0
      %v881 = vadd.f32 0.0, %v880
      %882 = vdwg.mxu0
      %v883 = vmax.f32 %v593, %v772
      %v884 = vmax.f32 %v595, %v774
      %v885 = vmax.f32 %v666, %v845
      %v886 = vmax.f32 %v668, %v847
      %v887 = vmax.f32 %v597, %v776
      %v888 = vmax.f32 %v599, %v778
      %v889 = vmax.f32 %v670, %v849
      %v890 = vmax.f32 %v672, %v851
      %v891 = vmax.f32 %v603, %v782
      %v892 = vmax.f32 %v605, %v784
      %v893 = vmax.f32 %v676, %v855
      %v894 = vmax.f32 %v678, %v857
      %v895 = vmax.f32 %v607, %v786
      %v896 = vmax.f32 %v609, %v788
      %v897 = vmax.f32 %v680, %v859
      %v898 = vmax.f32 %v682, %v861
      %v899 = vmax.f32 %v613, %v792
      %v900 = vmax.f32 %v615, %v794
      %v901 = vmax.f32 %v686, %v865
      %v902 = vmax.f32 %v688, %v867
      %v903 = vmax.f32 %v617, %v796
      %v904 = vmax.f32 %v619, %v798
      %v905 = vmax.f32 %v690, %v869
      %v906 = vmax.f32 %v692, %v871
      %v907 = vmax.f32 %v623, %v802
      %v908 = vmax.f32 %v625, %v804
      %v909 = vmax.f32 %v696, %v875
      %v910 = vmax.f32 %v698, %v877
      %v911 = vmax.f32 %v627, %v806
      %v912 = vmax.f32 %v629, %v808
      %v913 = vmax.f32 %v700, %v879
      %v914 = vmax.f32 %v702, %v881
      %v915 = vmax.f32 %v883, %v885
      %v916 = vmax.f32 %v884, %v886
      %v917 = vmax.f32 %v887, %v889
      %v918 = vmax.f32 %v888, %v890
      %v919 = vmax.f32 %v891, %v893
      %v920 = vmax.f32 %v892, %v894
      %v921 = vmax.f32 %v895, %v897
      %v922 = vmax.f32 %v896, %v898
      %v923 = vmax.f32 %v899, %v901
      %v924 = vmax.f32 %v900, %v902
      %v925 = vmax.f32 %v903, %v905
      %v926 = vmax.f32 %v904, %v906
      %v927 = vmax.f32 %v907, %v909
      %v928 = vmax.f32 %v908, %v910
      %v929 = vmax.f32 %v911, %v913
      %v930 = vmax.f32 %v912, %v914
      %v931 = vld [vmem:[%s2] sm:$0x3]
      %v933 = vlaneseq
      %v934 = vshrl.u32 %v933, 7
      %v935 = vsub.s32 0, %v934
      %v936 = vrot.slane %v931, %v935
      %v937 = vlaneseq
      %v938 = vshrl.u32 %v937, 7
      %v939 = vsub.s32 1, %v938
      %v940 = vrot.slane %v931, %v939
      %v943 = vadd.f32 %v915, %v936
      %v944 = vadd.f32 %v916, %v940
      %v945 = vadd.f32 %v917, %v936
      %v946 = vadd.f32 %v918, %v940
      %v947 = vadd.f32 %v919, %v936
      %v948 = vadd.f32 %v920, %v940
      %v949 = vadd.f32 %v921, %v936
      %v950 = vadd.f32 %v922, %v940
      %v951 = vadd.f32 %v923, %v936
      %v952 = vadd.f32 %v924, %v940
      %v953 = vadd.f32 %v925, %v936
      %v954 = vadd.f32 %v926, %v940
      %v955 = vadd.f32 %v927, %v936
      %v956 = vadd.f32 %v928, %v940
      %v957 = vadd.f32 %v929, %v936
      %v958 = vadd.f32 %v930, %v940
      %v959 = vmax.f32 %v943, 0.0
      %v960 = vmax.f32 %v944, 0.0
      %v961 = vmax.f32 %v945, 0.0
      %v962 = vmax.f32 %v946, 0.0
      %v963 = vmax.f32 %v947, 0.0
      %v964 = vmax.f32 %v948, 0.0
      %v965 = vmax.f32 %v949, 0.0
      %v966 = vmax.f32 %v950, 0.0
      %v967 = vmax.f32 %v951, 0.0
      %v968 = vmax.f32 %v952, 0.0
      %v969 = vmax.f32 %v953, 0.0
      %v970 = vmax.f32 %v954, 0.0
      %v971 = vmax.f32 %v955, 0.0
      %v972 = vmax.f32 %v956, 0.0
      %v973 = vmax.f32 %v957, 0.0
      %v974 = vmax.f32 %v958, 0.0
      %s975 = scalar_lea.vmem %s328, 32
      %v976 = vld [vmem:[%s975] sm:$0xf]
      %v977 = vld [vmem:[%s975 + $0x4] sm:$0xf]
      %v978 = vld [vmem:[%s975 + $0x8] sm:$0xf]
      %v979 = vld [vmem:[%s975 + $0xc] sm:$0xf]
      %v980 = vld [vmem:[%s975 + $0x10] sm:$0xf]
      %v981 = vld [vmem:[%s975 + $0x14] sm:$0xf]
      %v982 = vld [vmem:[%s975 + $0x18] sm:$0xf]
      %v983 = vld [vmem:[%s975 + $0x1c] sm:$0xf]
      %v992 = vunpack.c.l.b16 %v976
      %v993 = vunpack.c.l.b16 %v977
      %v994 = vunpack.c.l.b16 %v978
      %v995 = vunpack.c.l.b16 %v979
      %v996 = vunpack.c.l.b16 %v980
      %v997 = vunpack.c.l.b16 %v981
      %v998 = vunpack.c.l.b16 %v982
      %v999 = vunpack.c.l.b16 %v983
      %v1000 = vpack.c.b16 %v993, %v992
      %v1001 = vpack.c.b16 %v995, %v994
      %v1002 = vpack.c.b16 %v997, %v996
      %v1003 = vpack.c.b16 %v999, %v998
      %1008 = vmatprep.subr.bf16.mxu0 %v495
      %1009 = vmatpush1.bf16.msra.mxu0 %v494
      %1010 = vmatprep.subr.bf16.mxu0 %v499
      %1011 = vmatpush1.bf16.msra.mxu0 %v498
      %1012 = vmatprep.subr.bf16.mxu0 %v503
      %1013 = vmatpush1.bf16.msra.mxu0 %v502
      %1014 = vmatprep.subr.bf16.mxu0 %v507
      %1015 = vmatpush1.bf16.msra.mxu0 %v506
      %1016 = vmatprep.subr.bf16.mxu0 %v511
      %1017 = vmatpush1.bf16.msra.mxu0 %v510
      %1018 = vmatprep.subr.bf16.mxu0 %v515
      %1019 = vmatpush1.bf16.msra.mxu0 %v514
      %1020 = vmatprep.subr.bf16.mxu0 %v519
      %1021 = vmatpush1.bf16.msra.mxu0 %v518
      %1022 = vmatprep.subr.bf16.mxu0 %v523
      %1023 = vmatpush1.bf16.msra.mxu0 %v522
      %1024 = vmatprep.subr.bf16.mxu0 0
      %1025 = vmatpush1.bf16.msra.mxu0 0
      %1026 = vmatprep.subr.bf16.mxu0 0
      %1027 = vmatpush1.bf16.msra.mxu0 0
      %1028 = vmatprep.subr.bf16.mxu0 0
      %1029 = vmatpush1.bf16.msra.mxu0 0
      %1030 = vmatprep.subr.bf16.mxu0 0
      %1031 = vmatpush1.bf16.msra.mxu0 0
      %1032 = vmatprep.subr.bf16.mxu0 0
      %1033 = vmatpush1.bf16.msra.mxu0 0
      %1034 = vmatprep.subr.bf16.mxu0 0
      %1035 = vmatpush1.bf16.msra.mxu0 0
      %1036 = vmatprep.subr.bf16.mxu0 0
      %1037 = vmatpush1.bf16.msra.mxu0 0
      %1038 = vmatprep.subr.bf16.mxu0 0
      %1039 = vmatpush1.bf16.msra.mxu0 0
      %1040 = vmatprep.mubr.bf16.mxu0 0
      %1041 = vmatmul.mubr.bf16.gmra.mrb[0].mxu0 %v1000
      %v1042 = vpop.f32.mrb[0].mxu0
      %v1043 = vadd.f32 0.0, %v1042
      %v1044 = vpop.f32.mrb[0].mxu0
      %v1045 = vadd.f32 0.0, %v1044
      %v1046 = vpop.f32.mrb[0].mxu0
      %v1047 = vadd.f32 0.0, %v1046
      %v1048 = vpop.f32.mrb[0].mxu0
      %v1049 = vadd.f32 0.0, %v1048
      %1050 = vmatprep.mubr.bf16.mxu0 0
      %1051 = vmatmul.mubr.bf16.gmra.mrb[0].mxu0 %v1001
      %v1052 = vpop.f32.mrb[0].mxu0
      %v1053 = vadd.f32 0.0, %v1052
      %v1054 = vpop.f32.mrb[0].mxu0
      %v1055 = vadd.f32 0.0, %v1054
      %v1056 = vpop.f32.mrb[0].mxu0
      %v1057 = vadd.f32 0.0, %v1056
      %v1058 = vpop.f32.mrb[0].mxu0
      %v1059 = vadd.f32 0.0, %v1058
      %1060 = vmatprep.mubr.bf16.mxu0 0
      %1061 = vmatmul.mubr.bf16.gmra.mrb[0].mxu0 %v1002
      %v1062 = vpop.f32.mrb[0].mxu0
      %v1063 = vadd.f32 0.0, %v1062
      %v1064 = vpop.f32.mrb[0].mxu0
      %v1065 = vadd.f32 0.0, %v1064
      %v1066 = vpop.f32.mrb[0].mxu0
      %v1067 = vadd.f32 0.0, %v1066
      %v1068 = vpop.f32.mrb[0].mxu0
      %v1069 = vadd.f32 0.0, %v1068
      %1070 = vmatprep.mubr.bf16.mxu0 0
      %1071 = vmatmul.mubr.bf16.gmra.mrb[0].mxu0 %v1003
      %v1072 = vpop.f32.mrb[0].mxu0
      %v1073 = vadd.f32 0.0, %v1072
      %v1074 = vpop.f32.mrb[0].mxu0
      %v1075 = vadd.f32 0.0, %v1074
      %v1076 = vpop.f32.mrb[0].mxu0
      %v1077 = vadd.f32 0.0, %v1076
      %v1078 = vpop.f32.mrb[0].mxu0
      %v1079 = vadd.f32 0.0, %v1078
      %1080 = vdwg.mxu0
      %1081 = vmatprep.subr.bf16.mxu0 %v497
      %1082 = vmatpush1.bf16.msra.mxu0 %v496
      %1083 = vmatprep.subr.bf16.mxu0 %v501
      %1084 = vmatpush1.bf16.msra.mxu0 %v500
      %1085 = vmatprep.subr.bf16.mxu0 %v505
      %1086 = vmatpush1.bf16.msra.mxu0 %v504
      %1087 = vmatprep.subr.bf16.mxu0 %v509
      %1088 = vmatpush1.bf16.msra.mxu0 %v508
      %1089 = vmatprep.subr.bf16.mxu0 %v513
      %1090 = vmatpush1.bf16.msra.mxu0 %v512
      %1091 = vmatprep.subr.bf16.mxu0 %v517
      %1092 = vmatpush1.bf16.msra.mxu0 %v516
      %1093 = vmatprep.subr.bf16.mxu0 %v521
      %1094 = vmatpush1.bf16.msra.mxu0 %v520
      %1095 = vmatprep.subr.bf16.mxu0 %v525
      %1096 = vmatpush1.bf16.msra.mxu0 %v524
      %1097 = vmatprep.subr.bf16.mxu0 0
      %1098 = vmatpush1.bf16.msra.mxu0 0
      %1099 = vmatprep.subr.bf16.mxu0 0
      %1100 = vmatpush1.bf16.msra.mxu0 0
      %1101 = vmatprep.subr.bf16.mxu0 0
      %1102 = vmatpush1.bf16.msra.mxu0 0
      %1103 = vmatprep.subr.bf16.mxu0 0
      %1104 = vmatpush1.bf16.msra.mxu0 0
      %1105 = vmatprep.subr.bf16.mxu0 0
      %1106 = vmatpush1.bf16.msra.mxu0 0
      %1107 = vmatprep.subr.bf16.mxu0 0
      %1108 = vmatpush1.bf16.msra.mxu0 0
      %1109 = vmatprep.subr.bf16.mxu0 0
      %1110 = vmatpush1.bf16.msra.mxu0 0
      %1111 = vmatprep.subr.bf16.mxu0 0
      %1112 = vmatpush1.bf16.msra.mxu0 0
      %1113 = vmatprep.mubr.bf16.mxu0 0
      %1114 = vmatmul.mubr.bf16.gmra.mrb[0].mxu0 %v1000
      %v1115 = vpop.f32.mrb[0].mxu0
      %v1116 = vadd.f32 0.0, %v1115
      %v1117 = vpop.f32.mrb[0].mxu0
      %v1118 = vadd.f32 0.0, %v1117
      %v1119 = vpop.f32.mrb[0].mxu0
      %v1120 = vadd.f32 0.0, %v1119
      %v1121 = vpop.f32.mrb[0].mxu0
      %v1122 = vadd.f32 0.0, %v1121
      %1123 = vmatprep.mubr.bf16.mxu0 0
      %1124 = vmatmul.mubr.bf16.gmra.mrb[0].mxu0 %v1001
      %v1125 = vpop.f32.mrb[0].mxu0
      %v1126 = vadd.f32 0.0, %v1125
      %v1127 = vpop.f32.mrb[0].mxu0
      %v1128 = vadd.f32 0.0, %v1127
      %v1129 = vpop.f32.mrb[0].mxu0
      %v1130 = vadd.f32 0.0, %v1129
      %v1131 = vpop.f32.mrb[0].mxu0
      %v1132 = vadd.f32 0.0, %v1131
      %1133 = vmatprep.mubr.bf16.mxu0 0
      %1134 = vmatmul.mubr.bf16.gmra.mrb[0].mxu0 %v1002
      %v1135 = vpop.f32.mrb[0].mxu0
      %v1136 = vadd.f32 0.0, %v1135
      %v1137 = vpop.f32.mrb[0].mxu0
      %v1138 = vadd.f32 0.0, %v1137
      %v1139 = vpop.f32.mrb[0].mxu0
      %v1140 = vadd.f32 0.0, %v1139
      %v1141 = vpop.f32.mrb[0].mxu0
      %v1142 = vadd.f32 0.0, %v1141
      %1143 = vmatprep.mubr.bf16.mxu0 0
      %1144 = vmatmul.mubr.bf16.gmra.mrb[0].mxu0 %v1003
      %v1145 = vpop.f32.mrb[0].mxu0
      %v1146 = vadd.f32 0.0, %v1145
      %v1147 = vpop.f32.mrb[0].mxu0
      %v1148 = vadd.f32 0.0, %v1147
      %v1149 = vpop.f32.mrb[0].mxu0
      %v1150 = vadd.f32 0.0, %v1149
      %v1151 = vpop.f32.mrb[0].mxu0
      %v1152 = vadd.f32 0.0, %v1151
      %1153 = vdwg.mxu0
      %s1154 = scalar_lea.vmem %s328, 96
      %v1155 = vld [vmem:[%s1154] sm:$0xf]
      %v1156 = vld [vmem:[%s1154 + $0x4] sm:$0xf]
      %v1157 = vld [vmem:[%s1154 + $0x8] sm:$0xf]
      %v1158 = vld [vmem:[%s1154 + $0xc] sm:$0xf]
      %v1159 = vld [vmem:[%s1154 + $0x10] sm:$0xf]
      %v1160 = vld [vmem:[%s1154 + $0x14] sm:$0xf]
      %v1161 = vld [vmem:[%s1154 + $0x18] sm:$0xf]
      %v1162 = vld [vmem:[%s1154 + $0x1c] sm:$0xf]
      %v1171 = vunpack.c.l.b16 %v1155
      %v1172 = vunpack.c.l.b16 %v1156
      %v1173 = vunpack.c.l.b16 %v1157
      %v1174 = vunpack.c.l.b16 %v1158
      %v1175 = vunpack.c.l.b16 %v1159
      %v1176 = vunpack.c.l.b16 %v1160
      %v1177 = vunpack.c.l.b16 %v1161
      %v1178 = vunpack.c.l.b16 %v1162
      %v1179 = vpack.c.b16 %v1172, %v1171
      %v1180 = vpack.c.b16 %v1174, %v1173
      %v1181 = vpack.c.b16 %v1176, %v1175
      %v1182 = vpack.c.b16 %v1178, %v1177
      %1187 = vmatprep.subr.bf16.mxu0 %v495
      %1188 = vmatpush1.bf16.msra.mxu0 %v494
      %1189 = vmatprep.subr.bf16.mxu0 %v499
      %1190 = vmatpush1.bf16.msra.mxu0 %v498
      %1191 = vmatprep.subr.bf16.mxu0 %v503
      %1192 = vmatpush1.bf16.msra.mxu0 %v502
      %1193 = vmatprep.subr.bf16.mxu0 %v507
      %1194 = vmatpush1.bf16.msra.mxu0 %v506
      %1195 = vmatprep.subr.bf16.mxu0 %v511
      %1196 = vmatpush1.bf16.msra.mxu0 %v510
      %1197 = vmatprep.subr.bf16.mxu0 %v515
      %1198 = vmatpush1.bf16.msra.mxu0 %v514
      %1199 = vmatprep.subr.bf16.mxu0 %v519
      %1200 = vmatpush1.bf16.msra.mxu0 %v518
      %1201 = vmatprep.subr.bf16.mxu0 %v523
      %1202 = vmatpush1.bf16.msra.mxu0 %v522
      %1203 = vmatprep.subr.bf16.mxu0 0
      %1204 = vmatpush1.bf16.msra.mxu0 0
      %1205 = vmatprep.subr.bf16.mxu0 0
      %1206 = vmatpush1.bf16.msra.mxu0 0
      %1207 = vmatprep.subr.bf16.mxu0 0
      %1208 = vmatpush1.bf16.msra.mxu0 0
      %1209 = vmatprep.subr.bf16.mxu0 0
      %1210 = vmatpush1.bf16.msra.mxu0 0
      %1211 = vmatprep.subr.bf16.mxu0 0
      %1212 = vmatpush1.bf16.msra.mxu0 0
      %1213 = vmatprep.subr.bf16.mxu0 0
      %1214 = vmatpush1.bf16.msra.mxu0 0
      %1215 = vmatprep.subr.bf16.mxu0 0
      %1216 = vmatpush1.bf16.msra.mxu0 0
      %1217 = vmatprep.subr.bf16.mxu0 0
      %1218 = vmatpush1.bf16.msra.mxu0 0
      %1219 = vmatprep.mubr.bf16.mxu0 0
      %1220 = vmatmul.mubr.bf16.gmra.mrb[0].mxu0 %v1179
      %v1221 = vpop.f32.mrb[0].mxu0
      %v1222 = vadd.f32 0.0, %v1221
      %v1223 = vpop.f32.mrb[0].mxu0
      %v1224 = vadd.f32 0.0, %v1223
      %v1225 = vpop.f32.mrb[0].mxu0
      %v1226 = vadd.f32 0.0, %v1225
      %v1227 = vpop.f32.mrb[0].mxu0
      %v1228 = vadd.f32 0.0, %v1227
      %1229 = vmatprep.mubr.bf16.mxu0 0
      %1230 = vmatmul.mubr.bf16.gmra.mrb[0].mxu0 %v1180
      %v1231 = vpop.f32.mrb[0].mxu0
      %v1232 = vadd.f32 0.0, %v1231
      %v1233 = vpop.f32.mrb[0].mxu0
      %v1234 = vadd.f32 0.0, %v1233
      %v1235 = vpop.f32.mrb[0].mxu0
      %v1236 = vadd.f32 0.0, %v1235
      %v1237 = vpop.f32.mrb[0].mxu0
      %v1238 = vadd.f32 0.0, %v1237
      %1239 = vmatprep.mubr.bf16.mxu0 0
      %1240 = vmatmul.mubr.bf16.gmra.mrb[0].mxu0 %v1181
      %v1241 = vpop.f32.mrb[0].mxu0
      %v1242 = vadd.f32 0.0, %v1241
      %v1243 = vpop.f32.mrb[0].mxu0
      %v1244 = vadd.f32 0.0, %v1243
      %v1245 = vpop.f32.mrb[0].mxu0
      %v1246 = vadd.f32 0.0, %v1245
      %v1247 = vpop.f32.mrb[0].mxu0
      %v1248 = vadd.f32 0.0, %v1247
      %1249 = vmatprep.mubr.bf16.mxu0 0
      %1250 = vmatmul.mubr.bf16.gmra.mrb[0].mxu0 %v1182
      %v1251 = vpop.f32.mrb[0].mxu0
      %v1252 = vadd.f32 0.0, %v1251
      %v1253 = vpop.f32.mrb[0].mxu0
      %v1254 = vadd.f32 0.0, %v1253
      %v1255 = vpop.f32.mrb[0].mxu0
      %v1256 = vadd.f32 0.0, %v1255
      %v1257 = vpop.f32.mrb[0].mxu0
      %v1258 = vadd.f32 0.0, %v1257
      %1259 = vdwg.mxu0
      %1260 = vmatprep.subr.bf16.mxu0 %v497
      %1261 = vmatpush1.bf16.msra.mxu0 %v496
      %1262 = vmatprep.subr.bf16.mxu0 %v501
      %1263 = vmatpush1.bf16.msra.mxu0 %v500
      %1264 = vmatprep.subr.bf16.mxu0 %v505
      %1265 = vmatpush1.bf16.msra.mxu0 %v504
      %1266 = vmatprep.subr.bf16.mxu0 %v509
      %1267 = vmatpush1.bf16.msra.mxu0 %v508
      %1268 = vmatprep.subr.bf16.mxu0 %v513
      %1269 = vmatpush1.bf16.msra.mxu0 %v512
      %1270 = vmatprep.subr.bf16.mxu0 %v517
      %1271 = vmatpush1.bf16.msra.mxu0 %v516
      %1272 = vmatprep.subr.bf16.mxu0 %v521
      %1273 = vmatpush1.bf16.msra.mxu0 %v520
      %1274 = vmatprep.subr.bf16.mxu0 %v525
      %1275 = vmatpush1.bf16.msra.mxu0 %v524
      %1276 = vmatprep.subr.bf16.mxu0 0
      %1277 = vmatpush1.bf16.msra.mxu0 0
      %1278 = vmatprep.subr.bf16.mxu0 0
      %1279 = vmatpush1.bf16.msra.mxu0 0
      %1280 = vmatprep.subr.bf16.mxu0 0
      %1281 = vmatpush1.bf16.msra.mxu0 0
      %1282 = vmatprep.subr.bf16.mxu0 0
      %1283 = vmatpush1.bf16.msra.mxu0 0
      %1284 = vmatprep.subr.bf16.mxu0 0
      %1285 = vmatpush1.bf16.msra.mxu0 0
      %1286 = vmatprep.subr.bf16.mxu0 0
      %1287 = vmatpush1.bf16.msra.mxu0 0
      %1288 = vmatprep.subr.bf16.mxu0 0
      %1289 = vmatpush1.bf16.msra.mxu0 0
      %1290 = vmatprep.subr.bf16.mxu0 0
      %1291 = vmatpush1.bf16.msra.mxu0 0
      %1292 = vmatprep.mubr.bf16.mxu0 0
      %1293 = vmatmul.mubr.bf16.gmra.mrb[0].mxu0 %v1179
      %v1294 = vpop.f32.mrb[0].mxu0
      %v1295 = vadd.f32 0.0, %v1294
      %v1296 = vpop.f32.mrb[0].mxu0
      %v1297 = vadd.f32 0.0, %v1296
      %v1298 = vpop.f32.mrb[0].mxu0
      %v1299 = vadd.f32 0.0, %v1298
      %v1300 = vpop.f32.mrb[0].mxu0
      %v1301 = vadd.f32 0.0, %v1300
      %1302 = vmatprep.mubr.bf16.mxu0 0
      %1303 = vmatmul.mubr.bf16.gmra.mrb[0].mxu0 %v1180
      %v1304 = vpop.f32.mrb[0].mxu0
      %v1305 = vadd.f32 0.0, %v1304
      %v1306 = vpop.f32.mrb[0].mxu0
      %v1307 = vadd.f32 0.0, %v1306
      %v1308 = vpop.f32.mrb[0].mxu0
      %v1309 = vadd.f32 0.0, %v1308
      %v1310 = vpop.f32.mrb[0].mxu0
      %v1311 = vadd.f32 0.0, %v1310
      %1312 = vmatprep.mubr.bf16.mxu0 0
      %1313 = vmatmul.mubr.bf16.gmra.mrb[0].mxu0 %v1181
      %v1314 = vpop.f32.mrb[0].mxu0
      %v1315 = vadd.f32 0.0, %v1314
      %v1316 = vpop.f32.mrb[0].mxu0
      %v1317 = vadd.f32 0.0, %v1316
      %v1318 = vpop.f32.mrb[0].mxu0
      %v1319 = vadd.f32 0.0, %v1318
      %v1320 = vpop.f32.mrb[0].mxu0
      %v1321 = vadd.f32 0.0, %v1320
      %1322 = vmatprep.mubr.bf16.mxu0 0
      %1323 = vmatmul.mubr.bf16.gmra.mrb[0].mxu0 %v1182
      %v1324 = vpop.f32.mrb[0].mxu0
      %v1325 = vadd.f32 0.0, %v1324
      %v1326 = vpop.f32.mrb[0].mxu0
      %v1327 = vadd.f32 0.0, %v1326
      %v1328 = vpop.f32.mrb[0].mxu0
      %v1329 = vadd.f32 0.0, %v1328
      %v1330 = vpop.f32.mrb[0].mxu0
      %v1331 = vadd.f32 0.0, %v1330
      %1332 = vdwg.mxu0
      %v1333 = vmax.f32 %v1043, %v1222
      %v1334 = vmax.f32 %v1045, %v1224
      %v1335 = vmax.f32 %v1116, %v1295
      %v1336 = vmax.f32 %v1118, %v1297
      %v1337 = vmax.f32 %v1047, %v1226
      %v1338 = vmax.f32 %v1049, %v1228
      %v1339 = vmax.f32 %v1120, %v1299
      %v1340 = vmax.f32 %v1122, %v1301
      %v1341 = vmax.f32 %v1053, %v1232
      %v1342 = vmax.f32 %v1055, %v1234
      %v1343 = vmax.f32 %v1126, %v1305
      %v1344 = vmax.f32 %v1128, %v1307
      %v1345 = vmax.f32 %v1057, %v1236
      %v1346 = vmax.f32 %v1059, %v1238
      %v1347 = vmax.f32 %v1130, %v1309
      %v1348 = vmax.f32 %v1132, %v1311
      %v1349 = vmax.f32 %v1063, %v1242
      %v1350 = vmax.f32 %v1065, %v1244
      %v1351 = vmax.f32 %v1136, %v1315
      %v1352 = vmax.f32 %v1138, %v1317
      %v1353 = vmax.f32 %v1067, %v1246
      %v1354 = vmax.f32 %v1069, %v1248
      %v1355 = vmax.f32 %v1140, %v1319
      %v1356 = vmax.f32 %v1142, %v1321
      %v1357 = vmax.f32 %v1073, %v1252
      %v1358 = vmax.f32 %v1075, %v1254
      %v1359 = vmax.f32 %v1146, %v1325
      %v1360 = vmax.f32 %v1148, %v1327
      %v1361 = vmax.f32 %v1077, %v1256
      %v1362 = vmax.f32 %v1079, %v1258
      %v1363 = vmax.f32 %v1150, %v1329
      %v1364 = vmax.f32 %v1152, %v1331
      %v1365 = vmax.f32 %v1333, %v1335
      %v1366 = vmax.f32 %v1334, %v1336
      %v1367 = vmax.f32 %v1337, %v1339
      %v1368 = vmax.f32 %v1338, %v1340
      %v1369 = vmax.f32 %v1341, %v1343
      %v1370 = vmax.f32 %v1342, %v1344
      %v1371 = vmax.f32 %v1345, %v1347
      %v1372 = vmax.f32 %v1346, %v1348
      %v1373 = vmax.f32 %v1349, %v1351
      %v1374 = vmax.f32 %v1350, %v1352
      %v1375 = vmax.f32 %v1353, %v1355
      %v1376 = vmax.f32 %v1354, %v1356
      %v1377 = vmax.f32 %v1357, %v1359
      %v1378 = vmax.f32 %v1358, %v1360
      %v1379 = vmax.f32 %v1361, %v1363
      %v1380 = vmax.f32 %v1362, %v1364
      %v1381 = vadd.f32 %v1365, %v936
      %v1382 = vadd.f32 %v1366, %v940
      %v1383 = vadd.f32 %v1367, %v936
      %v1384 = vadd.f32 %v1368, %v940
      %v1385 = vadd.f32 %v1369, %v936
      %v1386 = vadd.f32 %v1370, %v940
      %v1387 = vadd.f32 %v1371, %v936
      %v1388 = vadd.f32 %v1372, %v940
      %v1389 = vadd.f32 %v1373, %v936
      %v1390 = vadd.f32 %v1374, %v940
      %v1391 = vadd.f32 %v1375, %v936
      %v1392 = vadd.f32 %v1376, %v940
      %v1393 = vadd.f32 %v1377, %v936
      %v1394 = vadd.f32 %v1378, %v940
      %v1395 = vadd.f32 %v1379, %v936
      %v1396 = vadd.f32 %v1380, %v940
      %v1397 = vmax.f32 %v1381, 0.0
      %v1398 = vmax.f32 %v1382, 0.0
      %v1399 = vmax.f32 %v1383, 0.0
      %v1400 = vmax.f32 %v1384, 0.0
      %v1401 = vmax.f32 %v1385, 0.0
      %v1402 = vmax.f32 %v1386, 0.0
      %v1403 = vmax.f32 %v1387, 0.0
      %v1404 = vmax.f32 %v1388, 0.0
      %v1405 = vmax.f32 %v1389, 0.0
      %v1406 = vmax.f32 %v1390, 0.0
      %v1407 = vmax.f32 %v1391, 0.0
      %v1408 = vmax.f32 %v1392, 0.0
      %v1409 = vmax.f32 %v1393, 0.0
      %v1410 = vmax.f32 %v1394, 0.0
      %v1411 = vmax.f32 %v1395, 0.0
      %v1412 = vmax.f32 %v1396, 0.0
      %v1413 = vlaneseq
      %v1414 = vshrl.u32 %v1413, 7
      %v1415 = vadd.s32 %v1414, 8
      %v1416 = vadd.s32 %v1414, 16
      %v1417 = vadd.s32 %v1414, 24
      %v1418 = vadd.s32 %v1414, 32
      %v1419 = vadd.s32 %v1414, 40
      %v1420 = vadd.s32 %v1414, 48
      %v1421 = vadd.s32 %v1414, 56
      %vm1422 = vcmp.lt.s32.totalorder %v1414, 56
      %vm1423 = vcmp.lt.s32.totalorder %v1415, 56
      %vm1424 = vcmp.lt.s32.totalorder %v1416, 56
      %vm1425 = vcmp.lt.s32.totalorder %v1417, 56
      %vm1426 = vcmp.lt.s32.totalorder %v1418, 56
      %vm1427 = vcmp.lt.s32.totalorder %v1419, 56
      %vm1428 = vcmp.lt.s32.totalorder %v1420, 56
      %vm1429 = vcmp.lt.s32.totalorder %v1421, 56
      %v1430 = vsel %vm1422, %v959, 0.0
      %v1431 = vsel %vm1422, %v960, 0.0
      %v1432 = vsel %vm1423, %v961, 0.0
      %v1433 = vsel %vm1423, %v962, 0.0
      %v1434 = vsel %vm1424, %v963, 0.0
      %v1435 = vsel %vm1424, %v964, 0.0
      %v1436 = vsel %vm1425, %v965, 0.0
      %v1437 = vsel %vm1425, %v966, 0.0
      %v1438 = vsel %vm1426, %v967, 0.0
      %v1439 = vsel %vm1426, %v968, 0.0
      %v1440 = vsel %vm1427, %v969, 0.0
      %v1441 = vsel %vm1427, %v970, 0.0
      %v1442 = vsel %vm1428, %v971, 0.0
      %v1443 = vsel %vm1428, %v972, 0.0
      %v1444 = vsel %vm1429, %v973, 0.0
      %v1445 = vsel %vm1429, %v974, 0.0
      %vm1446 = vcmp.ge.s32.totalorder %v1414, 8
      %vm1447 = vcmp.ge.s32.totalorder %v1415, 8
      %vm1448 = vcmp.ge.s32.totalorder %v1416, 8
      %vm1449 = vcmp.ge.s32.totalorder %v1417, 8
      %vm1450 = vcmp.ge.s32.totalorder %v1418, 8
      %vm1451 = vcmp.ge.s32.totalorder %v1419, 8
      %vm1452 = vcmp.ge.s32.totalorder %v1420, 8
      %vm1453 = vcmp.ge.s32.totalorder %v1421, 8
      %v1454 = vsel %vm1446, %v1397, 0.0
      %v1455 = vsel %vm1446, %v1398, 0.0
      %v1456 = vsel %vm1447, %v1399, 0.0
      %v1457 = vsel %vm1447, %v1400, 0.0
      %v1458 = vsel %vm1448, %v1401, 0.0
      %v1459 = vsel %vm1448, %v1402, 0.0
      %v1460 = vsel %vm1449, %v1403, 0.0
      %v1461 = vsel %vm1449, %v1404, 0.0
      %v1462 = vsel %vm1450, %v1405, 0.0
      %v1463 = vsel %vm1450, %v1406, 0.0
      %v1464 = vsel %vm1451, %v1407, 0.0
      %v1465 = vsel %vm1451, %v1408, 0.0
      %v1466 = vsel %vm1452, %v1409, 0.0
      %v1467 = vsel %vm1452, %v1410, 0.0
      %v1468 = vsel %vm1453, %v1411, 0.0
      %v1469 = vsel %vm1453, %v1412, 0.0
      %v1470 = vpack.c.bf16 %v1456, %v1454
      %v1471 = vpack.c.bf16 %v1457, %v1455
      %v1472 = vpack.c.bf16 %v1460, %v1458
      %v1473 = vpack.c.bf16 %v1461, %v1459
      %v1474 = vpack.c.bf16 %v1464, %v1462
      %v1475 = vpack.c.bf16 %v1465, %v1463
      %v1476 = vpack.c.bf16 %v1468, %v1466
      %v1477 = vpack.c.bf16 %v1469, %v1467
      %v1478 = vpack.c.bf16 %v1432, %v1430
      %v1479 = vpack.c.bf16 %v1433, %v1431
      %v1480 = vpack.c.bf16 %v1436, %v1434
      %v1481 = vpack.c.bf16 %v1437, %v1435
      %v1482 = vpack.c.bf16 %v1440, %v1438
      %v1483 = vpack.c.bf16 %v1441, %v1439
      %v1484 = vpack.c.bf16 %v1444, %v1442
      %v1485 = vpack.c.bf16 %v1445, %v1443
      %v1486 = vpack.c.bf16 %v1458, %v1456
      %v1487 = vpack.c.bf16 %v1459, %v1457
      %v1488 = vpack.c.bf16 %v1462, %v1460
      %v1489 = vpack.c.bf16 %v1463, %v1461
      %v1490 = vpack.c.bf16 %v1466, %v1464
      %v1491 = vpack.c.bf16 %v1467, %v1465
      %v1492 = vpack.c.bf16 0.0, %v1468
      %v1493 = vpack.c.bf16 0.0, %v1469
      %v1494 = vpack.c.bf16 %v1434, %v1432
      %v1495 = vpack.c.bf16 %v1435, %v1433
      %v1496 = vpack.c.bf16 %v1438, %v1436
      %v1497 = vpack.c.bf16 %v1439, %v1437
      %v1498 = vpack.c.bf16 %v1442, %v1440
      %v1499 = vpack.c.bf16 %v1443, %v1441
      %v1500 = vpack.c.bf16 0.0, %v1444
      %v1501 = vpack.c.bf16 0.0, %v1445
      %v1502 = vld [vmem:[%s3] sm:$0xff]
      %v1503 = vld [vmem:[%s3 + $0x8] sm:$0xff]
      %v1504 = vld [vmem:[%s3 + $0x10] sm:$0xff]
      %v1505 = vld [vmem:[%s3 + $0x18] sm:$0xff]
      %v1506 = vld [vmem:[%s3 + $0x20] sm:$0xff]
      %v1507 = vld [vmem:[%s3 + $0x28] sm:$0xff]
      %v1508 = vld [vmem:[%s3 + $0x30] sm:$0xff]
      %v1509 = vld [vmem:[%s3 + $0x38] sm:$0xff]
      %v1510 = vld [vmem:[%s3 + $0x40] sm:$0xff]
      %v1511 = vld [vmem:[%s3 + $0x48] sm:$0xff]
      %v1512 = vld [vmem:[%s3 + $0x50] sm:$0xff]
      %v1513 = vld [vmem:[%s3 + $0x58] sm:$0xff]
      %v1514 = vld [vmem:[%s3 + $0x60] sm:$0xff]
      %v1515 = vld [vmem:[%s3 + $0x68] sm:$0xff]
      %v1516 = vld [vmem:[%s3 + $0x70] sm:$0xff]
      %v1517 = vld [vmem:[%s3 + $0x78] sm:$0xff]
      %v1518 = vld [vmem:[%s3 + $0x80] sm:$0xff]
      %v1519 = vld [vmem:[%s3 + $0x88] sm:$0xff]
      %v1520 = vld [vmem:[%s3 + $0x90] sm:$0xff]
      %v1521 = vld [vmem:[%s3 + $0x98] sm:$0xff]
      %v1522 = vld [vmem:[%s3 + $0xa0] sm:$0xff]
      %v1523 = vld [vmem:[%s3 + $0xa8] sm:$0xff]
      %v1524 = vld [vmem:[%s3 + $0xb0] sm:$0xff]
      %v1525 = vld [vmem:[%s3 + $0xb8] sm:$0xff]
      %v1526 = vld [vmem:[%s3 + $0xc0] sm:$0xff]
      %v1527 = vld [vmem:[%s3 + $0xc8] sm:$0xff]
      %v1528 = vld [vmem:[%s3 + $0xd0] sm:$0xff]
      %v1529 = vld [vmem:[%s3 + $0xd8] sm:$0xff]
      %v1530 = vld [vmem:[%s3 + $0xe0] sm:$0xff]
      %v1531 = vld [vmem:[%s3 + $0xe8] sm:$0xff]
      %v1532 = vld [vmem:[%s3 + $0xf0] sm:$0xff]
      %v1533 = vld [vmem:[%s3 + $0xf8] sm:$0xff]
      %v1534 = vld [vmem:[%s3 + $0x100] sm:$0xff]
      %v1535 = vld [vmem:[%s3 + $0x108] sm:$0xff]
      %v1536 = vld [vmem:[%s3 + $0x110] sm:$0xff]
      %v1537 = vld [vmem:[%s3 + $0x118] sm:$0xff]
      %v1538 = vld [vmem:[%s3 + $0x120] sm:$0xff]
      %v1539 = vld [vmem:[%s3 + $0x128] sm:$0xff]
      %v1540 = vld [vmem:[%s3 + $0x130] sm:$0xff]
      %v1541 = vld [vmem:[%s3 + $0x138] sm:$0xff]
      %v1542 = vld [vmem:[%s3 + $0x140] sm:$0xff]
      %v1543 = vld [vmem:[%s3 + $0x148] sm:$0xff]
      %v1544 = vld [vmem:[%s3 + $0x150] sm:$0xff]
      %v1545 = vld [vmem:[%s3 + $0x158] sm:$0xff]
      %v1546 = vld [vmem:[%s3 + $0x160] sm:$0xff]
      %v1547 = vld [vmem:[%s3 + $0x168] sm:$0xff]
      %v1548 = vld [vmem:[%s3 + $0x170] sm:$0xff]
      %v1549 = vld [vmem:[%s3 + $0x178] sm:$0xff]
      %v1550 = vld [vmem:[%s3 + $0x180] sm:$0xff]
      %v1551 = vld [vmem:[%s3 + $0x188] sm:$0xff]
      %v1552 = vld [vmem:[%s3 + $0x190] sm:$0xff]
      %v1553 = vld [vmem:[%s3 + $0x198] sm:$0xff]
      %v1554 = vld [vmem:[%s3 + $0x1a0] sm:$0xff]
      %v1555 = vld [vmem:[%s3 + $0x1a8] sm:$0xff]
      %v1556 = vld [vmem:[%s3 + $0x1b0] sm:$0xff]
      %v1557 = vld [vmem:[%s3 + $0x1b8] sm:$0xff]
      %v1558 = vld [vmem:[%s3 + $0x1c0] sm:$0xff]
      %v1559 = vld [vmem:[%s3 + $0x1c8] sm:$0xff]
      %v1560 = vld [vmem:[%s3 + $0x1d0] sm:$0xff]
      %v1561 = vld [vmem:[%s3 + $0x1d8] sm:$0xff]
      %v1562 = vld [vmem:[%s3 + $0x1e0] sm:$0xff]
      %v1563 = vld [vmem:[%s3 + $0x1e8] sm:$0xff]
      %v1564 = vld [vmem:[%s3 + $0x1f0] sm:$0xff]
      %v1565 = vld [vmem:[%s3 + $0x1f8] sm:$0xff]
      %s1566 = scalar_lea.vmem %s3, 512
      %v1567 = vld [vmem:[%s1566] sm:$0xff]
      %v1568 = vld [vmem:[%s1566 + $0x8] sm:$0xff]
      %v1569 = vld [vmem:[%s1566 + $0x10] sm:$0xff]
      %v1570 = vld [vmem:[%s1566 + $0x18] sm:$0xff]
      %v1571 = vld [vmem:[%s1566 + $0x20] sm:$0xff]
      %v1572 = vld [vmem:[%s1566 + $0x28] sm:$0xff]
      %v1573 = vld [vmem:[%s1566 + $0x30] sm:$0xff]
      %v1574 = vld [vmem:[%s1566 + $0x38] sm:$0xff]
      %v1575 = vld [vmem:[%s1566 + $0x40] sm:$0xff]
      %v1576 = vld [vmem:[%s1566 + $0x48] sm:$0xff]
      %v1577 = vld [vmem:[%s1566 + $0x50] sm:$0xff]
      %v1578 = vld [vmem:[%s1566 + $0x58] sm:$0xff]
      %v1579 = vld [vmem:[%s1566 + $0x60] sm:$0xff]
      %v1580 = vld [vmem:[%s1566 + $0x68] sm:$0xff]
      %v1581 = vld [vmem:[%s1566 + $0x70] sm:$0xff]
      %v1582 = vld [vmem:[%s1566 + $0x78] sm:$0xff]
      %v1583 = vld [vmem:[%s1566 + $0x80] sm:$0xff]
      %v1584 = vld [vmem:[%s1566 + $0x88] sm:$0xff]
      %v1585 = vld [vmem:[%s1566 + $0x90] sm:$0xff]
      %v1586 = vld [vmem:[%s1566 + $0x98] sm:$0xff]
      %v1587 = vld [vmem:[%s1566 + $0xa0] sm:$0xff]
      %v1588 = vld [vmem:[%s1566 + $0xa8] sm:$0xff]
      %v1589 = vld [vmem:[%s1566 + $0xb0] sm:$0xff]
      %v1590 = vld [vmem:[%s1566 + $0xb8] sm:$0xff]
      %v1591 = vld [vmem:[%s1566 + $0xc0] sm:$0xff]
      %v1592 = vld [vmem:[%s1566 + $0xc8] sm:$0xff]
      %v1593 = vld [vmem:[%s1566 + $0xd0] sm:$0xff]
      %v1594 = vld [vmem:[%s1566 + $0xd8] sm:$0xff]
      %v1595 = vld [vmem:[%s1566 + $0xe0] sm:$0xff]
      %v1596 = vld [vmem:[%s1566 + $0xe8] sm:$0xff]
      %v1597 = vld [vmem:[%s1566 + $0xf0] sm:$0xff]
      %v1598 = vld [vmem:[%s1566 + $0xf8] sm:$0xff]
      %v1599 = vld [vmem:[%s1566 + $0x100] sm:$0xff]
      %v1600 = vld [vmem:[%s1566 + $0x108] sm:$0xff]
      %v1601 = vld [vmem:[%s1566 + $0x110] sm:$0xff]
      %v1602 = vld [vmem:[%s1566 + $0x118] sm:$0xff]
      %v1603 = vld [vmem:[%s1566 + $0x120] sm:$0xff]
      %v1604 = vld [vmem:[%s1566 + $0x128] sm:$0xff]
      %v1605 = vld [vmem:[%s1566 + $0x130] sm:$0xff]
      %v1606 = vld [vmem:[%s1566 + $0x138] sm:$0xff]
      %v1607 = vld [vmem:[%s1566 + $0x140] sm:$0xff]
      %v1608 = vld [vmem:[%s1566 + $0x148] sm:$0xff]
      %v1609 = vld [vmem:[%s1566 + $0x150] sm:$0xff]
      %v1610 = vld [vmem:[%s1566 + $0x158] sm:$0xff]
      %v1611 = vld [vmem:[%s1566 + $0x160] sm:$0xff]
      %v1612 = vld [vmem:[%s1566 + $0x168] sm:$0xff]
      %v1613 = vld [vmem:[%s1566 + $0x170] sm:$0xff]
      %v1614 = vld [vmem:[%s1566 + $0x178] sm:$0xff]
      %v1615 = vld [vmem:[%s1566 + $0x180] sm:$0xff]
      %v1616 = vld [vmem:[%s1566 + $0x188] sm:$0xff]
      %v1617 = vld [vmem:[%s1566 + $0x190] sm:$0xff]
      %v1618 = vld [vmem:[%s1566 + $0x198] sm:$0xff]
      %v1619 = vld [vmem:[%s1566 + $0x1a0] sm:$0xff]
      %v1620 = vld [vmem:[%s1566 + $0x1a8] sm:$0xff]
      %v1621 = vld [vmem:[%s1566 + $0x1b0] sm:$0xff]
      %v1622 = vld [vmem:[%s1566 + $0x1b8] sm:$0xff]
      %v1623 = vld [vmem:[%s1566 + $0x1c0] sm:$0xff]
      %v1624 = vld [vmem:[%s1566 + $0x1c8] sm:$0xff]
      %v1625 = vld [vmem:[%s1566 + $0x1d0] sm:$0xff]
      %v1626 = vld [vmem:[%s1566 + $0x1d8] sm:$0xff]
      %v1627 = vld [vmem:[%s1566 + $0x1e0] sm:$0xff]
      %v1628 = vld [vmem:[%s1566 + $0x1e8] sm:$0xff]
      %v1629 = vld [vmem:[%s1566 + $0x1f0] sm:$0xff]
      %v1630 = vld [vmem:[%s1566 + $0x1f8] sm:$0xff]
      %v1695 = vunpack.c.l.b16 %v1567
      %v1696 = vunpack.c.h.b16 %v1567
      %v1697 = vunpack.c.l.b16 %v1568
      %v1698 = vunpack.c.h.b16 %v1568
      %v1699 = vunpack.c.l.b16 %v1569
      %v1700 = vunpack.c.h.b16 %v1569
      %v1701 = vunpack.c.l.b16 %v1570
      %v1702 = vunpack.c.h.b16 %v1570
      %v1703 = vunpack.c.l.b16 %v1571
      %v1704 = vunpack.c.h.b16 %v1571
      %v1705 = vunpack.c.l.b16 %v1572
      %v1706 = vunpack.c.h.b16 %v1572
      %v1707 = vunpack.c.l.b16 %v1573
      %v1708 = vunpack.c.h.b16 %v1573
      %v1709 = vunpack.c.l.b16 %v1574
      %v1710 = vunpack.c.h.b16 %v1574
      %v1711 = vunpack.c.l.b16 %v1575
      %v1712 = vunpack.c.h.b16 %v1575
      %v1713 = vunpack.c.l.b16 %v1576
      %v1714 = vunpack.c.h.b16 %v1576
      %v1715 = vunpack.c.l.b16 %v1577
      %v1716 = vunpack.c.h.b16 %v1577
      %v1717 = vunpack.c.l.b16 %v1578
      %v1718 = vunpack.c.h.b16 %v1578
      %v1719 = vunpack.c.l.b16 %v1579
      %v1720 = vunpack.c.h.b16 %v1579
      %v1721 = vunpack.c.l.b16 %v1580
      %v1722 = vunpack.c.h.b16 %v1580
      %v1723 = vunpack.c.l.b16 %v1581
      %v1724 = vunpack.c.h.b16 %v1581
      %v1725 = vunpack.c.l.b16 %v1582
      %v1726 = vunpack.c.h.b16 %v1582
      %v1727 = vunpack.c.l.b16 %v1583
      %v1728 = vunpack.c.h.b16 %v1583
      %v1729 = vunpack.c.l.b16 %v1584
      %v1730 = vunpack.c.h.b16 %v1584
      %v1731 = vunpack.c.l.b16 %v1585
      %v1732 = vunpack.c.h.b16 %v1585
      %v1733 = vunpack.c.l.b16 %v1586
      %v1734 = vunpack.c.h.b16 %v1586
      %v1735 = vunpack.c.l.b16 %v1587
      %v1736 = vunpack.c.h.b16 %v1587
      %v1737 = vunpack.c.l.b16 %v1588
      %v1738 = vunpack.c.h.b16 %v1588
      %v1739 = vunpack.c.l.b16 %v1589
      %v1740 = vunpack.c.h.b16 %v1589
      %v1741 = vunpack.c.l.b16 %v1590
      %v1742 = vunpack.c.h.b16 %v1590
      %v1743 = vunpack.c.l.b16 %v1591
      %v1744 = vunpack.c.h.b16 %v1591
      %v1745 = vunpack.c.l.b16 %v1592
      %v1746 = vunpack.c.h.b16 %v1592
      %v1747 = vunpack.c.l.b16 %v1593
      %v1748 = vunpack.c.h.b16 %v1593
      %v1749 = vunpack.c.l.b16 %v1594
      %v1750 = vunpack.c.h.b16 %v1594
      %v1751 = vunpack.c.l.b16 %v1595
      %v1752 = vunpack.c.h.b16 %v1595
      %v1753 = vunpack.c.l.b16 %v1596
      %v1754 = vunpack.c.h.b16 %v1596
      %v1755 = vunpack.c.l.b16 %v1597
      %v1756 = vunpack.c.h.b16 %v1597
      %v1757 = vunpack.c.l.b16 %v1598
      %v1758 = vunpack.c.h.b16 %v1598
      %v1759 = vunpack.c.l.b16 %v1599
      %v1760 = vunpack.c.h.b16 %v1599
      %v1761 = vunpack.c.l.b16 %v1600
      %v1762 = vunpack.c.h.b16 %v1600
      %v1763 = vunpack.c.l.b16 %v1601
      %v1764 = vunpack.c.h.b16 %v1601
      %v1765 = vunpack.c.l.b16 %v1602
      %v1766 = vunpack.c.h.b16 %v1602
      %v1767 = vunpack.c.l.b16 %v1603
      %v1768 = vunpack.c.h.b16 %v1603
      %v1769 = vunpack.c.l.b16 %v1604
      %v1770 = vunpack.c.h.b16 %v1604
      %v1771 = vunpack.c.l.b16 %v1605
      %v1772 = vunpack.c.h.b16 %v1605
      %v1773 = vunpack.c.l.b16 %v1606
      %v1774 = vunpack.c.h.b16 %v1606
      %v1775 = vunpack.c.l.b16 %v1607
      %v1776 = vunpack.c.h.b16 %v1607
      %v1777 = vunpack.c.l.b16 %v1608
      %v1778 = vunpack.c.h.b16 %v1608
      %v1779 = vunpack.c.l.b16 %v1609
      %v1780 = vunpack.c.h.b16 %v1609
      %v1781 = vunpack.c.l.b16 %v1610
      %v1782 = vunpack.c.h.b16 %v1610
      %v1783 = vunpack.c.l.b16 %v1611
      %v1784 = vunpack.c.h.b16 %v1611
      %v1785 = vunpack.c.l.b16 %v1612
      %v1786 = vunpack.c.h.b16 %v1612
      %v1787 = vunpack.c.l.b16 %v1613
      %v1788 = vunpack.c.h.b16 %v1613
      %v1789 = vunpack.c.l.b16 %v1614
      %v1790 = vunpack.c.h.b16 %v1614
      %v1791 = vunpack.c.l.b16 %v1615
      %v1792 = vunpack.c.h.b16 %v1615
      %v1793 = vunpack.c.l.b16 %v1616
      %v1794 = vunpack.c.h.b16 %v1616
      %v1795 = vunpack.c.l.b16 %v1617
      %v1796 = vunpack.c.h.b16 %v1617
      %v1797 = vunpack.c.l.b16 %v1618
      %v1798 = vunpack.c.h.b16 %v1618
      %v1799 = vunpack.c.l.b16 %v1619
      %v1800 = vunpack.c.h.b16 %v1619
      %v1801 = vunpack.c.l.b16 %v1620
      %v1802 = vunpack.c.h.b16 %v1620
      %v1803 = vunpack.c.l.b16 %v1621
      %v1804 = vunpack.c.h.b16 %v1621
      %v1805 = vunpack.c.l.b16 %v1622
      %v1806 = vunpack.c.h.b16 %v1622
      %v1807 = vunpack.c.l.b16 %v1623
      %v1808 = vunpack.c.h.b16 %v1623
      %v1809 = vunpack.c.l.b16 %v1624
      %v1810 = vunpack.c.h.b16 %v1624
      %v1811 = vunpack.c.l.b16 %v1625
      %v1812 = vunpack.c.h.b16 %v1625
      %v1813 = vunpack.c.l.b16 %v1626
      %v1814 = vunpack.c.h.b16 %v1626
      %v1815 = vunpack.c.l.b16 %v1627
      %v1816 = vunpack.c.h.b16 %v1627
      %v1817 = vunpack.c.l.b16 %v1628
      %v1818 = vunpack.c.h.b16 %v1628
      %v1819 = vunpack.c.l.b16 %v1629
      %v1820 = vunpack.c.h.b16 %v1629
      %v1821 = vunpack.c.l.b16 %v1630
      %v1822 = vunpack.c.h.b16 %v1630
      %v1823 = vpack.c.b16 %v1699, %v1695
      %v1824 = vpack.c.b16 %v1700, %v1696
      %v1825 = vpack.c.b16 %v1701, %v1697
      %v1826 = vpack.c.b16 %v1702, %v1698
      %v1827 = vpack.c.b16 %v1707, %v1703
      %v1828 = vpack.c.b16 %v1708, %v1704
      %v1829 = vpack.c.b16 %v1709, %v1705
      %v1830 = vpack.c.b16 %v1710, %v1706
      %v1831 = vpack.c.b16 %v1715, %v1711
      %v1832 = vpack.c.b16 %v1716, %v1712
      %v1833 = vpack.c.b16 %v1717, %v1713
      %v1834 = vpack.c.b16 %v1718, %v1714
      %v1835 = vpack.c.b16 %v1723, %v1719
      %v1836 = vpack.c.b16 %v1724, %v1720
      %v1837 = vpack.c.b16 %v1725, %v1721
      %v1838 = vpack.c.b16 %v1726, %v1722
      %v1839 = vpack.c.b16 %v1731, %v1727
      %v1840 = vpack.c.b16 %v1732, %v1728
      %v1841 = vpack.c.b16 %v1733, %v1729
      %v1842 = vpack.c.b16 %v1734, %v1730
      %v1843 = vpack.c.b16 %v1739, %v1735
      %v1844 = vpack.c.b16 %v1740, %v1736
      %v1845 = vpack.c.b16 %v1741, %v1737
      %v1846 = vpack.c.b16 %v1742, %v1738
      %v1847 = vpack.c.b16 %v1747, %v1743
      %v1848 = vpack.c.b16 %v1748, %v1744
      %v1849 = vpack.c.b16 %v1749, %v1745
      %v1850 = vpack.c.b16 %v1750, %v1746
      %v1851 = vpack.c.b16 %v1755, %v1751
      %v1852 = vpack.c.b16 %v1756, %v1752
      %v1853 = vpack.c.b16 %v1757, %v1753
      %v1854 = vpack.c.b16 %v1758, %v1754
      %v1855 = vpack.c.b16 %v1763, %v1759
      %v1856 = vpack.c.b16 %v1764, %v1760
      %v1857 = vpack.c.b16 %v1765, %v1761
      %v1858 = vpack.c.b16 %v1766, %v1762
      %v1859 = vpack.c.b16 %v1771, %v1767
      %v1860 = vpack.c.b16 %v1772, %v1768
      %v1861 = vpack.c.b16 %v1773, %v1769
      %v1862 = vpack.c.b16 %v1774, %v1770
      %v1863 = vpack.c.b16 %v1779, %v1775
      %v1864 = vpack.c.b16 %v1780, %v1776
      %v1865 = vpack.c.b16 %v1781, %v1777
      %v1866 = vpack.c.b16 %v1782, %v1778
      %v1867 = vpack.c.b16 %v1787, %v1783
      %v1868 = vpack.c.b16 %v1788, %v1784
      %v1869 = vpack.c.b16 %v1789, %v1785
      %v1870 = vpack.c.b16 %v1790, %v1786
      %v1871 = vpack.c.b16 %v1795, %v1791
      %v1872 = vpack.c.b16 %v1796, %v1792
      %v1873 = vpack.c.b16 %v1797, %v1793
      %v1874 = vpack.c.b16 %v1798, %v1794
      %v1875 = vpack.c.b16 %v1803, %v1799
      %v1876 = vpack.c.b16 %v1804, %v1800
      %v1877 = vpack.c.b16 %v1805, %v1801
      %v1878 = vpack.c.b16 %v1806, %v1802
      %v1879 = vpack.c.b16 %v1811, %v1807
      %v1880 = vpack.c.b16 %v1812, %v1808
      %v1881 = vpack.c.b16 %v1813, %v1809
      %v1882 = vpack.c.b16 %v1814, %v1810
      %v1883 = vpack.c.b16 %v1819, %v1815
      %v1884 = vpack.c.b16 %v1820, %v1816
      %v1885 = vpack.c.b16 %v1821, %v1817
      %v1886 = vpack.c.b16 %v1822, %v1818
      %1951 = vmatprep.subr.bf16.mxu0 %v1824
      %1952 = vmatpush1.bf16.msra.mxu0 %v1823
      %1953 = vmatprep.subr.bf16.mxu0 %v1828
      %1954 = vmatpush1.bf16.msra.mxu0 %v1827
      %1955 = vmatprep.subr.bf16.mxu0 %v1832
      %1956 = vmatpush1.bf16.msra.mxu0 %v1831
      %1957 = vmatprep.subr.bf16.mxu0 %v1836
      %1958 = vmatpush1.bf16.msra.mxu0 %v1835
      %1959 = vmatprep.subr.bf16.mxu0 %v1840
      %1960 = vmatpush1.bf16.msra.mxu0 %v1839
      %1961 = vmatprep.subr.bf16.mxu0 %v1844
      %1962 = vmatpush1.bf16.msra.mxu0 %v1843
      %1963 = vmatprep.subr.bf16.mxu0 %v1848
      %1964 = vmatpush1.bf16.msra.mxu0 %v1847
      %1965 = vmatprep.subr.bf16.mxu0 %v1852
      %1966 = vmatpush1.bf16.msra.mxu0 %v1851
      %1967 = vmatprep.subr.bf16.mxu0 %v1856
      %1968 = vmatpush1.bf16.msra.mxu0 %v1855
      %1969 = vmatprep.subr.bf16.mxu0 %v1860
      %1970 = vmatpush1.bf16.msra.mxu0 %v1859
      %1971 = vmatprep.subr.bf16.mxu0 %v1864
      %1972 = vmatpush1.bf16.msra.mxu0 %v1863
      %1973 = vmatprep.subr.bf16.mxu0 %v1868
      %1974 = vmatpush1.bf16.msra.mxu0 %v1867
      %1975 = vmatprep.subr.bf16.mxu0 %v1872
      %1976 = vmatpush1.bf16.msra.mxu0 %v1871
      %1977 = vmatprep.subr.bf16.mxu0 %v1876
      %1978 = vmatpush1.bf16.msra.mxu0 %v1875
      %1979 = vmatprep.subr.bf16.mxu0 %v1880
      %1980 = vmatpush1.bf16.msra.mxu0 %v1879
      %1981 = vmatprep.subr.bf16.mxu0 %v1884
      %1982 = vmatpush1.bf16.msra.mxu0 %v1883
      %1983 = vmatprep.mubr.bf16.mxu0 %v1479
      %1984 = vmatmul.mubr.bf16.gmra.mrb[0].mxu0 %v1478
      %v1985 = vpop.f32.mrb[0].mxu0
      %v1986 = vadd.f32 0.0, %v1985
      %v1987 = vpop.f32.mrb[0].mxu0
      %v1988 = vadd.f32 0.0, %v1987
      %v1989 = vpop.f32.mrb[0].mxu0
      %v1990 = vadd.f32 0.0, %v1989
      %v1991 = vpop.f32.mrb[0].mxu0
      %v1992 = vadd.f32 0.0, %v1991
      %1993 = vmatprep.mubr.bf16.mxu0 %v1481
      %1994 = vmatmul.mubr.bf16.gmra.mrb[0].mxu0 %v1480
      %v1995 = vpop.f32.mrb[0].mxu0
      %v1996 = vadd.f32 0.0, %v1995
      %v1997 = vpop.f32.mrb[0].mxu0
      %v1998 = vadd.f32 0.0, %v1997
      %v1999 = vpop.f32.mrb[0].mxu0
      %v2000 = vadd.f32 0.0, %v1999
      %v2001 = vpop.f32.mrb[0].mxu0
      %v2002 = vadd.f32 0.0, %v2001
      %2003 = vmatprep.mubr.bf16.mxu0 %v1483
      %2004 = vmatmul.mubr.bf16.gmra.mrb[0].mxu0 %v1482
      %v2005 = vpop.f32.mrb[0].mxu0
      %v2006 = vadd.f32 0.0, %v2005
      %v2007 = vpop.f32.mrb[0].mxu0
      %v2008 = vadd.f32 0.0, %v2007
      %v2009 = vpop.f32.mrb[0].mxu0
      %v2010 = vadd.f32 0.0, %v2009
      %v2011 = vpop.f32.mrb[0].mxu0
      %v2012 = vadd.f32 0.0, %v2011
      %2013 = vmatprep.mubr.bf16.mxu0 %v1485
      %2014 = vmatmul.mubr.bf16.gmra.mrb[0].mxu0 %v1484
      %v2015 = vpop.f32.mrb[0].mxu0
      %v2016 = vadd.f32 0.0, %v2015
      %v2017 = vpop.f32.mrb[0].mxu0
      %v2018 = vadd.f32 0.0, %v2017
      %v2019 = vpop.f32.mrb[0].mxu0
      %v2020 = vpop.f32.mrb[0].mxu0
      %2021 = vdwg.mxu0
      %2022 = vmatprep.subr.bf16.mxu0 %v1826
      %2023 = vmatpush1.bf16.msra.mxu0 %v1825
      %2024 = vmatprep.subr.bf16.mxu0 %v1830
      %2025 = vmatpush1.bf16.msra.mxu0 %v1829
      %2026 = vmatprep.subr.bf16.mxu0 %v1834
      %2027 = vmatpush1.bf16.msra.mxu0 %v1833
      %2028 = vmatprep.subr.bf16.mxu0 %v1838
      %2029 = vmatpush1.bf16.msra.mxu0 %v1837
      %2030 = vmatprep.subr.bf16.mxu0 %v1842
      %2031 = vmatpush1.bf16.msra.mxu0 %v1841
      %2032 = vmatprep.subr.bf16.mxu0 %v1846
      %2033 = vmatpush1.bf16.msra.mxu0 %v1845
      %2034 = vmatprep.subr.bf16.mxu0 %v1850
      %2035 = vmatpush1.bf16.msra.mxu0 %v1849
      %2036 = vmatprep.subr.bf16.mxu0 %v1854
      %2037 = vmatpush1.bf16.msra.mxu0 %v1853
      %2038 = vmatprep.subr.bf16.mxu0 %v1858
      %2039 = vmatpush1.bf16.msra.mxu0 %v1857
      %2040 = vmatprep.subr.bf16.mxu0 %v1862
      %2041 = vmatpush1.bf16.msra.mxu0 %v1861
      %2042 = vmatprep.subr.bf16.mxu0 %v1866
      %2043 = vmatpush1.bf16.msra.mxu0 %v1865
      %2044 = vmatprep.subr.bf16.mxu0 %v1870
      %2045 = vmatpush1.bf16.msra.mxu0 %v1869
      %2046 = vmatprep.subr.bf16.mxu0 %v1874
      %2047 = vmatpush1.bf16.msra.mxu0 %v1873
      %2048 = vmatprep.subr.bf16.mxu0 %v1878
      %2049 = vmatpush1.bf16.msra.mxu0 %v1877
      %2050 = vmatprep.subr.bf16.mxu0 %v1882
      %2051 = vmatpush1.bf16.msra.mxu0 %v1881
      %2052 = vmatprep.subr.bf16.mxu0 %v1886
      %2053 = vmatpush1.bf16.msra.mxu0 %v1885
      %2054 = vmatprep.mubr.bf16.mxu0 %v1479
      %2055 = vmatmul.mubr.bf16.gmra.mrb[0].mxu0 %v1478
      %v2056 = vpop.f32.mrb[0].mxu0
      %v2057 = vadd.f32 0.0, %v2056
      %v2058 = vpop.f32.mrb[0].mxu0
      %v2059 = vadd.f32 0.0, %v2058
      %v2060 = vpop.f32.mrb[0].mxu0
      %v2061 = vadd.f32 0.0, %v2060
      %v2062 = vpop.f32.mrb[0].mxu0
      %v2063 = vadd.f32 0.0, %v2062
      %2064 = vmatprep.mubr.bf16.mxu0 %v1481
      %2065 = vmatmul.mubr.bf16.gmra.mrb[0].mxu0 %v1480
      %v2066 = vpop.f32.mrb[0].mxu0
      %v2067 = vadd.f32 0.0, %v2066
      %v2068 = vpop.f32.mrb[0].mxu0
      %v2069 = vadd.f32 0.0, %v2068
      %v2070 = vpop.f32.mrb[0].mxu0
      %v2071 = vadd.f32 0.0, %v2070
      %v2072 = vpop.f32.mrb[0].mxu0
      %v2073 = vadd.f32 0.0, %v2072
      %2074 = vmatprep.mubr.bf16.mxu0 %v1483
      %2075 = vmatmul.mubr.bf16.gmra.mrb[0].mxu0 %v1482
      %v2076 = vpop.f32.mrb[0].mxu0
      %v2077 = vadd.f32 0.0, %v2076
      %v2078 = vpop.f32.mrb[0].mxu0
      %v2079 = vadd.f32 0.0, %v2078
      %v2080 = vpop.f32.mrb[0].mxu0
      %v2081 = vadd.f32 0.0, %v2080
      %v2082 = vpop.f32.mrb[0].mxu0
      %v2083 = vadd.f32 0.0, %v2082
      %2084 = vmatprep.mubr.bf16.mxu0 %v1485
      %2085 = vmatmul.mubr.bf16.gmra.mrb[0].mxu0 %v1484
      %v2086 = vpop.f32.mrb[0].mxu0
      %v2087 = vadd.f32 0.0, %v2086
      %v2088 = vpop.f32.mrb[0].mxu0
      %v2089 = vadd.f32 0.0, %v2088
      %v2090 = vpop.f32.mrb[0].mxu0
      %v2091 = vpop.f32.mrb[0].mxu0
      %2092 = vdwg.mxu0
      %v2157 = vunpack.c.l.b16 %v1502
      %v2158 = vunpack.c.h.b16 %v1502
      %v2159 = vunpack.c.l.b16 %v1503
      %v2160 = vunpack.c.h.b16 %v1503
      %v2161 = vunpack.c.l.b16 %v1504
      %v2162 = vunpack.c.h.b16 %v1504
      %v2163 = vunpack.c.l.b16 %v1505
      %v2164 = vunpack.c.h.b16 %v1505
      %v2165 = vunpack.c.l.b16 %v1506
      %v2166 = vunpack.c.h.b16 %v1506
      %v2167 = vunpack.c.l.b16 %v1507
      %v2168 = vunpack.c.h.b16 %v1507
      %v2169 = vunpack.c.l.b16 %v1508
      %v2170 = vunpack.c.h.b16 %v1508
      %v2171 = vunpack.c.l.b16 %v1509
      %v2172 = vunpack.c.h.b16 %v1509
      %v2173 = vunpack.c.l.b16 %v1510
      %v2174 = vunpack.c.h.b16 %v1510
      %v2175 = vunpack.c.l.b16 %v1511
      %v2176 = vunpack.c.h.b16 %v1511
      %v2177 = vunpack.c.l.b16 %v1512
      %v2178 = vunpack.c.h.b16 %v1512
      %v2179 = vunpack.c.l.b16 %v1513
      %v2180 = vunpack.c.h.b16 %v1513
      %v2181 = vunpack.c.l.b16 %v1514
      %v2182 = vunpack.c.h.b16 %v1514
      %v2183 = vunpack.c.l.b16 %v1515
      %v2184 = vunpack.c.h.b16 %v1515
      %v2185 = vunpack.c.l.b16 %v1516
      %v2186 = vunpack.c.h.b16 %v1516
      %v2187 = vunpack.c.l.b16 %v1517
      %v2188 = vunpack.c.h.b16 %v1517
      %v2189 = vunpack.c.l.b16 %v1518
      %v2190 = vunpack.c.h.b16 %v1518
      %v2191 = vunpack.c.l.b16 %v1519
      %v2192 = vunpack.c.h.b16 %v1519
      %v2193 = vunpack.c.l.b16 %v1520
      %v2194 = vunpack.c.h.b16 %v1520
      %v2195 = vunpack.c.l.b16 %v1521
      %v2196 = vunpack.c.h.b16 %v1521
      %v2197 = vunpack.c.l.b16 %v1522
      %v2198 = vunpack.c.h.b16 %v1522
      %v2199 = vunpack.c.l.b16 %v1523
      %v2200 = vunpack.c.h.b16 %v1523
      %v2201 = vunpack.c.l.b16 %v1524
      %v2202 = vunpack.c.h.b16 %v1524
      %v2203 = vunpack.c.l.b16 %v1525
      %v2204 = vunpack.c.h.b16 %v1525
      %v2205 = vunpack.c.l.b16 %v1526
      %v2206 = vunpack.c.h.b16 %v1526
      %v2207 = vunpack.c.l.b16 %v1527
      %v2208 = vunpack.c.h.b16 %v1527
      %v2209 = vunpack.c.l.b16 %v1528
      %v2210 = vunpack.c.h.b16 %v1528
      %v2211 = vunpack.c.l.b16 %v1529
      %v2212 = vunpack.c.h.b16 %v1529
      %v2213 = vunpack.c.l.b16 %v1530
      %v2214 = vunpack.c.h.b16 %v1530
      %v2215 = vunpack.c.l.b16 %v1531
      %v2216 = vunpack.c.h.b16 %v1531
      %v2217 = vunpack.c.l.b16 %v1532
      %v2218 = vunpack.c.h.b16 %v1532
      %v2219 = vunpack.c.l.b16 %v1533
      %v2220 = vunpack.c.h.b16 %v1533
      %v2221 = vunpack.c.l.b16 %v1534
      %v2222 = vunpack.c.h.b16 %v1534
      %v2223 = vunpack.c.l.b16 %v1535
      %v2224 = vunpack.c.h.b16 %v1535
      %v2225 = vunpack.c.l.b16 %v1536
      %v2226 = vunpack.c.h.b16 %v1536
      %v2227 = vunpack.c.l.b16 %v1537
      %v2228 = vunpack.c.h.b16 %v1537
      %v2229 = vunpack.c.l.b16 %v1538
      %v2230 = vunpack.c.h.b16 %v1538
      %v2231 = vunpack.c.l.b16 %v1539
      %v2232 = vunpack.c.h.b16 %v1539
      %v2233 = vunpack.c.l.b16 %v1540
      %v2234 = vunpack.c.h.b16 %v1540
      %v2235 = vunpack.c.l.b16 %v1541
      %v2236 = vunpack.c.h.b16 %v1541
      %v2237 = vunpack.c.l.b16 %v1542
      %v2238 = vunpack.c.h.b16 %v1542
      %v2239 = vunpack.c.l.b16 %v1543
      %v2240 = vunpack.c.h.b16 %v1543
      %v2241 = vunpack.c.l.b16 %v1544
      %v2242 = vunpack.c.h.b16 %v1544
      %v2243 = vunpack.c.l.b16 %v1545
      %v2244 = vunpack.c.h.b16 %v1545
      %v2245 = vunpack.c.l.b16 %v1546
      %v2246 = vunpack.c.h.b16 %v1546
      %v2247 = vunpack.c.l.b16 %v1547
      %v2248 = vunpack.c.h.b16 %v1547
      %v2249 = vunpack.c.l.b16 %v1548
      %v2250 = vunpack.c.h.b16 %v1548
      %v2251 = vunpack.c.l.b16 %v1549
      %v2252 = vunpack.c.h.b16 %v1549
      %v2253 = vunpack.c.l.b16 %v1550
      %v2254 = vunpack.c.h.b16 %v1550
      %v2255 = vunpack.c.l.b16 %v1551
      %v2256 = vunpack.c.h.b16 %v1551
      %v2257 = vunpack.c.l.b16 %v1552
      %v2258 = vunpack.c.h.b16 %v1552
      %v2259 = vunpack.c.l.b16 %v1553
      %v2260 = vunpack.c.h.b16 %v1553
      %v2261 = vunpack.c.l.b16 %v1554
      %v2262 = vunpack.c.h.b16 %v1554
      %v2263 = vunpack.c.l.b16 %v1555
      %v2264 = vunpack.c.h.b16 %v1555
      %v2265 = vunpack.c.l.b16 %v1556
      %v2266 = vunpack.c.h.b16 %v1556
      %v2267 = vunpack.c.l.b16 %v1557
      %v2268 = vunpack.c.h.b16 %v1557
      %v2269 = vunpack.c.l.b16 %v1558
      %v2270 = vunpack.c.h.b16 %v1558
      %v2271 = vunpack.c.l.b16 %v1559
      %v2272 = vunpack.c.h.b16 %v1559
      %v2273 = vunpack.c.l.b16 %v1560
      %v2274 = vunpack.c.h.b16 %v1560
      %v2275 = vunpack.c.l.b16 %v1561
      %v2276 = vunpack.c.h.b16 %v1561
      %v2277 = vunpack.c.l.b16 %v1562
      %v2278 = vunpack.c.h.b16 %v1562
      %v2279 = vunpack.c.l.b16 %v1563
      %v2280 = vunpack.c.h.b16 %v1563
      %v2281 = vunpack.c.l.b16 %v1564
      %v2282 = vunpack.c.h.b16 %v1564
      %v2283 = vunpack.c.l.b16 %v1565
      %v2284 = vunpack.c.h.b16 %v1565
      %v2285 = vpack.c.b16 %v2161, %v2157
      %v2286 = vpack.c.b16 %v2162, %v2158
      %v2287 = vpack.c.b16 %v2163, %v2159
      %v2288 = vpack.c.b16 %v2164, %v2160
      %v2289 = vpack.c.b16 %v2169, %v2165
      %v2290 = vpack.c.b16 %v2170, %v2166
      %v2291 = vpack.c.b16 %v2171, %v2167
      %v2292 = vpack.c.b16 %v2172, %v2168
      %v2293 = vpack.c.b16 %v2177, %v2173
      %v2294 = vpack.c.b16 %v2178, %v2174
      %v2295 = vpack.c.b16 %v2179, %v2175
      %v2296 = vpack.c.b16 %v2180, %v2176
      %v2297 = vpack.c.b16 %v2185, %v2181
      %v2298 = vpack.c.b16 %v2186, %v2182
      %v2299 = vpack.c.b16 %v2187, %v2183
      %v2300 = vpack.c.b16 %v2188, %v2184
      %v2301 = vpack.c.b16 %v2193, %v2189
      %v2302 = vpack.c.b16 %v2194, %v2190
      %v2303 = vpack.c.b16 %v2195, %v2191
      %v2304 = vpack.c.b16 %v2196, %v2192
      %v2305 = vpack.c.b16 %v2201, %v2197
      %v2306 = vpack.c.b16 %v2202, %v2198
      %v2307 = vpack.c.b16 %v2203, %v2199
      %v2308 = vpack.c.b16 %v2204, %v2200
      %v2309 = vpack.c.b16 %v2209, %v2205
      %v2310 = vpack.c.b16 %v2210, %v2206
      %v2311 = vpack.c.b16 %v2211, %v2207
      %v2312 = vpack.c.b16 %v2212, %v2208
      %v2313 = vpack.c.b16 %v2217, %v2213
      %v2314 = vpack.c.b16 %v2218, %v2214
      %v2315 = vpack.c.b16 %v2219, %v2215
      %v2316 = vpack.c.b16 %v2220, %v2216
      %v2317 = vpack.c.b16 %v2225, %v2221
      %v2318 = vpack.c.b16 %v2226, %v2222
      %v2319 = vpack.c.b16 %v2227, %v2223
      %v2320 = vpack.c.b16 %v2228, %v2224
      %v2321 = vpack.c.b16 %v2233, %v2229
      %v2322 = vpack.c.b16 %v2234, %v2230
      %v2323 = vpack.c.b16 %v2235, %v2231
      %v2324 = vpack.c.b16 %v2236, %v2232
      %v2325 = vpack.c.b16 %v2241, %v2237
      %v2326 = vpack.c.b16 %v2242, %v2238
      %v2327 = vpack.c.b16 %v2243, %v2239
      %v2328 = vpack.c.b16 %v2244, %v2240
      %v2329 = vpack.c.b16 %v2249, %v2245
      %v2330 = vpack.c.b16 %v2250, %v2246
      %v2331 = vpack.c.b16 %v2251, %v2247
      %v2332 = vpack.c.b16 %v2252, %v2248
      %v2333 = vpack.c.b16 %v2257, %v2253
      %v2334 = vpack.c.b16 %v2258, %v2254
      %v2335 = vpack.c.b16 %v2259, %v2255
      %v2336 = vpack.c.b16 %v2260, %v2256
      %v2337 = vpack.c.b16 %v2265, %v2261
      %v2338 = vpack.c.b16 %v2266, %v2262
      %v2339 = vpack.c.b16 %v2267, %v2263
      %v2340 = vpack.c.b16 %v2268, %v2264
      %v2341 = vpack.c.b16 %v2273, %v2269
      %v2342 = vpack.c.b16 %v2274, %v2270
      %v2343 = vpack.c.b16 %v2275, %v2271
      %v2344 = vpack.c.b16 %v2276, %v2272
      %v2345 = vpack.c.b16 %v2281, %v2277
      %v2346 = vpack.c.b16 %v2282, %v2278
      %v2347 = vpack.c.b16 %v2283, %v2279
      %v2348 = vpack.c.b16 %v2284, %v2280
      %2413 = vmatprep.subr.bf16.mxu0 %v2286
      %2414 = vmatpush1.bf16.msra.mxu0 %v2285
      %2415 = vmatprep.subr.bf16.mxu0 %v2290
      %2416 = vmatpush1.bf16.msra.mxu0 %v2289
      %2417 = vmatprep.subr.bf16.mxu0 %v2294
      %2418 = vmatpush1.bf16.msra.mxu0 %v2293
      %2419 = vmatprep.subr.bf16.mxu0 %v2298
      %2420 = vmatpush1.bf16.msra.mxu0 %v2297
      %2421 = vmatprep.subr.bf16.mxu0 %v2302
      %2422 = vmatpush1.bf16.msra.mxu0 %v2301
      %2423 = vmatprep.subr.bf16.mxu0 %v2306
      %2424 = vmatpush1.bf16.msra.mxu0 %v2305
      %2425 = vmatprep.subr.bf16.mxu0 %v2310
      %2426 = vmatpush1.bf16.msra.mxu0 %v2309
      %2427 = vmatprep.subr.bf16.mxu0 %v2314
      %2428 = vmatpush1.bf16.msra.mxu0 %v2313
      %2429 = vmatprep.subr.bf16.mxu0 %v2318
      %2430 = vmatpush1.bf16.msra.mxu0 %v2317
      %2431 = vmatprep.subr.bf16.mxu0 %v2322
      %2432 = vmatpush1.bf16.msra.mxu0 %v2321
      %2433 = vmatprep.subr.bf16.mxu0 %v2326
      %2434 = vmatpush1.bf16.msra.mxu0 %v2325
      %2435 = vmatprep.subr.bf16.mxu0 %v2330
      %2436 = vmatpush1.bf16.msra.mxu0 %v2329
      %2437 = vmatprep.subr.bf16.mxu0 %v2334
      %2438 = vmatpush1.bf16.msra.mxu0 %v2333
      %2439 = vmatprep.subr.bf16.mxu0 %v2338
      %2440 = vmatpush1.bf16.msra.mxu0 %v2337
      %2441 = vmatprep.subr.bf16.mxu0 %v2342
      %2442 = vmatpush1.bf16.msra.mxu0 %v2341
      %2443 = vmatprep.subr.bf16.mxu0 %v2346
      %2444 = vmatpush1.bf16.msra.mxu0 %v2345
      %2445 = vmatprep.mubr.bf16.mxu0 %v1471
      %2446 = vmatmul.mubr.bf16.gmra.mrb[0].mxu0 %v1470
      %v2447 = vpop.f32.mrb[0].mxu0
      %v2448 = vadd.f32 %v1986, %v2447
      %v2449 = vpop.f32.mrb[0].mxu0
      %v2450 = vadd.f32 %v1988, %v2449
      %v2451 = vpop.f32.mrb[0].mxu0
      %v2452 = vadd.f32 %v1990, %v2451
      %v2453 = vpop.f32.mrb[0].mxu0
      %v2454 = vadd.f32 %v1992, %v2453
      %2455 = vmatprep.mubr.bf16.mxu0 %v1473
      %2456 = vmatmul.mubr.bf16.gmra.mrb[0].mxu0 %v1472
      %v2457 = vpop.f32.mrb[0].mxu0
      %v2458 = vadd.f32 %v1996, %v2457
      %v2459 = vpop.f32.mrb[0].mxu0
      %v2460 = vadd.f32 %v1998, %v2459
      %v2461 = vpop.f32.mrb[0].mxu0
      %v2462 = vadd.f32 %v2000, %v2461
      %v2463 = vpop.f32.mrb[0].mxu0
      %v2464 = vadd.f32 %v2002, %v2463
      %2465 = vmatprep.mubr.bf16.mxu0 %v1475
      %2466 = vmatmul.mubr.bf16.gmra.mrb[0].mxu0 %v1474
      %v2467 = vpop.f32.mrb[0].mxu0
      %v2468 = vadd.f32 %v2006, %v2467
      %v2469 = vpop.f32.mrb[0].mxu0
      %v2470 = vadd.f32 %v2008, %v2469
      %v2471 = vpop.f32.mrb[0].mxu0
      %v2472 = vadd.f32 %v2010, %v2471
      %v2473 = vpop.f32.mrb[0].mxu0
      %v2474 = vadd.f32 %v2012, %v2473
      %2475 = vmatprep.mubr.bf16.mxu0 %v1477
      %2476 = vmatmul.mubr.bf16.gmra.mrb[0].mxu0 %v1476
      %v2477 = vpop.f32.mrb[0].mxu0
      %v2478 = vadd.f32 %v2016, %v2477
      %v2479 = vpop.f32.mrb[0].mxu0
      %v2480 = vadd.f32 %v2018, %v2479
      %v2481 = vpop.f32.mrb[0].mxu0
      %v2482 = vpop.f32.mrb[0].mxu0
      %2483 = vdwg.mxu0
      %2484 = vmatprep.subr.bf16.mxu0 %v2288
      %2485 = vmatpush1.bf16.msra.mxu0 %v2287
      %2486 = vmatprep.subr.bf16.mxu0 %v2292
      %2487 = vmatpush1.bf16.msra.mxu0 %v2291
      %2488 = vmatprep.subr.bf16.mxu0 %v2296
      %2489 = vmatpush1.bf16.msra.mxu0 %v2295
      %2490 = vmatprep.subr.bf16.mxu0 %v2300
      %2491 = vmatpush1.bf16.msra.mxu0 %v2299
      %2492 = vmatprep.subr.bf16.mxu0 %v2304
      %2493 = vmatpush1.bf16.msra.mxu0 %v2303
      %2494 = vmatprep.subr.bf16.mxu0 %v2308
      %2495 = vmatpush1.bf16.msra.mxu0 %v2307
      %2496 = vmatprep.subr.bf16.mxu0 %v2312
      %2497 = vmatpush1.bf16.msra.mxu0 %v2311
      %2498 = vmatprep.subr.bf16.mxu0 %v2316
      %2499 = vmatpush1.bf16.msra.mxu0 %v2315
      %2500 = vmatprep.subr.bf16.mxu0 %v2320
      %2501 = vmatpush1.bf16.msra.mxu0 %v2319
      %2502 = vmatprep.subr.bf16.mxu0 %v2324
      %2503 = vmatpush1.bf16.msra.mxu0 %v2323
      %2504 = vmatprep.subr.bf16.mxu0 %v2328
      %2505 = vmatpush1.bf16.msra.mxu0 %v2327
      %2506 = vmatprep.subr.bf16.mxu0 %v2332
      %2507 = vmatpush1.bf16.msra.mxu0 %v2331
      %2508 = vmatprep.subr.bf16.mxu0 %v2336
      %2509 = vmatpush1.bf16.msra.mxu0 %v2335
      %2510 = vmatprep.subr.bf16.mxu0 %v2340
      %2511 = vmatpush1.bf16.msra.mxu0 %v2339
      %2512 = vmatprep.subr.bf16.mxu0 %v2344
      %2513 = vmatpush1.bf16.msra.mxu0 %v2343
      %2514 = vmatprep.subr.bf16.mxu0 %v2348
      %2515 = vmatpush1.bf16.msra.mxu0 %v2347
      %2516 = vmatprep.mubr.bf16.mxu0 %v1471
      %2517 = vmatmul.mubr.bf16.gmra.mrb[0].mxu0 %v1470
      %v2518 = vpop.f32.mrb[0].mxu0
      %v2519 = vadd.f32 %v2057, %v2518
      %v2520 = vpop.f32.mrb[0].mxu0
      %v2521 = vadd.f32 %v2059, %v2520
      %v2522 = vpop.f32.mrb[0].mxu0
      %v2523 = vadd.f32 %v2061, %v2522
      %v2524 = vpop.f32.mrb[0].mxu0
      %v2525 = vadd.f32 %v2063, %v2524
      %2526 = vmatprep.mubr.bf16.mxu0 %v1473
      %2527 = vmatmul.mubr.bf16.gmra.mrb[0].mxu0 %v1472
      %v2528 = vpop.f32.mrb[0].mxu0
      %v2529 = vadd.f32 %v2067, %v2528
      %v2530 = vpop.f32.mrb[0].mxu0
      %v2531 = vadd.f32 %v2069, %v2530
      %v2532 = vpop.f32.mrb[0].mxu0
      %v2533 = vadd.f32 %v2071, %v2532
      %v2534 = vpop.f32.mrb[0].mxu0
      %v2535 = vadd.f32 %v2073, %v2534
      %2536 = vmatprep.mubr.bf16.mxu0 %v1475
      %2537 = vmatmul.mubr.bf16.gmra.mrb[0].mxu0 %v1474
      %v2538 = vpop.f32.mrb[0].mxu0
      %v2539 = vadd.f32 %v2077, %v2538
      %v2540 = vpop.f32.mrb[0].mxu0
      %v2541 = vadd.f32 %v2079, %v2540
      %v2542 = vpop.f32.mrb[0].mxu0
      %v2543 = vadd.f32 %v2081, %v2542
      %v2544 = vpop.f32.mrb[0].mxu0
      %v2545 = vadd.f32 %v2083, %v2544
      %2546 = vmatprep.mubr.bf16.mxu0 %v1477
      %2547 = vmatmul.mubr.bf16.gmra.mrb[0].mxu0 %v1476
      %v2548 = vpop.f32.mrb[0].mxu0
      %v2549 = vadd.f32 %v2087, %v2548
      %v2550 = vpop.f32.mrb[0].mxu0
      %v2551 = vadd.f32 %v2089, %v2550
      %v2552 = vpop.f32.mrb[0].mxu0
      %v2553 = vpop.f32.mrb[0].mxu0
      %2554 = vdwg.mxu0
      %s2555 = scalar_lea.vmem %s3, 1024
      %v2556 = vld [vmem:[%s2555] sm:$0xff]
      %v2557 = vld [vmem:[%s2555 + $0x8] sm:$0xff]
      %v2558 = vld [vmem:[%s2555 + $0x10] sm:$0xff]
      %v2559 = vld [vmem:[%s2555 + $0x18] sm:$0xff]
      %v2560 = vld [vmem:[%s2555 + $0x20] sm:$0xff]
      %v2561 = vld [vmem:[%s2555 + $0x28] sm:$0xff]
      %v2562 = vld [vmem:[%s2555 + $0x30] sm:$0xff]
      %v2563 = vld [vmem:[%s2555 + $0x38] sm:$0xff]
      %v2564 = vld [vmem:[%s2555 + $0x40] sm:$0xff]
      %v2565 = vld [vmem:[%s2555 + $0x48] sm:$0xff]
      %v2566 = vld [vmem:[%s2555 + $0x50] sm:$0xff]
      %v2567 = vld [vmem:[%s2555 + $0x58] sm:$0xff]
      %v2568 = vld [vmem:[%s2555 + $0x60] sm:$0xff]
      %v2569 = vld [vmem:[%s2555 + $0x68] sm:$0xff]
      %v2570 = vld [vmem:[%s2555 + $0x70] sm:$0xff]
      %v2571 = vld [vmem:[%s2555 + $0x78] sm:$0xff]
      %v2572 = vld [vmem:[%s2555 + $0x80] sm:$0xff]
      %v2573 = vld [vmem:[%s2555 + $0x88] sm:$0xff]
      %v2574 = vld [vmem:[%s2555 + $0x90] sm:$0xff]
      %v2575 = vld [vmem:[%s2555 + $0x98] sm:$0xff]
      %v2576 = vld [vmem:[%s2555 + $0xa0] sm:$0xff]
      %v2577 = vld [vmem:[%s2555 + $0xa8] sm:$0xff]
      %v2578 = vld [vmem:[%s2555 + $0xb0] sm:$0xff]
      %v2579 = vld [vmem:[%s2555 + $0xb8] sm:$0xff]
      %v2580 = vld [vmem:[%s2555 + $0xc0] sm:$0xff]
      %v2581 = vld [vmem:[%s2555 + $0xc8] sm:$0xff]
      %v2582 = vld [vmem:[%s2555 + $0xd0] sm:$0xff]
      %v2583 = vld [vmem:[%s2555 + $0xd8] sm:$0xff]
      %v2584 = vld [vmem:[%s2555 + $0xe0] sm:$0xff]
      %v2585 = vld [vmem:[%s2555 + $0xe8] sm:$0xff]
      %v2586 = vld [vmem:[%s2555 + $0xf0] sm:$0xff]
      %v2587 = vld [vmem:[%s2555 + $0xf8] sm:$0xff]
      %v2588 = vld [vmem:[%s2555 + $0x100] sm:$0xff]
      %v2589 = vld [vmem:[%s2555 + $0x108] sm:$0xff]
      %v2590 = vld [vmem:[%s2555 + $0x110] sm:$0xff]
      %v2591 = vld [vmem:[%s2555 + $0x118] sm:$0xff]
      %v2592 = vld [vmem:[%s2555 + $0x120] sm:$0xff]
      %v2593 = vld [vmem:[%s2555 + $0x128] sm:$0xff]
      %v2594 = vld [vmem:[%s2555 + $0x130] sm:$0xff]
      %v2595 = vld [vmem:[%s2555 + $0x138] sm:$0xff]
      %v2596 = vld [vmem:[%s2555 + $0x140] sm:$0xff]
      %v2597 = vld [vmem:[%s2555 + $0x148] sm:$0xff]
      %v2598 = vld [vmem:[%s2555 + $0x150] sm:$0xff]
      %v2599 = vld [vmem:[%s2555 + $0x158] sm:$0xff]
      %v2600 = vld [vmem:[%s2555 + $0x160] sm:$0xff]
      %v2601 = vld [vmem:[%s2555 + $0x168] sm:$0xff]
      %v2602 = vld [vmem:[%s2555 + $0x170] sm:$0xff]
      %v2603 = vld [vmem:[%s2555 + $0x178] sm:$0xff]
      %v2604 = vld [vmem:[%s2555 + $0x180] sm:$0xff]
      %v2605 = vld [vmem:[%s2555 + $0x188] sm:$0xff]
      %v2606 = vld [vmem:[%s2555 + $0x190] sm:$0xff]
      %v2607 = vld [vmem:[%s2555 + $0x198] sm:$0xff]
      %v2608 = vld [vmem:[%s2555 + $0x1a0] sm:$0xff]
      %v2609 = vld [vmem:[%s2555 + $0x1a8] sm:$0xff]
      %v2610 = vld [vmem:[%s2555 + $0x1b0] sm:$0xff]
      %v2611 = vld [vmem:[%s2555 + $0x1b8] sm:$0xff]
      %v2612 = vld [vmem:[%s2555 + $0x1c0] sm:$0xff]
      %v2613 = vld [vmem:[%s2555 + $0x1c8] sm:$0xff]
      %v2614 = vld [vmem:[%s2555 + $0x1d0] sm:$0xff]
      %v2615 = vld [vmem:[%s2555 + $0x1d8] sm:$0xff]
      %v2616 = vld [vmem:[%s2555 + $0x1e0] sm:$0xff]
      %v2617 = vld [vmem:[%s2555 + $0x1e8] sm:$0xff]
      %v2618 = vld [vmem:[%s2555 + $0x1f0] sm:$0xff]
      %v2619 = vld [vmem:[%s2555 + $0x1f8] sm:$0xff]
      %v2684 = vunpack.c.l.b16 %v2556
      %v2685 = vunpack.c.h.b16 %v2556
      %v2686 = vunpack.c.l.b16 %v2557
      %v2687 = vunpack.c.h.b16 %v2557
      %v2688 = vunpack.c.l.b16 %v2558
      %v2689 = vunpack.c.h.b16 %v2558
      %v2690 = vunpack.c.l.b16 %v2559
      %v2691 = vunpack.c.h.b16 %v2559
      %v2692 = vunpack.c.l.b16 %v2560
      %v2693 = vunpack.c.h.b16 %v2560
      %v2694 = vunpack.c.l.b16 %v2561
      %v2695 = vunpack.c.h.b16 %v2561
      %v2696 = vunpack.c.l.b16 %v2562
      %v2697 = vunpack.c.h.b16 %v2562
      %v2698 = vunpack.c.l.b16 %v2563
      %v2699 = vunpack.c.h.b16 %v2563
      %v2700 = vunpack.c.l.b16 %v2564
      %v2701 = vunpack.c.h.b16 %v2564
      %v2702 = vunpack.c.l.b16 %v2565
      %v2703 = vunpack.c.h.b16 %v2565
      %v2704 = vunpack.c.l.b16 %v2566
      %v2705 = vunpack.c.h.b16 %v2566
      %v2706 = vunpack.c.l.b16 %v2567
      %v2707 = vunpack.c.h.b16 %v2567
      %v2708 = vunpack.c.l.b16 %v2568
      %v2709 = vunpack.c.h.b16 %v2568
      %v2710 = vunpack.c.l.b16 %v2569
      %v2711 = vunpack.c.h.b16 %v2569
      %v2712 = vunpack.c.l.b16 %v2570
      %v2713 = vunpack.c.h.b16 %v2570
      %v2714 = vunpack.c.l.b16 %v2571
      %v2715 = vunpack.c.h.b16 %v2571
      %v2716 = vunpack.c.l.b16 %v2572
      %v2717 = vunpack.c.h.b16 %v2572
      %v2718 = vunpack.c.l.b16 %v2573
      %v2719 = vunpack.c.h.b16 %v2573
      %v2720 = vunpack.c.l.b16 %v2574
      %v2721 = vunpack.c.h.b16 %v2574
      %v2722 = vunpack.c.l.b16 %v2575
      %v2723 = vunpack.c.h.b16 %v2575
      %v2724 = vunpack.c.l.b16 %v2576
      %v2725 = vunpack.c.h.b16 %v2576
      %v2726 = vunpack.c.l.b16 %v2577
      %v2727 = vunpack.c.h.b16 %v2577
      %v2728 = vunpack.c.l.b16 %v2578
      %v2729 = vunpack.c.h.b16 %v2578
      %v2730 = vunpack.c.l.b16 %v2579
      %v2731 = vunpack.c.h.b16 %v2579
      %v2732 = vunpack.c.l.b16 %v2580
      %v2733 = vunpack.c.h.b16 %v2580
      %v2734 = vunpack.c.l.b16 %v2581
      %v2735 = vunpack.c.h.b16 %v2581
      %v2736 = vunpack.c.l.b16 %v2582
      %v2737 = vunpack.c.h.b16 %v2582
      %v2738 = vunpack.c.l.b16 %v2583
      %v2739 = vunpack.c.h.b16 %v2583
      %v2740 = vunpack.c.l.b16 %v2584
      %v2741 = vunpack.c.h.b16 %v2584
      %v2742 = vunpack.c.l.b16 %v2585
      %v2743 = vunpack.c.h.b16 %v2585
      %v2744 = vunpack.c.l.b16 %v2586
      %v2745 = vunpack.c.h.b16 %v2586
      %v2746 = vunpack.c.l.b16 %v2587
      %v2747 = vunpack.c.h.b16 %v2587
      %v2748 = vunpack.c.l.b16 %v2588
      %v2749 = vunpack.c.h.b16 %v2588
      %v2750 = vunpack.c.l.b16 %v2589
      %v2751 = vunpack.c.h.b16 %v2589
      %v2752 = vunpack.c.l.b16 %v2590
      %v2753 = vunpack.c.h.b16 %v2590
      %v2754 = vunpack.c.l.b16 %v2591
      %v2755 = vunpack.c.h.b16 %v2591
      %v2756 = vunpack.c.l.b16 %v2592
      %v2757 = vunpack.c.h.b16 %v2592
      %v2758 = vunpack.c.l.b16 %v2593
      %v2759 = vunpack.c.h.b16 %v2593
      %v2760 = vunpack.c.l.b16 %v2594
      %v2761 = vunpack.c.h.b16 %v2594
      %v2762 = vunpack.c.l.b16 %v2595
      %v2763 = vunpack.c.h.b16 %v2595
      %v2764 = vunpack.c.l.b16 %v2596
      %v2765 = vunpack.c.h.b16 %v2596
      %v2766 = vunpack.c.l.b16 %v2597
      %v2767 = vunpack.c.h.b16 %v2597
      %v2768 = vunpack.c.l.b16 %v2598
      %v2769 = vunpack.c.h.b16 %v2598
      %v2770 = vunpack.c.l.b16 %v2599
      %v2771 = vunpack.c.h.b16 %v2599
      %v2772 = vunpack.c.l.b16 %v2600
      %v2773 = vunpack.c.h.b16 %v2600
      %v2774 = vunpack.c.l.b16 %v2601
      %v2775 = vunpack.c.h.b16 %v2601
      %v2776 = vunpack.c.l.b16 %v2602
      %v2777 = vunpack.c.h.b16 %v2602
      %v2778 = vunpack.c.l.b16 %v2603
      %v2779 = vunpack.c.h.b16 %v2603
      %v2780 = vunpack.c.l.b16 %v2604
      %v2781 = vunpack.c.h.b16 %v2604
      %v2782 = vunpack.c.l.b16 %v2605
      %v2783 = vunpack.c.h.b16 %v2605
      %v2784 = vunpack.c.l.b16 %v2606
      %v2785 = vunpack.c.h.b16 %v2606
      %v2786 = vunpack.c.l.b16 %v2607
      %v2787 = vunpack.c.h.b16 %v2607
      %v2788 = vunpack.c.l.b16 %v2608
      %v2789 = vunpack.c.h.b16 %v2608
      %v2790 = vunpack.c.l.b16 %v2609
      %v2791 = vunpack.c.h.b16 %v2609
      %v2792 = vunpack.c.l.b16 %v2610
      %v2793 = vunpack.c.h.b16 %v2610
      %v2794 = vunpack.c.l.b16 %v2611
      %v2795 = vunpack.c.h.b16 %v2611
      %v2796 = vunpack.c.l.b16 %v2612
      %v2797 = vunpack.c.h.b16 %v2612
      %v2798 = vunpack.c.l.b16 %v2613
      %v2799 = vunpack.c.h.b16 %v2613
      %v2800 = vunpack.c.l.b16 %v2614
      %v2801 = vunpack.c.h.b16 %v2614
      %v2802 = vunpack.c.l.b16 %v2615
      %v2803 = vunpack.c.h.b16 %v2615
      %v2804 = vunpack.c.l.b16 %v2616
      %v2805 = vunpack.c.h.b16 %v2616
      %v2806 = vunpack.c.l.b16 %v2617
      %v2807 = vunpack.c.h.b16 %v2617
      %v2808 = vunpack.c.l.b16 %v2618
      %v2809 = vunpack.c.h.b16 %v2618
      %v2810 = vunpack.c.l.b16 %v2619
      %v2811 = vunpack.c.h.b16 %v2619
      %v2812 = vpack.c.b16 %v2688, %v2684
      %v2813 = vpack.c.b16 %v2689, %v2685
      %v2814 = vpack.c.b16 %v2690, %v2686
      %v2815 = vpack.c.b16 %v2691, %v2687
      %v2816 = vpack.c.b16 %v2696, %v2692
      %v2817 = vpack.c.b16 %v2697, %v2693
      %v2818 = vpack.c.b16 %v2698, %v2694
      %v2819 = vpack.c.b16 %v2699, %v2695
      %v2820 = vpack.c.b16 %v2704, %v2700
      %v2821 = vpack.c.b16 %v2705, %v2701
      %v2822 = vpack.c.b16 %v2706, %v2702
      %v2823 = vpack.c.b16 %v2707, %v2703
      %v2824 = vpack.c.b16 %v2712, %v2708
      %v2825 = vpack.c.b16 %v2713, %v2709
      %v2826 = vpack.c.b16 %v2714, %v2710
      %v2827 = vpack.c.b16 %v2715, %v2711
      %v2828 = vpack.c.b16 %v2720, %v2716
      %v2829 = vpack.c.b16 %v2721, %v2717
      %v2830 = vpack.c.b16 %v2722, %v2718
      %v2831 = vpack.c.b16 %v2723, %v2719
      %v2832 = vpack.c.b16 %v2728, %v2724
      %v2833 = vpack.c.b16 %v2729, %v2725
      %v2834 = vpack.c.b16 %v2730, %v2726
      %v2835 = vpack.c.b16 %v2731, %v2727
      %v2836 = vpack.c.b16 %v2736, %v2732
      %v2837 = vpack.c.b16 %v2737, %v2733
      %v2838 = vpack.c.b16 %v2738, %v2734
      %v2839 = vpack.c.b16 %v2739, %v2735
      %v2840 = vpack.c.b16 %v2744, %v2740
      %v2841 = vpack.c.b16 %v2745, %v2741
      %v2842 = vpack.c.b16 %v2746, %v2742
      %v2843 = vpack.c.b16 %v2747, %v2743
      %v2844 = vpack.c.b16 %v2752, %v2748
      %v2845 = vpack.c.b16 %v2753, %v2749
      %v2846 = vpack.c.b16 %v2754, %v2750
      %v2847 = vpack.c.b16 %v2755, %v2751
      %v2848 = vpack.c.b16 %v2760, %v2756
      %v2849 = vpack.c.b16 %v2761, %v2757
      %v2850 = vpack.c.b16 %v2762, %v2758
      %v2851 = vpack.c.b16 %v2763, %v2759
      %v2852 = vpack.c.b16 %v2768, %v2764
      %v2853 = vpack.c.b16 %v2769, %v2765
      %v2854 = vpack.c.b16 %v2770, %v2766
      %v2855 = vpack.c.b16 %v2771, %v2767
      %v2856 = vpack.c.b16 %v2776, %v2772
      %v2857 = vpack.c.b16 %v2777, %v2773
      %v2858 = vpack.c.b16 %v2778, %v2774
      %v2859 = vpack.c.b16 %v2779, %v2775
      %v2860 = vpack.c.b16 %v2784, %v2780
      %v2861 = vpack.c.b16 %v2785, %v2781
      %v2862 = vpack.c.b16 %v2786, %v2782
      %v2863 = vpack.c.b16 %v2787, %v2783
      %v2864 = vpack.c.b16 %v2792, %v2788
      %v2865 = vpack.c.b16 %v2793, %v2789
      %v2866 = vpack.c.b16 %v2794, %v2790
      %v2867 = vpack.c.b16 %v2795, %v2791
      %v2868 = vpack.c.b16 %v2800, %v2796
      %v2869 = vpack.c.b16 %v2801, %v2797
      %v2870 = vpack.c.b16 %v2802, %v2798
      %v2871 = vpack.c.b16 %v2803, %v2799
      %v2872 = vpack.c.b16 %v2808, %v2804
      %v2873 = vpack.c.b16 %v2809, %v2805
      %v2874 = vpack.c.b16 %v2810, %v2806
      %v2875 = vpack.c.b16 %v2811, %v2807
      %2940 = vmatprep.subr.bf16.mxu0 %v2813
      %2941 = vmatpush1.bf16.msra.mxu0 %v2812
      %2942 = vmatprep.subr.bf16.mxu0 %v2817
      %2943 = vmatpush1.bf16.msra.mxu0 %v2816
      %2944 = vmatprep.subr.bf16.mxu0 %v2821
      %2945 = vmatpush1.bf16.msra.mxu0 %v2820
      %2946 = vmatprep.subr.bf16.mxu0 %v2825
      %2947 = vmatpush1.bf16.msra.mxu0 %v2824
      %2948 = vmatprep.subr.bf16.mxu0 %v2829
      %2949 = vmatpush1.bf16.msra.mxu0 %v2828
      %2950 = vmatprep.subr.bf16.mxu0 %v2833
      %2951 = vmatpush1.bf16.msra.mxu0 %v2832
      %2952 = vmatprep.subr.bf16.mxu0 %v2837
      %2953 = vmatpush1.bf16.msra.mxu0 %v2836
      %2954 = vmatprep.subr.bf16.mxu0 %v2841
      %2955 = vmatpush1.bf16.msra.mxu0 %v2840
      %2956 = vmatprep.subr.bf16.mxu0 %v2845
      %2957 = vmatpush1.bf16.msra.mxu0 %v2844
      %2958 = vmatprep.subr.bf16.mxu0 %v2849
      %2959 = vmatpush1.bf16.msra.mxu0 %v2848
      %2960 = vmatprep.subr.bf16.mxu0 %v2853
      %2961 = vmatpush1.bf16.msra.mxu0 %v2852
      %2962 = vmatprep.subr.bf16.mxu0 %v2857
      %2963 = vmatpush1.bf16.msra.mxu0 %v2856
      %2964 = vmatprep.subr.bf16.mxu0 %v2861
      %2965 = vmatpush1.bf16.msra.mxu0 %v2860
      %2966 = vmatprep.subr.bf16.mxu0 %v2865
      %2967 = vmatpush1.bf16.msra.mxu0 %v2864
      %2968 = vmatprep.subr.bf16.mxu0 %v2869
      %2969 = vmatpush1.bf16.msra.mxu0 %v2868
      %2970 = vmatprep.subr.bf16.mxu0 %v2873
      %2971 = vmatpush1.bf16.msra.mxu0 %v2872
      %2972 = vmatprep.mubr.bf16.mxu0 %v1487
      %2973 = vmatmul.mubr.bf16.gmra.mrb[0].mxu0 %v1486
      %v2974 = vpop.f32.mrb[0].mxu0
      %v2975 = vadd.f32 0.0, %v2974
      %v2976 = vpop.f32.mrb[0].mxu0
      %v2977 = vadd.f32 0.0, %v2976
      %v2978 = vpop.f32.mrb[0].mxu0
      %v2979 = vadd.f32 0.0, %v2978
      %v2980 = vpop.f32.mrb[0].mxu0
      %v2981 = vadd.f32 0.0, %v2980
      %2982 = vmatprep.mubr.bf16.mxu0 %v1489
      %2983 = vmatmul.mubr.bf16.gmra.mrb[0].mxu0 %v1488
      %v2984 = vpop.f32.mrb[0].mxu0
      %v2985 = vadd.f32 0.0, %v2984
      %v2986 = vpop.f32.mrb[0].mxu0
      %v2987 = vadd.f32 0.0, %v2986
      %v2988 = vpop.f32.mrb[0].mxu0
      %v2989 = vadd.f32 0.0, %v2988
      %v2990 = vpop.f32.mrb[0].mxu0
      %v2991 = vadd.f32 0.0, %v2990
      %2992 = vmatprep.mubr.bf16.mxu0 %v1491
      %2993 = vmatmul.mubr.bf16.gmra.mrb[0].mxu0 %v1490
      %v2994 = vpop.f32.mrb[0].mxu0
      %v2995 = vadd.f32 0.0, %v2994
      %v2996 = vpop.f32.mrb[0].mxu0
      %v2997 = vadd.f32 0.0, %v2996
      %v2998 = vpop.f32.mrb[0].mxu0
      %v2999 = vadd.f32 0.0, %v2998
      %v3000 = vpop.f32.mrb[0].mxu0
      %v3001 = vadd.f32 0.0, %v3000
      %3002 = vmatprep.mubr.bf16.mxu0 %v1493
      %3003 = vmatmul.mubr.bf16.gmra.mrb[0].mxu0 %v1492
      %v3004 = vpop.f32.mrb[0].mxu0
      %v3005 = vadd.f32 0.0, %v3004
      %v3006 = vpop.f32.mrb[0].mxu0
      %v3007 = vadd.f32 0.0, %v3006
      %v3008 = vpop.f32.mrb[0].mxu0
      %v3009 = vpop.f32.mrb[0].mxu0
      %3010 = vdwg.mxu0
      %3011 = vmatprep.subr.bf16.mxu0 %v2815
      %3012 = vmatpush1.bf16.msra.mxu0 %v2814
      %3013 = vmatprep.subr.bf16.mxu0 %v2819
      %3014 = vmatpush1.bf16.msra.mxu0 %v2818
      %3015 = vmatprep.subr.bf16.mxu0 %v2823
      %3016 = vmatpush1.bf16.msra.mxu0 %v2822
      %3017 = vmatprep.subr.bf16.mxu0 %v2827
      %3018 = vmatpush1.bf16.msra.mxu0 %v2826
      %3019 = vmatprep.subr.bf16.mxu0 %v2831
      %3020 = vmatpush1.bf16.msra.mxu0 %v2830
      %3021 = vmatprep.subr.bf16.mxu0 %v2835
      %3022 = vmatpush1.bf16.msra.mxu0 %v2834
      %3023 = vmatprep.subr.bf16.mxu0 %v2839
      %3024 = vmatpush1.bf16.msra.mxu0 %v2838
      %3025 = vmatprep.subr.bf16.mxu0 %v2843
      %3026 = vmatpush1.bf16.msra.mxu0 %v2842
      %3027 = vmatprep.subr.bf16.mxu0 %v2847
      %3028 = vmatpush1.bf16.msra.mxu0 %v2846
      %3029 = vmatprep.subr.bf16.mxu0 %v2851
      %3030 = vmatpush1.bf16.msra.mxu0 %v2850
      %3031 = vmatprep.subr.bf16.mxu0 %v2855
      %3032 = vmatpush1.bf16.msra.mxu0 %v2854
      %3033 = vmatprep.subr.bf16.mxu0 %v2859
      %3034 = vmatpush1.bf16.msra.mxu0 %v2858
      %3035 = vmatprep.subr.bf16.mxu0 %v2863
      %3036 = vmatpush1.bf16.msra.mxu0 %v2862
      %3037 = vmatprep.subr.bf16.mxu0 %v2867
      %3038 = vmatpush1.bf16.msra.mxu0 %v2866
      %3039 = vmatprep.subr.bf16.mxu0 %v2871
      %3040 = vmatpush1.bf16.msra.mxu0 %v2870
      %3041 = vmatprep.subr.bf16.mxu0 %v2875
      %3042 = vmatpush1.bf16.msra.mxu0 %v2874
      %3043 = vmatprep.mubr.bf16.mxu0 %v1487
      %3044 = vmatmul.mubr.bf16.gmra.mrb[0].mxu0 %v1486
      %v3045 = vpop.f32.mrb[0].mxu0
      %v3046 = vadd.f32 0.0, %v3045
      %v3047 = vpop.f32.mrb[0].mxu0
      %v3048 = vadd.f32 0.0, %v3047
      %v3049 = vpop.f32.mrb[0].mxu0
      %v3050 = vadd.f32 0.0, %v3049
      %v3051 = vpop.f32.mrb[0].mxu0
      %v3052 = vadd.f32 0.0, %v3051
      %3053 = vmatprep.mubr.bf16.mxu0 %v1489
      %3054 = vmatmul.mubr.bf16.gmra.mrb[0].mxu0 %v1488
      %v3055 = vpop.f32.mrb[0].mxu0
      %v3056 = vadd.f32 0.0, %v3055
      %v3057 = vpop.f32.mrb[0].mxu0
      %v3058 = vadd.f32 0.0, %v3057
      %v3059 = vpop.f32.mrb[0].mxu0
      %v3060 = vadd.f32 0.0, %v3059
      %v3061 = vpop.f32.mrb[0].mxu0
      %v3062 = vadd.f32 0.0, %v3061
      %3063 = vmatprep.mubr.bf16.mxu0 %v1491
      %3064 = vmatmul.mubr.bf16.gmra.mrb[0].mxu0 %v1490
      %v3065 = vpop.f32.mrb[0].mxu0
      %v3066 = vadd.f32 0.0, %v3065
      %v3067 = vpop.f32.mrb[0].mxu0
      %v3068 = vadd.f32 0.0, %v3067
      %v3069 = vpop.f32.mrb[0].mxu0
      %v3070 = vadd.f32 0.0, %v3069
      %v3071 = vpop.f32.mrb[0].mxu0
      %v3072 = vadd.f32 0.0, %v3071
      %3073 = vmatprep.mubr.bf16.mxu0 %v1493
      %3074 = vmatmul.mubr.bf16.gmra.mrb[0].mxu0 %v1492
      %v3075 = vpop.f32.mrb[0].mxu0
      %v3076 = vadd.f32 0.0, %v3075
      %v3077 = vpop.f32.mrb[0].mxu0
      %v3078 = vadd.f32 0.0, %v3077
      %v3079 = vpop.f32.mrb[0].mxu0
      %v3080 = vpop.f32.mrb[0].mxu0
      %3081 = vdwg.mxu0
      %v3082 = vadd.f32 %v2448, %v2975
      %v3083 = vadd.f32 %v2450, %v2977
      %v3084 = vadd.f32 %v2519, %v3046
      %v3085 = vadd.f32 %v2521, %v3048
      %v3086 = vadd.f32 %v2452, %v2979
      %v3087 = vadd.f32 %v2454, %v2981
      %v3088 = vadd.f32 %v2523, %v3050
      %v3089 = vadd.f32 %v2525, %v3052
      %v3090 = vadd.f32 %v2458, %v2985
      %v3091 = vadd.f32 %v2460, %v2987
      %v3092 = vadd.f32 %v2529, %v3056
      %v3093 = vadd.f32 %v2531, %v3058
      %v3094 = vadd.f32 %v2462, %v2989
      %v3095 = vadd.f32 %v2464, %v2991
      %v3096 = vadd.f32 %v2533, %v3060
      %v3097 = vadd.f32 %v2535, %v3062
      %v3098 = vadd.f32 %v2468, %v2995
      %v3099 = vadd.f32 %v2470, %v2997
      %v3100 = vadd.f32 %v2539, %v3066
      %v3101 = vadd.f32 %v2541, %v3068
      %v3102 = vadd.f32 %v2472, %v2999
      %v3103 = vadd.f32 %v2474, %v3001
      %v3104 = vadd.f32 %v2543, %v3070
      %v3105 = vadd.f32 %v2545, %v3072
      %v3106 = vadd.f32 %v2478, %v3005
      %v3107 = vadd.f32 %v2480, %v3007
      %v3108 = vadd.f32 %v2549, %v3076
      %v3109 = vadd.f32 %v2551, %v3078
      %3110 = vmatprep.subr.bf16.mxu0 %v1824
      %3111 = vmatpush1.bf16.msra.mxu0 %v1823
      %3112 = vmatprep.subr.bf16.mxu0 %v1828
      %3113 = vmatpush1.bf16.msra.mxu0 %v1827
      %3114 = vmatprep.subr.bf16.mxu0 %v1832
      %3115 = vmatpush1.bf16.msra.mxu0 %v1831
      %3116 = vmatprep.subr.bf16.mxu0 %v1836
      %3117 = vmatpush1.bf16.msra.mxu0 %v1835
      %3118 = vmatprep.subr.bf16.mxu0 %v1840
      %3119 = vmatpush1.bf16.msra.mxu0 %v1839
      %3120 = vmatprep.subr.bf16.mxu0 %v1844
      %3121 = vmatpush1.bf16.msra.mxu0 %v1843
      %3122 = vmatprep.subr.bf16.mxu0 %v1848
      %3123 = vmatpush1.bf16.msra.mxu0 %v1847
      %3124 = vmatprep.subr.bf16.mxu0 %v1852
      %3125 = vmatpush1.bf16.msra.mxu0 %v1851
      %3126 = vmatprep.subr.bf16.mxu0 %v1856
      %3127 = vmatpush1.bf16.msra.mxu0 %v1855
      %3128 = vmatprep.subr.bf16.mxu0 %v1860
      %3129 = vmatpush1.bf16.msra.mxu0 %v1859
      %3130 = vmatprep.subr.bf16.mxu0 %v1864
      %3131 = vmatpush1.bf16.msra.mxu0 %v1863
      %3132 = vmatprep.subr.bf16.mxu0 %v1868
      %3133 = vmatpush1.bf16.msra.mxu0 %v1867
      %3134 = vmatprep.subr.bf16.mxu0 %v1872
      %3135 = vmatpush1.bf16.msra.mxu0 %v1871
      %3136 = vmatprep.subr.bf16.mxu0 %v1876
      %3137 = vmatpush1.bf16.msra.mxu0 %v1875
      %3138 = vmatprep.subr.bf16.mxu0 %v1880
      %3139 = vmatpush1.bf16.msra.mxu0 %v1879
      %3140 = vmatprep.subr.bf16.mxu0 %v1884
      %3141 = vmatpush1.bf16.msra.mxu0 %v1883
      %3142 = vmatprep.mubr.bf16.mxu0 %v1487
      %3143 = vmatmul.mubr.bf16.gmra.mrb[0].mxu0 %v1486
      %v3144 = vpop.f32.mrb[0].mxu0
      %v3145 = vadd.f32 0.0, %v3144
      %v3146 = vpop.f32.mrb[0].mxu0
      %v3147 = vadd.f32 0.0, %v3146
      %v3148 = vpop.f32.mrb[0].mxu0
      %v3149 = vadd.f32 0.0, %v3148
      %v3150 = vpop.f32.mrb[0].mxu0
      %v3151 = vadd.f32 0.0, %v3150
      %3152 = vmatprep.mubr.bf16.mxu0 %v1489
      %3153 = vmatmul.mubr.bf16.gmra.mrb[0].mxu0 %v1488
      %v3154 = vpop.f32.mrb[0].mxu0
      %v3155 = vadd.f32 0.0, %v3154
      %v3156 = vpop.f32.mrb[0].mxu0
      %v3157 = vadd.f32 0.0, %v3156
      %v3158 = vpop.f32.mrb[0].mxu0
      %v3159 = vadd.f32 0.0, %v3158
      %v3160 = vpop.f32.mrb[0].mxu0
      %v3161 = vadd.f32 0.0, %v3160
      %3162 = vmatprep.mubr.bf16.mxu0 %v1491
      %3163 = vmatmul.mubr.bf16.gmra.mrb[0].mxu0 %v1490
      %v3164 = vpop.f32.mrb[0].mxu0
      %v3165 = vadd.f32 0.0, %v3164
      %v3166 = vpop.f32.mrb[0].mxu0
      %v3167 = vadd.f32 0.0, %v3166
      %v3168 = vpop.f32.mrb[0].mxu0
      %v3169 = vadd.f32 0.0, %v3168
      %v3170 = vpop.f32.mrb[0].mxu0
      %v3171 = vadd.f32 0.0, %v3170
      %3172 = vmatprep.mubr.bf16.mxu0 %v1493
      %3173 = vmatmul.mubr.bf16.gmra.mrb[0].mxu0 %v1492
      %v3174 = vpop.f32.mrb[0].mxu0
      %v3175 = vadd.f32 0.0, %v3174
      %v3176 = vpop.f32.mrb[0].mxu0
      %v3177 = vadd.f32 0.0, %v3176
      %v3178 = vpop.f32.mrb[0].mxu0
      %v3179 = vpop.f32.mrb[0].mxu0
      %3180 = vdwg.mxu0
      %3181 = vmatprep.subr.bf16.mxu0 %v1826
      %3182 = vmatpush1.bf16.msra.mxu0 %v1825
      %3183 = vmatprep.subr.bf16.mxu0 %v1830
      %3184 = vmatpush1.bf16.msra.mxu0 %v1829
      %3185 = vmatprep.subr.bf16.mxu0 %v1834
      %3186 = vmatpush1.bf16.msra.mxu0 %v1833
      %3187 = vmatprep.subr.bf16.mxu0 %v1838
      %3188 = vmatpush1.bf16.msra.mxu0 %v1837
      %3189 = vmatprep.subr.bf16.mxu0 %v1842
      %3190 = vmatpush1.bf16.msra.mxu0 %v1841
      %3191 = vmatprep.subr.bf16.mxu0 %v1846
      %3192 = vmatpush1.bf16.msra.mxu0 %v1845
      %3193 = vmatprep.subr.bf16.mxu0 %v1850
      %3194 = vmatpush1.bf16.msra.mxu0 %v1849
      %3195 = vmatprep.subr.bf16.mxu0 %v1854
      %3196 = vmatpush1.bf16.msra.mxu0 %v1853
      %3197 = vmatprep.subr.bf16.mxu0 %v1858
      %3198 = vmatpush1.bf16.msra.mxu0 %v1857
      %3199 = vmatprep.subr.bf16.mxu0 %v1862
      %3200 = vmatpush1.bf16.msra.mxu0 %v1861
      %3201 = vmatprep.subr.bf16.mxu0 %v1866
      %3202 = vmatpush1.bf16.msra.mxu0 %v1865
      %3203 = vmatprep.subr.bf16.mxu0 %v1870
      %3204 = vmatpush1.bf16.msra.mxu0 %v1869
      %3205 = vmatprep.subr.bf16.mxu0 %v1874
      %3206 = vmatpush1.bf16.msra.mxu0 %v1873
      %3207 = vmatprep.subr.bf16.mxu0 %v1878
      %3208 = vmatpush1.bf16.msra.mxu0 %v1877
      %3209 = vmatprep.subr.bf16.mxu0 %v1882
      %3210 = vmatpush1.bf16.msra.mxu0 %v1881
      %3211 = vmatprep.subr.bf16.mxu0 %v1886
      %3212 = vmatpush1.bf16.msra.mxu0 %v1885
      %3213 = vmatprep.mubr.bf16.mxu0 %v1487
      %3214 = vmatmul.mubr.bf16.gmra.mrb[0].mxu0 %v1486
      %v3215 = vpop.f32.mrb[0].mxu0
      %v3216 = vadd.f32 0.0, %v3215
      %v3217 = vpop.f32.mrb[0].mxu0
      %v3218 = vadd.f32 0.0, %v3217
      %v3219 = vpop.f32.mrb[0].mxu0
      %v3220 = vadd.f32 0.0, %v3219
      %v3221 = vpop.f32.mrb[0].mxu0
      %v3222 = vadd.f32 0.0, %v3221
      %3223 = vmatprep.mubr.bf16.mxu0 %v1489
      %3224 = vmatmul.mubr.bf16.gmra.mrb[0].mxu0 %v1488
      %v3225 = vpop.f32.mrb[0].mxu0
      %v3226 = vadd.f32 0.0, %v3225
      %v3227 = vpop.f32.mrb[0].mxu0
      %v3228 = vadd.f32 0.0, %v3227
      %v3229 = vpop.f32.mrb[0].mxu0
      %v3230 = vadd.f32 0.0, %v3229
      %v3231 = vpop.f32.mrb[0].mxu0
      %v3232 = vadd.f32 0.0, %v3231
      %3233 = vmatprep.mubr.bf16.mxu0 %v1491
      %3234 = vmatmul.mubr.bf16.gmra.mrb[0].mxu0 %v1490
      %v3235 = vpop.f32.mrb[0].mxu0
      %v3236 = vadd.f32 0.0, %v3235
      %v3237 = vpop.f32.mrb[0].mxu0
      %v3238 = vadd.f32 0.0, %v3237
      %v3239 = vpop.f32.mrb[0].mxu0
      %v3240 = vadd.f32 0.0, %v3239
      %v3241 = vpop.f32.mrb[0].mxu0
      %v3242 = vadd.f32 0.0, %v3241
      %3243 = vmatprep.mubr.bf16.mxu0 %v1493
      %3244 = vmatmul.mubr.bf16.gmra.mrb[0].mxu0 %v1492
      %v3245 = vpop.f32.mrb[0].mxu0
      %v3246 = vadd.f32 0.0, %v3245
      %v3247 = vpop.f32.mrb[0].mxu0
      %v3248 = vadd.f32 0.0, %v3247
      %v3249 = vpop.f32.mrb[0].mxu0
      %v3250 = vpop.f32.mrb[0].mxu0
      %3251 = vdwg.mxu0
      %3252 = vmatprep.subr.bf16.mxu0 %v2286
      %3253 = vmatpush1.bf16.msra.mxu0 %v2285
      %3254 = vmatprep.subr.bf16.mxu0 %v2290
      %3255 = vmatpush1.bf16.msra.mxu0 %v2289
      %3256 = vmatprep.subr.bf16.mxu0 %v2294
      %3257 = vmatpush1.bf16.msra.mxu0 %v2293
      %3258 = vmatprep.subr.bf16.mxu0 %v2298
      %3259 = vmatpush1.bf16.msra.mxu0 %v2297
      %3260 = vmatprep.subr.bf16.mxu0 %v2302
      %3261 = vmatpush1.bf16.msra.mxu0 %v2301
      %3262 = vmatprep.subr.bf16.mxu0 %v2306
      %3263 = vmatpush1.bf16.msra.mxu0 %v2305
      %3264 = vmatprep.subr.bf16.mxu0 %v2310
      %3265 = vmatpush1.bf16.msra.mxu0 %v2309
      %3266 = vmatprep.subr.bf16.mxu0 %v2314
      %3267 = vmatpush1.bf16.msra.mxu0 %v2313
      %3268 = vmatprep.subr.bf16.mxu0 %v2318
      %3269 = vmatpush1.bf16.msra.mxu0 %v2317
      %3270 = vmatprep.subr.bf16.mxu0 %v2322
      %3271 = vmatpush1.bf16.msra.mxu0 %v2321
      %3272 = vmatprep.subr.bf16.mxu0 %v2326
      %3273 = vmatpush1.bf16.msra.mxu0 %v2325
      %3274 = vmatprep.subr.bf16.mxu0 %v2330
      %3275 = vmatpush1.bf16.msra.mxu0 %v2329
      %3276 = vmatprep.subr.bf16.mxu0 %v2334
      %3277 = vmatpush1.bf16.msra.mxu0 %v2333
      %3278 = vmatprep.subr.bf16.mxu0 %v2338
      %3279 = vmatpush1.bf16.msra.mxu0 %v2337
      %3280 = vmatprep.subr.bf16.mxu0 %v2342
      %3281 = vmatpush1.bf16.msra.mxu0 %v2341
      %3282 = vmatprep.subr.bf16.mxu0 %v2346
      %3283 = vmatpush1.bf16.msra.mxu0 %v2345
      %3284 = vmatprep.mubr.bf16.mxu0 %v1479
      %3285 = vmatmul.mubr.bf16.gmra.mrb[0].mxu0 %v1478
      %v3286 = vpop.f32.mrb[0].mxu0
      %v3287 = vadd.f32 %v3145, %v3286
      %v3288 = vpop.f32.mrb[0].mxu0
      %v3289 = vadd.f32 %v3147, %v3288
      %v3290 = vpop.f32.mrb[0].mxu0
      %v3291 = vadd.f32 %v3149, %v3290
      %v3292 = vpop.f32.mrb[0].mxu0
      %v3293 = vadd.f32 %v3151, %v3292
      %3294 = vmatprep.mubr.bf16.mxu0 %v1481
      %3295 = vmatmul.mubr.bf16.gmra.mrb[0].mxu0 %v1480
      %v3296 = vpop.f32.mrb[0].mxu0
      %v3297 = vadd.f32 %v3155, %v3296
      %v3298 = vpop.f32.mrb[0].mxu0
      %v3299 = vadd.f32 %v3157, %v3298
      %v3300 = vpop.f32.mrb[0].mxu0
      %v3301 = vadd.f32 %v3159, %v3300
      %v3302 = vpop.f32.mrb[0].mxu0
      %v3303 = vadd.f32 %v3161, %v3302
      %3304 = vmatprep.mubr.bf16.mxu0 %v1483
      %3305 = vmatmul.mubr.bf16.gmra.mrb[0].mxu0 %v1482
      %v3306 = vpop.f32.mrb[0].mxu0
      %v3307 = vadd.f32 %v3165, %v3306
      %v3308 = vpop.f32.mrb[0].mxu0
      %v3309 = vadd.f32 %v3167, %v3308
      %v3310 = vpop.f32.mrb[0].mxu0
      %v3311 = vadd.f32 %v3169, %v3310
      %v3312 = vpop.f32.mrb[0].mxu0
      %v3313 = vadd.f32 %v3171, %v3312
      %3314 = vmatprep.mubr.bf16.mxu0 %v1485
      %3315 = vmatmul.mubr.bf16.gmra.mrb[0].mxu0 %v1484
      %v3316 = vpop.f32.mrb[0].mxu0
      %v3317 = vadd.f32 %v3175, %v3316
      %v3318 = vpop.f32.mrb[0].mxu0
      %v3319 = vadd.f32 %v3177, %v3318
      %v3320 = vpop.f32.mrb[0].mxu0
      %v3321 = vpop.f32.mrb[0].mxu0
      %3322 = vdwg.mxu0
      %3323 = vmatprep.subr.bf16.mxu0 %v2288
      %3324 = vmatpush1.bf16.msra.mxu0 %v2287
      %3325 = vmatprep.subr.bf16.mxu0 %v2292
      %3326 = vmatpush1.bf16.msra.mxu0 %v2291
      %3327 = vmatprep.subr.bf16.mxu0 %v2296
      %3328 = vmatpush1.bf16.msra.mxu0 %v2295
      %3329 = vmatprep.subr.bf16.mxu0 %v2300
      %3330 = vmatpush1.bf16.msra.mxu0 %v2299
      %3331 = vmatprep.subr.bf16.mxu0 %v2304
      %3332 = vmatpush1.bf16.msra.mxu0 %v2303
      %3333 = vmatprep.subr.bf16.mxu0 %v2308
      %3334 = vmatpush1.bf16.msra.mxu0 %v2307
      %3335 = vmatprep.subr.bf16.mxu0 %v2312
      %3336 = vmatpush1.bf16.msra.mxu0 %v2311
      %3337 = vmatprep.subr.bf16.mxu0 %v2316
      %3338 = vmatpush1.bf16.msra.mxu0 %v2315
      %3339 = vmatprep.subr.bf16.mxu0 %v2320
      %3340 = vmatpush1.bf16.msra.mxu0 %v2319
      %3341 = vmatprep.subr.bf16.mxu0 %v2324
      %3342 = vmatpush1.bf16.msra.mxu0 %v2323
      %3343 = vmatprep.subr.bf16.mxu0 %v2328
      %3344 = vmatpush1.bf16.msra.mxu0 %v2327
      %3345 = vmatprep.subr.bf16.mxu0 %v2332
      %3346 = vmatpush1.bf16.msra.mxu0 %v2331
      %3347 = vmatprep.subr.bf16.mxu0 %v2336
      %3348 = vmatpush1.bf16.msra.mxu0 %v2335
      %3349 = vmatprep.subr.bf16.mxu0 %v2340
      %3350 = vmatpush1.bf16.msra.mxu0 %v2339
      %3351 = vmatprep.subr.bf16.mxu0 %v2344
      %3352 = vmatpush1.bf16.msra.mxu0 %v2343
      %3353 = vmatprep.subr.bf16.mxu0 %v2348
      %3354 = vmatpush1.bf16.msra.mxu0 %v2347
      %3355 = vmatprep.mubr.bf16.mxu0 %v1479
      %3356 = vmatmul.mubr.bf16.gmra.mrb[0].mxu0 %v1478
      %v3357 = vpop.f32.mrb[0].mxu0
      %v3358 = vadd.f32 %v3216, %v3357
      %v3359 = vpop.f32.mrb[0].mxu0
      %v3360 = vadd.f32 %v3218, %v3359
      %v3361 = vpop.f32.mrb[0].mxu0
      %v3362 = vadd.f32 %v3220, %v3361
      %v3363 = vpop.f32.mrb[0].mxu0
      %v3364 = vadd.f32 %v3222, %v3363
      %3365 = vmatprep.mubr.bf16.mxu0 %v1481
      %3366 = vmatmul.mubr.bf16.gmra.mrb[0].mxu0 %v1480
      %v3367 = vpop.f32.mrb[0].mxu0
      %v3368 = vadd.f32 %v3226, %v3367
      %v3369 = vpop.f32.mrb[0].mxu0
      %v3370 = vadd.f32 %v3228, %v3369
      %v3371 = vpop.f32.mrb[0].mxu0
      %v3372 = vadd.f32 %v3230, %v3371
      %v3373 = vpop.f32.mrb[0].mxu0
      %v3374 = vadd.f32 %v3232, %v3373
      %3375 = vmatprep.mubr.bf16.mxu0 %v1483
      %3376 = vmatmul.mubr.bf16.gmra.mrb[0].mxu0 %v1482
      %v3377 = vpop.f32.mrb[0].mxu0
      %v3378 = vadd.f32 %v3236, %v3377
      %v3379 = vpop.f32.mrb[0].mxu0
      %v3380 = vadd.f32 %v3238, %v3379
      %v3381 = vpop.f32.mrb[0].mxu0
      %v3382 = vadd.f32 %v3240, %v3381
      %v3383 = vpop.f32.mrb[0].mxu0
      %v3384 = vadd.f32 %v3242, %v3383
      %3385 = vmatprep.mubr.bf16.mxu0 %v1485
      %3386 = vmatmul.mubr.bf16.gmra.mrb[0].mxu0 %v1484
      %v3387 = vpop.f32.mrb[0].mxu0
      %v3388 = vadd.f32 %v3246, %v3387
      %v3389 = vpop.f32.mrb[0].mxu0
      %v3390 = vadd.f32 %v3248, %v3389
      %v3391 = vpop.f32.mrb[0].mxu0
      %v3392 = vpop.f32.mrb[0].mxu0
      %3393 = vdwg.mxu0
      %3394 = vmatprep.subr.bf16.mxu0 %v2813
      %3395 = vmatpush1.bf16.msra.mxu0 %v2812
      %3396 = vmatprep.subr.bf16.mxu0 %v2817
      %3397 = vmatpush1.bf16.msra.mxu0 %v2816
      %3398 = vmatprep.subr.bf16.mxu0 %v2821
      %3399 = vmatpush1.bf16.msra.mxu0 %v2820
      %3400 = vmatprep.subr.bf16.mxu0 %v2825
      %3401 = vmatpush1.bf16.msra.mxu0 %v2824
      %3402 = vmatprep.subr.bf16.mxu0 %v2829
      %3403 = vmatpush1.bf16.msra.mxu0 %v2828
      %3404 = vmatprep.subr.bf16.mxu0 %v2833
      %3405 = vmatpush1.bf16.msra.mxu0 %v2832
      %3406 = vmatprep.subr.bf16.mxu0 %v2837
      %3407 = vmatpush1.bf16.msra.mxu0 %v2836
      %3408 = vmatprep.subr.bf16.mxu0 %v2841
      %3409 = vmatpush1.bf16.msra.mxu0 %v2840
      %3410 = vmatprep.subr.bf16.mxu0 %v2845
      %3411 = vmatpush1.bf16.msra.mxu0 %v2844
      %3412 = vmatprep.subr.bf16.mxu0 %v2849
      %3413 = vmatpush1.bf16.msra.mxu0 %v2848
      %3414 = vmatprep.subr.bf16.mxu0 %v2853
      %3415 = vmatpush1.bf16.msra.mxu0 %v2852
      %3416 = vmatprep.subr.bf16.mxu0 %v2857
      %3417 = vmatpush1.bf16.msra.mxu0 %v2856
      %3418 = vmatprep.subr.bf16.mxu0 %v2861
      %3419 = vmatpush1.bf16.msra.mxu0 %v2860
      %3420 = vmatprep.subr.bf16.mxu0 %v2865
      %3421 = vmatpush1.bf16.msra.mxu0 %v2864
      %3422 = vmatprep.subr.bf16.mxu0 %v2869
      %3423 = vmatpush1.bf16.msra.mxu0 %v2868
      %3424 = vmatprep.subr.bf16.mxu0 %v2873
      %3425 = vmatpush1.bf16.msra.mxu0 %v2872
      %3426 = vmatprep.mubr.bf16.mxu0 %v1495
      %3427 = vmatmul.mubr.bf16.gmra.mrb[0].mxu0 %v1494
      %v3428 = vpop.f32.mrb[0].mxu0
      %v3429 = vadd.f32 0.0, %v3428
      %v3430 = vpop.f32.mrb[0].mxu0
      %v3431 = vadd.f32 0.0, %v3430
      %v3432 = vpop.f32.mrb[0].mxu0
      %v3433 = vadd.f32 0.0, %v3432
      %v3434 = vpop.f32.mrb[0].mxu0
      %v3435 = vadd.f32 0.0, %v3434
      %3436 = vmatprep.mubr.bf16.mxu0 %v1497
      %3437 = vmatmul.mubr.bf16.gmra.mrb[0].mxu0 %v1496
      %v3438 = vpop.f32.mrb[0].mxu0
      %v3439 = vadd.f32 0.0, %v3438
      %v3440 = vpop.f32.mrb[0].mxu0
      %v3441 = vadd.f32 0.0, %v3440
      %v3442 = vpop.f32.mrb[0].mxu0
      %v3443 = vadd.f32 0.0, %v3442
      %v3444 = vpop.f32.mrb[0].mxu0
      %v3445 = vadd.f32 0.0, %v3444
      %3446 = vmatprep.mubr.bf16.mxu0 %v1499
      %3447 = vmatmul.mubr.bf16.gmra.mrb[0].mxu0 %v1498
      %v3448 = vpop.f32.mrb[0].mxu0
      %v3449 = vadd.f32 0.0, %v3448
      %v3450 = vpop.f32.mrb[0].mxu0
      %v3451 = vadd.f32 0.0, %v3450
      %v3452 = vpop.f32.mrb[0].mxu0
      %v3453 = vadd.f32 0.0, %v3452
      %v3454 = vpop.f32.mrb[0].mxu0
      %v3455 = vadd.f32 0.0, %v3454
      %3456 = vmatprep.mubr.bf16.mxu0 %v1501
      %3457 = vmatmul.mubr.bf16.gmra.mrb[0].mxu0 %v1500
      %v3458 = vpop.f32.mrb[0].mxu0
      %v3459 = vadd.f32 0.0, %v3458
      %v3460 = vpop.f32.mrb[0].mxu0
      %v3461 = vadd.f32 0.0, %v3460
      %v3462 = vpop.f32.mrb[0].mxu0
      %v3463 = vpop.f32.mrb[0].mxu0
      %3464 = vdwg.mxu0
      %3465 = vmatprep.subr.bf16.mxu0 %v2815
      %3466 = vmatpush1.bf16.msra.mxu0 %v2814
      %3467 = vmatprep.subr.bf16.mxu0 %v2819
      %3468 = vmatpush1.bf16.msra.mxu0 %v2818
      %3469 = vmatprep.subr.bf16.mxu0 %v2823
      %3470 = vmatpush1.bf16.msra.mxu0 %v2822
      %3471 = vmatprep.subr.bf16.mxu0 %v2827
      %3472 = vmatpush1.bf16.msra.mxu0 %v2826
      %3473 = vmatprep.subr.bf16.mxu0 %v2831
      %3474 = vmatpush1.bf16.msra.mxu0 %v2830
      %3475 = vmatprep.subr.bf16.mxu0 %v2835
      %3476 = vmatpush1.bf16.msra.mxu0 %v2834
      %3477 = vmatprep.subr.bf16.mxu0 %v2839
      %3478 = vmatpush1.bf16.msra.mxu0 %v2838
      %3479 = vmatprep.subr.bf16.mxu0 %v2843
      %3480 = vmatpush1.bf16.msra.mxu0 %v2842
      %3481 = vmatprep.subr.bf16.mxu0 %v2847
      %3482 = vmatpush1.bf16.msra.mxu0 %v2846
      %3483 = vmatprep.subr.bf16.mxu0 %v2851
      %3484 = vmatpush1.bf16.msra.mxu0 %v2850
      %3485 = vmatprep.subr.bf16.mxu0 %v2855
      %3486 = vmatpush1.bf16.msra.mxu0 %v2854
      %3487 = vmatprep.subr.bf16.mxu0 %v2859
      %3488 = vmatpush1.bf16.msra.mxu0 %v2858
      %3489 = vmatprep.subr.bf16.mxu0 %v2863
      %3490 = vmatpush1.bf16.msra.mxu0 %v2862
      %3491 = vmatprep.subr.bf16.mxu0 %v2867
      %3492 = vmatpush1.bf16.msra.mxu0 %v2866
      %3493 = vmatprep.subr.bf16.mxu0 %v2871
      %3494 = vmatpush1.bf16.msra.mxu0 %v2870
      %3495 = vmatprep.subr.bf16.mxu0 %v2875
      %3496 = vmatpush1.bf16.msra.mxu0 %v2874
      %3497 = vmatprep.mubr.bf16.mxu0 %v1495
      %3498 = vmatmul.mubr.bf16.gmra.mrb[0].mxu0 %v1494
      %v3499 = vpop.f32.mrb[0].mxu0
      %v3500 = vadd.f32 0.0, %v3499
      %v3501 = vpop.f32.mrb[0].mxu0
      %v3502 = vadd.f32 0.0, %v3501
      %v3503 = vpop.f32.mrb[0].mxu0
      %v3504 = vadd.f32 0.0, %v3503
      %v3505 = vpop.f32.mrb[0].mxu0
      %v3506 = vadd.f32 0.0, %v3505
      %3507 = vmatprep.mubr.bf16.mxu0 %v1497
      %3508 = vmatmul.mubr.bf16.gmra.mrb[0].mxu0 %v1496
      %v3509 = vpop.f32.mrb[0].mxu0
      %v3510 = vadd.f32 0.0, %v3509
      %v3511 = vpop.f32.mrb[0].mxu0
      %v3512 = vadd.f32 0.0, %v3511
      %v3513 = vpop.f32.mrb[0].mxu0
      %v3514 = vadd.f32 0.0, %v3513
      %v3515 = vpop.f32.mrb[0].mxu0
      %v3516 = vadd.f32 0.0, %v3515
      %3517 = vmatprep.mubr.bf16.mxu0 %v1499
      %3518 = vmatmul.mubr.bf16.gmra.mrb[0].mxu0 %v1498
      %v3519 = vpop.f32.mrb[0].mxu0
      %v3520 = vadd.f32 0.0, %v3519
      %v3521 = vpop.f32.mrb[0].mxu0
      %v3522 = vadd.f32 0.0, %v3521
      %v3523 = vpop.f32.mrb[0].mxu0
      %v3524 = vadd.f32 0.0, %v3523
      %v3525 = vpop.f32.mrb[0].mxu0
      %v3526 = vadd.f32 0.0, %v3525
      %3527 = vmatprep.mubr.bf16.mxu0 %v1501
      %3528 = vmatmul.mubr.bf16.gmra.mrb[0].mxu0 %v1500
      %v3529 = vpop.f32.mrb[0].mxu0
      %v3530 = vadd.f32 0.0, %v3529
      %v3531 = vpop.f32.mrb[0].mxu0
      %v3532 = vadd.f32 0.0, %v3531
      %v3533 = vpop.f32.mrb[0].mxu0
      %v3534 = vpop.f32.mrb[0].mxu0
      %3535 = vdwg.mxu0
      %v3536 = vadd.f32 %v3287, %v3429
      %v3537 = vadd.f32 %v3289, %v3431
      %v3538 = vadd.f32 %v3358, %v3500
      %v3539 = vadd.f32 %v3360, %v3502
      %v3540 = vadd.f32 %v3291, %v3433
      %v3541 = vadd.f32 %v3293, %v3435
      %v3542 = vadd.f32 %v3362, %v3504
      %v3543 = vadd.f32 %v3364, %v3506
      %v3544 = vadd.f32 %v3297, %v3439
      %v3545 = vadd.f32 %v3299, %v3441
      %v3546 = vadd.f32 %v3368, %v3510
      %v3547 = vadd.f32 %v3370, %v3512
      %v3548 = vadd.f32 %v3301, %v3443
      %v3549 = vadd.f32 %v3303, %v3445
      %v3550 = vadd.f32 %v3372, %v3514
      %v3551 = vadd.f32 %v3374, %v3516
      %v3552 = vadd.f32 %v3307, %v3449
      %v3553 = vadd.f32 %v3309, %v3451
      %v3554 = vadd.f32 %v3378, %v3520
      %v3555 = vadd.f32 %v3380, %v3522
      %v3556 = vadd.f32 %v3311, %v3453
      %v3557 = vadd.f32 %v3313, %v3455
      %v3558 = vadd.f32 %v3382, %v3524
      %v3559 = vadd.f32 %v3384, %v3526
      %v3560 = vadd.f32 %v3317, %v3459
      %v3561 = vadd.f32 %v3319, %v3461
      %v3562 = vadd.f32 %v3388, %v3530
      %v3563 = vadd.f32 %v3390, %v3532
      %v3564 = vmax.f32 %v3082, %v3536
      %v3565 = vmax.f32 %v3083, %v3537
      %v3566 = vmax.f32 %v3084, %v3538
      %v3567 = vmax.f32 %v3085, %v3539
      %v3568 = vmax.f32 %v3086, %v3540
      %v3569 = vmax.f32 %v3087, %v3541
      %v3570 = vmax.f32 %v3088, %v3542
      %v3571 = vmax.f32 %v3089, %v3543
      %v3572 = vmax.f32 %v3090, %v3544
      %v3573 = vmax.f32 %v3091, %v3545
      %v3574 = vmax.f32 %v3092, %v3546
      %v3575 = vmax.f32 %v3093, %v3547
      %v3576 = vmax.f32 %v3094, %v3548
      %v3577 = vmax.f32 %v3095, %v3549
      %v3578 = vmax.f32 %v3096, %v3550
      %v3579 = vmax.f32 %v3097, %v3551
      %v3580 = vmax.f32 %v3098, %v3552
      %v3581 = vmax.f32 %v3099, %v3553
      %v3582 = vmax.f32 %v3100, %v3554
      %v3583 = vmax.f32 %v3101, %v3555
      %v3584 = vmax.f32 %v3102, %v3556
      %v3585 = vmax.f32 %v3103, %v3557
      %v3586 = vmax.f32 %v3104, %v3558
      %v3587 = vmax.f32 %v3105, %v3559
      %v3588 = vmax.f32 %v3106, %v3560
      %v3589 = vmax.f32 %v3107, %v3561
      %v3590 = vmax.f32 %v3108, %v3562
      %v3591 = vmax.f32 %v3109, %v3563
      %v3592 = vmax.f32 %v3564, %v3566
      %v3593 = vmax.f32 %v3565, %v3567
      %v3594 = vmax.f32 %v3568, %v3570
      %v3595 = vmax.f32 %v3569, %v3571
      %v3596 = vmax.f32 %v3572, %v3574
      %v3597 = vmax.f32 %v3573, %v3575
      %v3598 = vmax.f32 %v3576, %v3578
      %v3599 = vmax.f32 %v3577, %v3579
      %v3600 = vmax.f32 %v3580, %v3582
      %v3601 = vmax.f32 %v3581, %v3583
      %v3602 = vmax.f32 %v3584, %v3586
      %v3603 = vmax.f32 %v3585, %v3587
      %v3604 = vmax.f32 %v3588, %v3590
      %v3605 = vmax.f32 %v3589, %v3591
      %v3606 = vld [vmem:[%s4] sm:$0x3]
      %v3608 = vlaneseq
      %v3609 = vshrl.u32 %v3608, 7
      %v3610 = vsub.s32 0, %v3609
      %v3611 = vrot.slane %v3606, %v3610
      %v3612 = vlaneseq
      %v3613 = vshrl.u32 %v3612, 7
      %v3614 = vsub.s32 1, %v3613
      %v3615 = vrot.slane %v3606, %v3614
      %v3618 = vadd.f32 %v3592, %v3611
      %v3619 = vadd.f32 %v3593, %v3615
      %v3620 = vadd.f32 %v3594, %v3611
      %v3621 = vadd.f32 %v3595, %v3615
      %v3622 = vadd.f32 %v3596, %v3611
      %v3623 = vadd.f32 %v3597, %v3615
      %v3624 = vadd.f32 %v3598, %v3611
      %v3625 = vadd.f32 %v3599, %v3615
      %v3626 = vadd.f32 %v3600, %v3611
      %v3627 = vadd.f32 %v3601, %v3615
      %v3628 = vadd.f32 %v3602, %v3611
      %v3629 = vadd.f32 %v3603, %v3615
      %v3630 = vadd.f32 %v3604, %v3611
      %v3631 = vadd.f32 %v3605, %v3615
      %v3632 = vmax.f32 %v3618, 0.0
      %v3633 = vmax.f32 %v3619, 0.0
      %v3634 = vmax.f32 %v3620, 0.0
      %v3635 = vmax.f32 %v3621, 0.0
      %v3636 = vmax.f32 %v3622, 0.0
      %v3637 = vmax.f32 %v3623, 0.0
      %v3638 = vmax.f32 %v3624, 0.0
      %v3639 = vmax.f32 %v3625, 0.0
      %v3640 = vmax.f32 %v3626, 0.0
      %v3641 = vmax.f32 %v3627, 0.0
      %v3642 = vmax.f32 %v3628, 0.0
      %v3643 = vmax.f32 %v3629, 0.0
      %v3644 = vmax.f32 %v3630, 0.0
      %v3645 = vmax.f32 %v3631, 0.0
      %v3646 = vpack.c.bf16 %v3632, %v3632
      %v3647 = vpack.c.bf16 %v3633, %v3633
      %v3648 = vld [vmem:[%s5] sm:$0xf]
      %v3649 = vld [vmem:[%s5 + $0x4] sm:$0xf]
      %v3650 = vld [vmem:[%s5 + $0x8] sm:$0xf]
      %v3651 = vld [vmem:[%s5 + $0xc] sm:$0xf]
      %v3652 = vld [vmem:[%s5 + $0x10] sm:$0xf]
      %v3653 = vld [vmem:[%s5 + $0x14] sm:$0xf]
      %v3654 = vld [vmem:[%s5 + $0x18] sm:$0xf]
      %v3655 = vld [vmem:[%s5 + $0x1c] sm:$0xf]
      %v3656 = vld [vmem:[%s5 + $0x20] sm:$0xf]
      %v3657 = vld [vmem:[%s5 + $0x24] sm:$0xf]
      %v3658 = vld [vmem:[%s5 + $0x28] sm:$0xf]
      %v3659 = vld [vmem:[%s5 + $0x2c] sm:$0xf]
      %v3660 = vld [vmem:[%s5 + $0x30] sm:$0xf]
      %v3661 = vld [vmem:[%s5 + $0x34] sm:$0xf]
      %v3662 = vld [vmem:[%s5 + $0x38] sm:$0xf]
      %v3663 = vld [vmem:[%s5 + $0x3c] sm:$0xf]
      %v3664 = vld [vmem:[%s5 + $0x40] sm:$0xf]
      %v3665 = vld [vmem:[%s5 + $0x44] sm:$0xf]
      %v3666 = vld [vmem:[%s5 + $0x48] sm:$0xf]
      %v3667 = vld [vmem:[%s5 + $0x4c] sm:$0xf]
      %v3668 = vld [vmem:[%s5 + $0x50] sm:$0xf]
      %v3669 = vld [vmem:[%s5 + $0x54] sm:$0xf]
      %v3670 = vld [vmem:[%s5 + $0x58] sm:$0xf]
      %v3671 = vld [vmem:[%s5 + $0x5c] sm:$0xf]
      %v3672 = vld [vmem:[%s5 + $0x60] sm:$0xf]
      %v3673 = vld [vmem:[%s5 + $0x64] sm:$0xf]
      %v3674 = vld [vmem:[%s5 + $0x68] sm:$0xf]
      %v3675 = vld [vmem:[%s5 + $0x6c] sm:$0xf]
      %v3676 = vld [vmem:[%s5 + $0x70] sm:$0xf]
      %v3677 = vld [vmem:[%s5 + $0x74] sm:$0xf]
      %v3678 = vld [vmem:[%s5 + $0x78] sm:$0xf]
      %v3679 = vld [vmem:[%s5 + $0x7c] sm:$0xf]
      %v3680 = vpack.c.bf16 %v3634, %v3634
      %v3681 = vpack.c.bf16 %v3635, %v3635
      %s3682 = scalar_lea.vmem %s5, 128
      %v3683 = vld [vmem:[%s3682] sm:$0xf]
      %v3684 = vld [vmem:[%s3682 + $0x4] sm:$0xf]
      %v3685 = vld [vmem:[%s3682 + $0x8] sm:$0xf]
      %v3686 = vld [vmem:[%s3682 + $0xc] sm:$0xf]
      %v3687 = vld [vmem:[%s3682 + $0x10] sm:$0xf]
      %v3688 = vld [vmem:[%s3682 + $0x14] sm:$0xf]
      %v3689 = vld [vmem:[%s3682 + $0x18] sm:$0xf]
      %v3690 = vld [vmem:[%s3682 + $0x1c] sm:$0xf]
      %v3691 = vld [vmem:[%s3682 + $0x20] sm:$0xf]
      %v3692 = vld [vmem:[%s3682 + $0x24] sm:$0xf]
      %v3693 = vld [vmem:[%s3682 + $0x28] sm:$0xf]
      %v3694 = vld [vmem:[%s3682 + $0x2c] sm:$0xf]
      %v3695 = vld [vmem:[%s3682 + $0x30] sm:$0xf]
      %v3696 = vld [vmem:[%s3682 + $0x34] sm:$0xf]
      %v3697 = vld [vmem:[%s3682 + $0x38] sm:$0xf]
      %v3698 = vld [vmem:[%s3682 + $0x3c] sm:$0xf]
      %v3699 = vld [vmem:[%s3682 + $0x40] sm:$0xf]
      %v3700 = vld [vmem:[%s3682 + $0x44] sm:$0xf]
      %v3701 = vld [vmem:[%s3682 + $0x48] sm:$0xf]
      %v3702 = vld [vmem:[%s3682 + $0x4c] sm:$0xf]
      %v3703 = vld [vmem:[%s3682 + $0x50] sm:$0xf]
      %v3704 = vld [vmem:[%s3682 + $0x54] sm:$0xf]
      %v3705 = vld [vmem:[%s3682 + $0x58] sm:$0xf]
      %v3706 = vld [vmem:[%s3682 + $0x5c] sm:$0xf]
      %v3707 = vld [vmem:[%s3682 + $0x60] sm:$0xf]
      %v3708 = vld [vmem:[%s3682 + $0x64] sm:$0xf]
      %v3709 = vld [vmem:[%s3682 + $0x68] sm:$0xf]
      %v3710 = vld [vmem:[%s3682 + $0x6c] sm:$0xf]
      %v3711 = vld [vmem:[%s3682 + $0x70] sm:$0xf]
      %v3712 = vld [vmem:[%s3682 + $0x74] sm:$0xf]
      %v3713 = vld [vmem:[%s3682 + $0x78] sm:$0xf]
      %v3714 = vld [vmem:[%s3682 + $0x7c] sm:$0xf]
      %v3747 = vunpack.c.l.b16 %v3683
      %v3748 = vunpack.c.l.b16 %v3684
      %v3749 = vunpack.c.l.b16 %v3685
      %v3750 = vunpack.c.l.b16 %v3686
      %v3751 = vunpack.c.l.b16 %v3687
      %v3752 = vunpack.c.l.b16 %v3688
      %v3753 = vunpack.c.l.b16 %v3689
      %v3754 = vunpack.c.l.b16 %v3690
      %v3755 = vunpack.c.l.b16 %v3691
      %v3756 = vunpack.c.l.b16 %v3692
      %v3757 = vunpack.c.l.b16 %v3693
      %v3758 = vunpack.c.l.b16 %v3694
      %v3759 = vunpack.c.l.b16 %v3695
      %v3760 = vunpack.c.l.b16 %v3696
      %v3761 = vunpack.c.l.b16 %v3697
      %v3762 = vunpack.c.l.b16 %v3698
      %v3763 = vunpack.c.l.b16 %v3699
      %v3764 = vunpack.c.l.b16 %v3700
      %v3765 = vunpack.c.l.b16 %v3701
      %v3766 = vunpack.c.l.b16 %v3702
      %v3767 = vunpack.c.l.b16 %v3703
      %v3768 = vunpack.c.l.b16 %v3704
      %v3769 = vunpack.c.l.b16 %v3705
      %v3770 = vunpack.c.l.b16 %v3706
      %v3771 = vunpack.c.l.b16 %v3707
      %v3772 = vunpack.c.l.b16 %v3708
      %v3773 = vunpack.c.l.b16 %v3709
      %v3774 = vunpack.c.l.b16 %v3710
      %v3775 = vunpack.c.l.b16 %v3711
      %v3776 = vunpack.c.l.b16 %v3712
      %v3777 = vunpack.c.l.b16 %v3713
      %v3778 = vunpack.c.l.b16 %v3714
      %v3779 = vpack.c.b16 %v3748, %v3747
      %v3780 = vpack.c.b16 %v3750, %v3749
      %v3781 = vpack.c.b16 %v3752, %v3751
      %v3782 = vpack.c.b16 %v3754, %v3753
      %v3783 = vpack.c.b16 %v3756, %v3755
      %v3784 = vpack.c.b16 %v3758, %v3757
      %v3785 = vpack.c.b16 %v3760, %v3759
      %v3786 = vpack.c.b16 %v3762, %v3761
      %v3787 = vpack.c.b16 %v3764, %v3763
      %v3788 = vpack.c.b16 %v3766, %v3765
      %v3789 = vpack.c.b16 %v3768, %v3767
      %v3790 = vpack.c.b16 %v3770, %v3769
      %v3791 = vpack.c.b16 %v3772, %v3771
      %v3792 = vpack.c.b16 %v3774, %v3773
      %v3793 = vpack.c.b16 %v3776, %v3775
      %v3794 = vpack.c.b16 %v3778, %v3777
      %3811 = vmatprep.subr.bf16.mxu0 0
      %3812 = vmatpush1.bf16.msra.mxu0 %v3779
      %3813 = vmatprep.subr.bf16.mxu0 0
      %3814 = vmatpush1.bf16.msra.mxu0 %v3780
      %3815 = vmatprep.subr.bf16.mxu0 0
      %3816 = vmatpush1.bf16.msra.mxu0 %v3781
      %3817 = vmatprep.subr.bf16.mxu0 0
      %3818 = vmatpush1.bf16.msra.mxu0 %v3782
      %3819 = vmatprep.subr.bf16.mxu0 0
      %3820 = vmatpush1.bf16.msra.mxu0 %v3783
      %3821 = vmatprep.subr.bf16.mxu0 0
      %3822 = vmatpush1.bf16.msra.mxu0 %v3784
      %3823 = vmatprep.subr.bf16.mxu0 0
      %3824 = vmatpush1.bf16.msra.mxu0 %v3785
      %3825 = vmatprep.subr.bf16.mxu0 0
      %3826 = vmatpush1.bf16.msra.mxu0 %v3786
      %3827 = vmatprep.subr.bf16.mxu0 0
      %3828 = vmatpush1.bf16.msra.mxu0 %v3787
      %3829 = vmatprep.subr.bf16.mxu0 0
      %3830 = vmatpush1.bf16.msra.mxu0 %v3788
      %3831 = vmatprep.subr.bf16.mxu0 0
      %3832 = vmatpush1.bf16.msra.mxu0 %v3789
      %3833 = vmatprep.subr.bf16.mxu0 0
      %3834 = vmatpush1.bf16.msra.mxu0 %v3790
      %3835 = vmatprep.subr.bf16.mxu0 0
      %3836 = vmatpush1.bf16.msra.mxu0 %v3791
      %3837 = vmatprep.subr.bf16.mxu0 0
      %3838 = vmatpush1.bf16.msra.mxu0 %v3792
      %3839 = vmatprep.subr.bf16.mxu0 0
      %3840 = vmatpush1.bf16.msra.mxu0 %v3793
      %3841 = vmatprep.subr.bf16.mxu0 0
      %3842 = vmatpush1.bf16.msra.mxu0 %v3794
      %3843 = vmatprep.mubr.bf16.mxu0 %v3681
      %3844 = vmatmul.mubr.bf16.gmra.mrb[0].mxu0 %v3680
      %v3845 = vpop.f32.mrb[0].mxu0
      %v3846 = vadd.f32 0.0, %v3845
      %v3847 = vpop.f32.mrb[0].mxu0
      %v3848 = vpop.f32.mrb[0].mxu0
      %v3849 = vpop.f32.mrb[0].mxu0
      %3850 = vdwg.mxu0
      %v3883 = vunpack.c.l.b16 %v3648
      %v3884 = vunpack.c.l.b16 %v3649
      %v3885 = vunpack.c.l.b16 %v3650
      %v3886 = vunpack.c.l.b16 %v3651
      %v3887 = vunpack.c.l.b16 %v3652
      %v3888 = vunpack.c.l.b16 %v3653
      %v3889 = vunpack.c.l.b16 %v3654
      %v3890 = vunpack.c.l.b16 %v3655
      %v3891 = vunpack.c.l.b16 %v3656
      %v3892 = vunpack.c.l.b16 %v3657
      %v3893 = vunpack.c.l.b16 %v3658
      %v3894 = vunpack.c.l.b16 %v3659
      %v3895 = vunpack.c.l.b16 %v3660
      %v3896 = vunpack.c.l.b16 %v3661
      %v3897 = vunpack.c.l.b16 %v3662
      %v3898 = vunpack.c.l.b16 %v3663
      %v3899 = vunpack.c.l.b16 %v3664
      %v3900 = vunpack.c.l.b16 %v3665
      %v3901 = vunpack.c.l.b16 %v3666
      %v3902 = vunpack.c.l.b16 %v3667
      %v3903 = vunpack.c.l.b16 %v3668
      %v3904 = vunpack.c.l.b16 %v3669
      %v3905 = vunpack.c.l.b16 %v3670
      %v3906 = vunpack.c.l.b16 %v3671
      %v3907 = vunpack.c.l.b16 %v3672
      %v3908 = vunpack.c.l.b16 %v3673
      %v3909 = vunpack.c.l.b16 %v3674
      %v3910 = vunpack.c.l.b16 %v3675
      %v3911 = vunpack.c.l.b16 %v3676
      %v3912 = vunpack.c.l.b16 %v3677
      %v3913 = vunpack.c.l.b16 %v3678
      %v3914 = vunpack.c.l.b16 %v3679
      %v3915 = vpack.c.b16 %v3884, %v3883
      %v3916 = vpack.c.b16 %v3886, %v3885
      %v3917 = vpack.c.b16 %v3888, %v3887
      %v3918 = vpack.c.b16 %v3890, %v3889
      %v3919 = vpack.c.b16 %v3892, %v3891
      %v3920 = vpack.c.b16 %v3894, %v3893
      %v3921 = vpack.c.b16 %v3896, %v3895
      %v3922 = vpack.c.b16 %v3898, %v3897
      %v3923 = vpack.c.b16 %v3900, %v3899
      %v3924 = vpack.c.b16 %v3902, %v3901
      %v3925 = vpack.c.b16 %v3904, %v3903
      %v3926 = vpack.c.b16 %v3906, %v3905
      %v3927 = vpack.c.b16 %v3908, %v3907
      %v3928 = vpack.c.b16 %v3910, %v3909
      %v3929 = vpack.c.b16 %v3912, %v3911
      %v3930 = vpack.c.b16 %v3914, %v3913
      %3947 = vmatprep.subr.bf16.mxu0 0
      %3948 = vmatpush1.bf16.msra.mxu0 %v3915
      %3949 = vmatprep.subr.bf16.mxu0 0
      %3950 = vmatpush1.bf16.msra.mxu0 %v3916
      %3951 = vmatprep.subr.bf16.mxu0 0
      %3952 = vmatpush1.bf16.msra.mxu0 %v3917
      %3953 = vmatprep.subr.bf16.mxu0 0
      %3954 = vmatpush1.bf16.msra.mxu0 %v3918
      %3955 = vmatprep.subr.bf16.mxu0 0
      %3956 = vmatpush1.bf16.msra.mxu0 %v3919
      %3957 = vmatprep.subr.bf16.mxu0 0
      %3958 = vmatpush1.bf16.msra.mxu0 %v3920
      %3959 = vmatprep.subr.bf16.mxu0 0
      %3960 = vmatpush1.bf16.msra.mxu0 %v3921
      %3961 = vmatprep.subr.bf16.mxu0 0
      %3962 = vmatpush1.bf16.msra.mxu0 %v3922
      %3963 = vmatprep.subr.bf16.mxu0 0
      %3964 = vmatpush1.bf16.msra.mxu0 %v3923
      %3965 = vmatprep.subr.bf16.mxu0 0
      %3966 = vmatpush1.bf16.msra.mxu0 %v3924
      %3967 = vmatprep.subr.bf16.mxu0 0
      %3968 = vmatpush1.bf16.msra.mxu0 %v3925
      %3969 = vmatprep.subr.bf16.mxu0 0
      %3970 = vmatpush1.bf16.msra.mxu0 %v3926
      %3971 = vmatprep.subr.bf16.mxu0 0
      %3972 = vmatpush1.bf16.msra.mxu0 %v3927
      %3973 = vmatprep.subr.bf16.mxu0 0
      %3974 = vmatpush1.bf16.msra.mxu0 %v3928
      %3975 = vmatprep.subr.bf16.mxu0 0
      %3976 = vmatpush1.bf16.msra.mxu0 %v3929
      %3977 = vmatprep.subr.bf16.mxu0 0
      %3978 = vmatpush1.bf16.msra.mxu0 %v3930
      %3979 = vmatprep.mubr.bf16.mxu0 %v3647
      %3980 = vmatmul.mubr.bf16.gmra.mrb[0].mxu0 %v3646
      %v3981 = vpop.f32.mrb[0].mxu0
      %v3982 = vadd.f32 %v3846, %v3981
      %v3983 = vpop.f32.mrb[0].mxu0
      %v3984 = vpop.f32.mrb[0].mxu0
      %v3985 = vpop.f32.mrb[0].mxu0
      %3986 = vdwg.mxu0
      %v3987 = vpack.c.bf16 %v3636, %v3636
      %v3988 = vpack.c.bf16 %v3637, %v3637
      %s3989 = scalar_lea.vmem %s5, 256
      %v3990 = vld [vmem:[%s3989] sm:$0xf]
      %v3991 = vld [vmem:[%s3989 + $0x4] sm:$0xf]
      %v3992 = vld [vmem:[%s3989 + $0x8] sm:$0xf]
      %v3993 = vld [vmem:[%s3989 + $0xc] sm:$0xf]
      %v3994 = vld [vmem:[%s3989 + $0x10] sm:$0xf]
      %v3995 = vld [vmem:[%s3989 + $0x14] sm:$0xf]
      %v3996 = vld [vmem:[%s3989 + $0x18] sm:$0xf]
      %v3997 = vld [vmem:[%s3989 + $0x1c] sm:$0xf]
      %v3998 = vld [vmem:[%s3989 + $0x20] sm:$0xf]
      %v3999 = vld [vmem:[%s3989 + $0x24] sm:$0xf]
      %v4000 = vld [vmem:[%s3989 + $0x28] sm:$0xf]
      %v4001 = vld [vmem:[%s3989 + $0x2c] sm:$0xf]
      %v4002 = vld [vmem:[%s3989 + $0x30] sm:$0xf]
      %v4003 = vld [vmem:[%s3989 + $0x34] sm:$0xf]
      %v4004 = vld [vmem:[%s3989 + $0x38] sm:$0xf]
      %v4005 = vld [vmem:[%s3989 + $0x3c] sm:$0xf]
      %v4006 = vld [vmem:[%s3989 + $0x40] sm:$0xf]
      %v4007 = vld [vmem:[%s3989 + $0x44] sm:$0xf]
      %v4008 = vld [vmem:[%s3989 + $0x48] sm:$0xf]
      %v4009 = vld [vmem:[%s3989 + $0x4c] sm:$0xf]
      %v4010 = vld [vmem:[%s3989 + $0x50] sm:$0xf]
      %v4011 = vld [vmem:[%s3989 + $0x54] sm:$0xf]
      %v4012 = vld [vmem:[%s3989 + $0x58] sm:$0xf]
      %v4013 = vld [vmem:[%s3989 + $0x5c] sm:$0xf]
      %v4014 = vld [vmem:[%s3989 + $0x60] sm:$0xf]
      %v4015 = vld [vmem:[%s3989 + $0x64] sm:$0xf]
      %v4016 = vld [vmem:[%s3989 + $0x68] sm:$0xf]
      %v4017 = vld [vmem:[%s3989 + $0x6c] sm:$0xf]
      %v4018 = vld [vmem:[%s3989 + $0x70] sm:$0xf]
      %v4019 = vld [vmem:[%s3989 + $0x74] sm:$0xf]
      %v4020 = vld [vmem:[%s3989 + $0x78] sm:$0xf]
      %v4021 = vld [vmem:[%s3989 + $0x7c] sm:$0xf]
      %v4054 = vunpack.c.l.b16 %v3990
      %v4055 = vunpack.c.l.b16 %v3991
      %v4056 = vunpack.c.l.b16 %v3992
      %v4057 = vunpack.c.l.b16 %v3993
      %v4058 = vunpack.c.l.b16 %v3994
      %v4059 = vunpack.c.l.b16 %v3995
      %v4060 = vunpack.c.l.b16 %v3996
      %v4061 = vunpack.c.l.b16 %v3997
      %v4062 = vunpack.c.l.b16 %v3998
      %v4063 = vunpack.c.l.b16 %v3999
      %v4064 = vunpack.c.l.b16 %v4000
      %v4065 = vunpack.c.l.b16 %v4001
      %v4066 = vunpack.c.l.b16 %v4002
      %v4067 = vunpack.c.l.b16 %v4003
      %v4068 = vunpack.c.l.b16 %v4004
      %v4069 = vunpack.c.l.b16 %v4005
      %v4070 = vunpack.c.l.b16 %v4006
      %v4071 = vunpack.c.l.b16 %v4007
      %v4072 = vunpack.c.l.b16 %v4008
      %v4073 = vunpack.c.l.b16 %v4009
      %v4074 = vunpack.c.l.b16 %v4010
      %v4075 = vunpack.c.l.b16 %v4011
      %v4076 = vunpack.c.l.b16 %v4012
      %v4077 = vunpack.c.l.b16 %v4013
      %v4078 = vunpack.c.l.b16 %v4014
      %v4079 = vunpack.c.l.b16 %v4015
      %v4080 = vunpack.c.l.b16 %v4016
      %v4081 = vunpack.c.l.b16 %v4017
      %v4082 = vunpack.c.l.b16 %v4018
      %v4083 = vunpack.c.l.b16 %v4019
      %v4084 = vunpack.c.l.b16 %v4020
      %v4085 = vunpack.c.l.b16 %v4021
      %v4086 = vpack.c.b16 %v4055, %v4054
      %v4087 = vpack.c.b16 %v4057, %v4056
      %v4088 = vpack.c.b16 %v4059, %v4058
      %v4089 = vpack.c.b16 %v4061, %v4060
      %v4090 = vpack.c.b16 %v4063, %v4062
      %v4091 = vpack.c.b16 %v4065, %v4064
      %v4092 = vpack.c.b16 %v4067, %v4066
      %v4093 = vpack.c.b16 %v4069, %v4068
      %v4094 = vpack.c.b16 %v4071, %v4070
      %v4095 = vpack.c.b16 %v4073, %v4072
      %v4096 = vpack.c.b16 %v4075, %v4074
      %v4097 = vpack.c.b16 %v4077, %v4076
      %v4098 = vpack.c.b16 %v4079, %v4078
      %v4099 = vpack.c.b16 %v4081, %v4080
      %v4100 = vpack.c.b16 %v4083, %v4082
      %v4101 = vpack.c.b16 %v4085, %v4084
      %4118 = vmatprep.subr.bf16.mxu0 0
      %4119 = vmatpush1.bf16.msra.mxu0 %v4086
      %4120 = vmatprep.subr.bf16.mxu0 0
      %4121 = vmatpush1.bf16.msra.mxu0 %v4087
      %4122 = vmatprep.subr.bf16.mxu0 0
      %4123 = vmatpush1.bf16.msra.mxu0 %v4088
      %4124 = vmatprep.subr.bf16.mxu0 0
      %4125 = vmatpush1.bf16.msra.mxu0 %v4089
      %4126 = vmatprep.subr.bf16.mxu0 0
      %4127 = vmatpush1.bf16.msra.mxu0 %v4090
      %4128 = vmatprep.subr.bf16.mxu0 0
      %4129 = vmatpush1.bf16.msra.mxu0 %v4091
      %4130 = vmatprep.subr.bf16.mxu0 0
      %4131 = vmatpush1.bf16.msra.mxu0 %v4092
      %4132 = vmatprep.subr.bf16.mxu0 0
      %4133 = vmatpush1.bf16.msra.mxu0 %v4093
      %4134 = vmatprep.subr.bf16.mxu0 0
      %4135 = vmatpush1.bf16.msra.mxu0 %v4094
      %4136 = vmatprep.subr.bf16.mxu0 0
      %4137 = vmatpush1.bf16.msra.mxu0 %v4095
      %4138 = vmatprep.subr.bf16.mxu0 0
      %4139 = vmatpush1.bf16.msra.mxu0 %v4096
      %4140 = vmatprep.subr.bf16.mxu0 0
      %4141 = vmatpush1.bf16.msra.mxu0 %v4097
      %4142 = vmatprep.subr.bf16.mxu0 0
      %4143 = vmatpush1.bf16.msra.mxu0 %v4098
      %4144 = vmatprep.subr.bf16.mxu0 0
      %4145 = vmatpush1.bf16.msra.mxu0 %v4099
      %4146 = vmatprep.subr.bf16.mxu0 0
      %4147 = vmatpush1.bf16.msra.mxu0 %v4100
      %4148 = vmatprep.subr.bf16.mxu0 0
      %4149 = vmatpush1.bf16.msra.mxu0 %v4101
      %4150 = vmatprep.mubr.bf16.mxu0 %v3988
      %4151 = vmatmul.mubr.bf16.gmra.mrb[0].mxu0 %v3987
      %v4152 = vpop.f32.mrb[0].mxu0
      %v4153 = vadd.f32 0.0, %v4152
      %v4154 = vpop.f32.mrb[0].mxu0
      %v4155 = vpop.f32.mrb[0].mxu0
      %v4156 = vpop.f32.mrb[0].mxu0
      %4157 = vdwg.mxu0
      %v4158 = vadd.f32 %v3982, %v4153
      %v4159 = vpack.c.bf16 %v3638, %v3638
      %v4160 = vpack.c.bf16 %v3639, %v3639
      %s4161 = scalar_lea.vmem %s5, 384
      %v4162 = vld [vmem:[%s4161] sm:$0xf]
      %v4163 = vld [vmem:[%s4161 + $0x4] sm:$0xf]
      %v4164 = vld [vmem:[%s4161 + $0x8] sm:$0xf]
      %v4165 = vld [vmem:[%s4161 + $0xc] sm:$0xf]
      %v4166 = vld [vmem:[%s4161 + $0x10] sm:$0xf]
      %v4167 = vld [vmem:[%s4161 + $0x14] sm:$0xf]
      %v4168 = vld [vmem:[%s4161 + $0x18] sm:$0xf]
      %v4169 = vld [vmem:[%s4161 + $0x1c] sm:$0xf]
      %v4170 = vld [vmem:[%s4161 + $0x20] sm:$0xf]
      %v4171 = vld [vmem:[%s4161 + $0x24] sm:$0xf]
      %v4172 = vld [vmem:[%s4161 + $0x28] sm:$0xf]
      %v4173 = vld [vmem:[%s4161 + $0x2c] sm:$0xf]
      %v4174 = vld [vmem:[%s4161 + $0x30] sm:$0xf]
      %v4175 = vld [vmem:[%s4161 + $0x34] sm:$0xf]
      %v4176 = vld [vmem:[%s4161 + $0x38] sm:$0xf]
      %v4177 = vld [vmem:[%s4161 + $0x3c] sm:$0xf]
      %v4178 = vld [vmem:[%s4161 + $0x40] sm:$0xf]
      %v4179 = vld [vmem:[%s4161 + $0x44] sm:$0xf]
      %v4180 = vld [vmem:[%s4161 + $0x48] sm:$0xf]
      %v4181 = vld [vmem:[%s4161 + $0x4c] sm:$0xf]
      %v4182 = vld [vmem:[%s4161 + $0x50] sm:$0xf]
      %v4183 = vld [vmem:[%s4161 + $0x54] sm:$0xf]
      %v4184 = vld [vmem:[%s4161 + $0x58] sm:$0xf]
      %v4185 = vld [vmem:[%s4161 + $0x5c] sm:$0xf]
      %v4186 = vld [vmem:[%s4161 + $0x60] sm:$0xf]
      %v4187 = vld [vmem:[%s4161 + $0x64] sm:$0xf]
      %v4188 = vld [vmem:[%s4161 + $0x68] sm:$0xf]
      %v4189 = vld [vmem:[%s4161 + $0x6c] sm:$0xf]
      %v4190 = vld [vmem:[%s4161 + $0x70] sm:$0xf]
      %v4191 = vld [vmem:[%s4161 + $0x74] sm:$0xf]
      %v4192 = vld [vmem:[%s4161 + $0x78] sm:$0xf]
      %v4193 = vld [vmem:[%s4161 + $0x7c] sm:$0xf]
      %v4226 = vunpack.c.l.b16 %v4162
      %v4227 = vunpack.c.l.b16 %v4163
      %v4228 = vunpack.c.l.b16 %v4164
      %v4229 = vunpack.c.l.b16 %v4165
      %v4230 = vunpack.c.l.b16 %v4166
      %v4231 = vunpack.c.l.b16 %v4167
      %v4232 = vunpack.c.l.b16 %v4168
      %v4233 = vunpack.c.l.b16 %v4169
      %v4234 = vunpack.c.l.b16 %v4170
      %v4235 = vunpack.c.l.b16 %v4171
      %v4236 = vunpack.c.l.b16 %v4172
      %v4237 = vunpack.c.l.b16 %v4173
      %v4238 = vunpack.c.l.b16 %v4174
      %v4239 = vunpack.c.l.b16 %v4175
      %v4240 = vunpack.c.l.b16 %v4176
      %v4241 = vunpack.c.l.b16 %v4177
      %v4242 = vunpack.c.l.b16 %v4178
      %v4243 = vunpack.c.l.b16 %v4179
      %v4244 = vunpack.c.l.b16 %v4180
      %v4245 = vunpack.c.l.b16 %v4181
      %v4246 = vunpack.c.l.b16 %v4182
      %v4247 = vunpack.c.l.b16 %v4183
      %v4248 = vunpack.c.l.b16 %v4184
      %v4249 = vunpack.c.l.b16 %v4185
      %v4250 = vunpack.c.l.b16 %v4186
      %v4251 = vunpack.c.l.b16 %v4187
      %v4252 = vunpack.c.l.b16 %v4188
      %v4253 = vunpack.c.l.b16 %v4189
      %v4254 = vunpack.c.l.b16 %v4190
      %v4255 = vunpack.c.l.b16 %v4191
      %v4256 = vunpack.c.l.b16 %v4192
      %v4257 = vunpack.c.l.b16 %v4193
      %v4258 = vpack.c.b16 %v4227, %v4226
      %v4259 = vpack.c.b16 %v4229, %v4228
      %v4260 = vpack.c.b16 %v4231, %v4230
      %v4261 = vpack.c.b16 %v4233, %v4232
      %v4262 = vpack.c.b16 %v4235, %v4234
      %v4263 = vpack.c.b16 %v4237, %v4236
      %v4264 = vpack.c.b16 %v4239, %v4238
      %v4265 = vpack.c.b16 %v4241, %v4240
      %v4266 = vpack.c.b16 %v4243, %v4242
      %v4267 = vpack.c.b16 %v4245, %v4244
      %v4268 = vpack.c.b16 %v4247, %v4246
      %v4269 = vpack.c.b16 %v4249, %v4248
      %v4270 = vpack.c.b16 %v4251, %v4250
      %v4271 = vpack.c.b16 %v4253, %v4252
      %v4272 = vpack.c.b16 %v4255, %v4254
      %v4273 = vpack.c.b16 %v4257, %v4256
      %4290 = vmatprep.subr.bf16.mxu0 0
      %4291 = vmatpush1.bf16.msra.mxu0 %v4258
      %4292 = vmatprep.subr.bf16.mxu0 0
      %4293 = vmatpush1.bf16.msra.mxu0 %v4259
      %4294 = vmatprep.subr.bf16.mxu0 0
      %4295 = vmatpush1.bf16.msra.mxu0 %v4260
      %4296 = vmatprep.subr.bf16.mxu0 0
      %4297 = vmatpush1.bf16.msra.mxu0 %v4261
      %4298 = vmatprep.subr.bf16.mxu0 0
      %4299 = vmatpush1.bf16.msra.mxu0 %v4262
      %4300 = vmatprep.subr.bf16.mxu0 0
      %4301 = vmatpush1.bf16.msra.mxu0 %v4263
      %4302 = vmatprep.subr.bf16.mxu0 0
      %4303 = vmatpush1.bf16.msra.mxu0 %v4264
      %4304 = vmatprep.subr.bf16.mxu0 0
      %4305 = vmatpush1.bf16.msra.mxu0 %v4265
      %4306 = vmatprep.subr.bf16.mxu0 0
      %4307 = vmatpush1.bf16.msra.mxu0 %v4266
      %4308 = vmatprep.subr.bf16.mxu0 0
      %4309 = vmatpush1.bf16.msra.mxu0 %v4267
      %4310 = vmatprep.subr.bf16.mxu0 0
      %4311 = vmatpush1.bf16.msra.mxu0 %v4268
      %4312 = vmatprep.subr.bf16.mxu0 0
      %4313 = vmatpush1.bf16.msra.mxu0 %v4269
      %4314 = vmatprep.subr.bf16.mxu0 0
      %4315 = vmatpush1.bf16.msra.mxu0 %v4270
      %4316 = vmatprep.subr.bf16.mxu0 0
      %4317 = vmatpush1.bf16.msra.mxu0 %v4271
      %4318 = vmatprep.subr.bf16.mxu0 0
      %4319 = vmatpush1.bf16.msra.mxu0 %v4272
      %4320 = vmatprep.subr.bf16.mxu0 0
      %4321 = vmatpush1.bf16.msra.mxu0 %v4273
      %4322 = vmatprep.mubr.bf16.mxu0 %v4160
      %4323 = vmatmul.mubr.bf16.gmra.mrb[0].mxu0 %v4159
      %v4324 = vpop.f32.mrb[0].mxu0
      %v4325 = vadd.f32 0.0, %v4324
      %v4326 = vpop.f32.mrb[0].mxu0
      %v4327 = vpop.f32.mrb[0].mxu0
      %v4328 = vpop.f32.mrb[0].mxu0
      %4329 = vdwg.mxu0
      %v4330 = vadd.f32 %v4158, %v4325
      %v4331 = vpack.c.bf16 %v3640, %v3640
      %v4332 = vpack.c.bf16 %v3641, %v3641
      %s4333 = scalar_lea.vmem %s5, 512
      %v4334 = vld [vmem:[%s4333] sm:$0xf]
      %v4335 = vld [vmem:[%s4333 + $0x4] sm:$0xf]
      %v4336 = vld [vmem:[%s4333 + $0x8] sm:$0xf]
      %v4337 = vld [vmem:[%s4333 + $0xc] sm:$0xf]
      %v4338 = vld [vmem:[%s4333 + $0x10] sm:$0xf]
      %v4339 = vld [vmem:[%s4333 + $0x14] sm:$0xf]
      %v4340 = vld [vmem:[%s4333 + $0x18] sm:$0xf]
      %v4341 = vld [vmem:[%s4333 + $0x1c] sm:$0xf]
      %v4342 = vld [vmem:[%s4333 + $0x20] sm:$0xf]
      %v4343 = vld [vmem:[%s4333 + $0x24] sm:$0xf]
      %v4344 = vld [vmem:[%s4333 + $0x28] sm:$0xf]
      %v4345 = vld [vmem:[%s4333 + $0x2c] sm:$0xf]
      %v4346 = vld [vmem:[%s4333 + $0x30] sm:$0xf]
      %v4347 = vld [vmem:[%s4333 + $0x34] sm:$0xf]
      %v4348 = vld [vmem:[%s4333 + $0x38] sm:$0xf]
      %v4349 = vld [vmem:[%s4333 + $0x3c] sm:$0xf]
      %v4350 = vld [vmem:[%s4333 + $0x40] sm:$0xf]
      %v4351 = vld [vmem:[%s4333 + $0x44] sm:$0xf]
      %v4352 = vld [vmem:[%s4333 + $0x48] sm:$0xf]
      %v4353 = vld [vmem:[%s4333 + $0x4c] sm:$0xf]
      %v4354 = vld [vmem:[%s4333 + $0x50] sm:$0xf]
      %v4355 = vld [vmem:[%s4333 + $0x54] sm:$0xf]
      %v4356 = vld [vmem:[%s4333 + $0x58] sm:$0xf]
      %v4357 = vld [vmem:[%s4333 + $0x5c] sm:$0xf]
      %v4358 = vld [vmem:[%s4333 + $0x60] sm:$0xf]
      %v4359 = vld [vmem:[%s4333 + $0x64] sm:$0xf]
      %v4360 = vld [vmem:[%s4333 + $0x68] sm:$0xf]
      %v4361 = vld [vmem:[%s4333 + $0x6c] sm:$0xf]
      %v4362 = vld [vmem:[%s4333 + $0x70] sm:$0xf]
      %v4363 = vld [vmem:[%s4333 + $0x74] sm:$0xf]
      %v4364 = vld [vmem:[%s4333 + $0x78] sm:$0xf]
      %v4365 = vld [vmem:[%s4333 + $0x7c] sm:$0xf]
      %v4398 = vunpack.c.l.b16 %v4334
      %v4399 = vunpack.c.l.b16 %v4335
      %v4400 = vunpack.c.l.b16 %v4336
      %v4401 = vunpack.c.l.b16 %v4337
      %v4402 = vunpack.c.l.b16 %v4338
      %v4403 = vunpack.c.l.b16 %v4339
      %v4404 = vunpack.c.l.b16 %v4340
      %v4405 = vunpack.c.l.b16 %v4341
      %v4406 = vunpack.c.l.b16 %v4342
      %v4407 = vunpack.c.l.b16 %v4343
      %v4408 = vunpack.c.l.b16 %v4344
      %v4409 = vunpack.c.l.b16 %v4345
      %v4410 = vunpack.c.l.b16 %v4346
      %v4411 = vunpack.c.l.b16 %v4347
      %v4412 = vunpack.c.l.b16 %v4348
      %v4413 = vunpack.c.l.b16 %v4349
      %v4414 = vunpack.c.l.b16 %v4350
      %v4415 = vunpack.c.l.b16 %v4351
      %v4416 = vunpack.c.l.b16 %v4352
      %v4417 = vunpack.c.l.b16 %v4353
      %v4418 = vunpack.c.l.b16 %v4354
      %v4419 = vunpack.c.l.b16 %v4355
      %v4420 = vunpack.c.l.b16 %v4356
      %v4421 = vunpack.c.l.b16 %v4357
      %v4422 = vunpack.c.l.b16 %v4358
      %v4423 = vunpack.c.l.b16 %v4359
      %v4424 = vunpack.c.l.b16 %v4360
      %v4425 = vunpack.c.l.b16 %v4361
      %v4426 = vunpack.c.l.b16 %v4362
      %v4427 = vunpack.c.l.b16 %v4363
      %v4428 = vunpack.c.l.b16 %v4364
      %v4429 = vunpack.c.l.b16 %v4365
      %v4430 = vpack.c.b16 %v4399, %v4398
      %v4431 = vpack.c.b16 %v4401, %v4400
      %v4432 = vpack.c.b16 %v4403, %v4402
      %v4433 = vpack.c.b16 %v4405, %v4404
      %v4434 = vpack.c.b16 %v4407, %v4406
      %v4435 = vpack.c.b16 %v4409, %v4408
      %v4436 = vpack.c.b16 %v4411, %v4410
      %v4437 = vpack.c.b16 %v4413, %v4412
      %v4438 = vpack.c.b16 %v4415, %v4414
      %v4439 = vpack.c.b16 %v4417, %v4416
      %v4440 = vpack.c.b16 %v4419, %v4418
      %v4441 = vpack.c.b16 %v4421, %v4420
      %v4442 = vpack.c.b16 %v4423, %v4422
      %v4443 = vpack.c.b16 %v4425, %v4424
      %v4444 = vpack.c.b16 %v4427, %v4426
      %v4445 = vpack.c.b16 %v4429, %v4428
      %4462 = vmatprep.subr.bf16.mxu0 0
      %4463 = vmatpush1.bf16.msra.mxu0 %v4430
      %4464 = vmatprep.subr.bf16.mxu0 0
      %4465 = vmatpush1.bf16.msra.mxu0 %v4431
      %4466 = vmatprep.subr.bf16.mxu0 0
      %4467 = vmatpush1.bf16.msra.mxu0 %v4432
      %4468 = vmatprep.subr.bf16.mxu0 0
      %4469 = vmatpush1.bf16.msra.mxu0 %v4433
      %4470 = vmatprep.subr.bf16.mxu0 0
      %4471 = vmatpush1.bf16.msra.mxu0 %v4434
      %4472 = vmatprep.subr.bf16.mxu0 0
      %4473 = vmatpush1.bf16.msra.mxu0 %v4435
      %4474 = vmatprep.subr.bf16.mxu0 0
      %4475 = vmatpush1.bf16.msra.mxu0 %v4436
      %4476 = vmatprep.subr.bf16.mxu0 0
      %4477 = vmatpush1.bf16.msra.mxu0 %v4437
      %4478 = vmatprep.subr.bf16.mxu0 0
      %4479 = vmatpush1.bf16.msra.mxu0 %v4438
      %4480 = vmatprep.subr.bf16.mxu0 0
      %4481 = vmatpush1.bf16.msra.mxu0 %v4439
      %4482 = vmatprep.subr.bf16.mxu0 0
      %4483 = vmatpush1.bf16.msra.mxu0 %v4440
      %4484 = vmatprep.subr.bf16.mxu0 0
      %4485 = vmatpush1.bf16.msra.mxu0 %v4441
      %4486 = vmatprep.subr.bf16.mxu0 0
      %4487 = vmatpush1.bf16.msra.mxu0 %v4442
      %4488 = vmatprep.subr.bf16.mxu0 0
      %4489 = vmatpush1.bf16.msra.mxu0 %v4443
      %4490 = vmatprep.subr.bf16.mxu0 0
      %4491 = vmatpush1.bf16.msra.mxu0 %v4444
      %4492 = vmatprep.subr.bf16.mxu0 0
      %4493 = vmatpush1.bf16.msra.mxu0 %v4445
      %4494 = vmatprep.mubr.bf16.mxu0 %v4332
      %4495 = vmatmul.mubr.bf16.gmra.mrb[0].mxu0 %v4331
      %v4496 = vpop.f32.mrb[0].mxu0
      %v4497 = vadd.f32 0.0, %v4496
      %v4498 = vpop.f32.mrb[0].mxu0
      %v4499 = vpop.f32.mrb[0].mxu0
      %v4500 = vpop.f32.mrb[0].mxu0
      %4501 = vdwg.mxu0
      %v4502 = vadd.f32 %v4330, %v4497
      %v4503 = vpack.c.bf16 %v3642, %v3642
      %v4504 = vpack.c.bf16 %v3643, %v3643
      %s4505 = scalar_lea.vmem %s5, 640
      %v4506 = vld [vmem:[%s4505] sm:$0xf]
      %v4507 = vld [vmem:[%s4505 + $0x4] sm:$0xf]
      %v4508 = vld [vmem:[%s4505 + $0x8] sm:$0xf]
      %v4509 = vld [vmem:[%s4505 + $0xc] sm:$0xf]
      %v4510 = vld [vmem:[%s4505 + $0x10] sm:$0xf]
      %v4511 = vld [vmem:[%s4505 + $0x14] sm:$0xf]
      %v4512 = vld [vmem:[%s4505 + $0x18] sm:$0xf]
      %v4513 = vld [vmem:[%s4505 + $0x1c] sm:$0xf]
      %v4514 = vld [vmem:[%s4505 + $0x20] sm:$0xf]
      %v4515 = vld [vmem:[%s4505 + $0x24] sm:$0xf]
      %v4516 = vld [vmem:[%s4505 + $0x28] sm:$0xf]
      %v4517 = vld [vmem:[%s4505 + $0x2c] sm:$0xf]
      %v4518 = vld [vmem:[%s4505 + $0x30] sm:$0xf]
      %v4519 = vld [vmem:[%s4505 + $0x34] sm:$0xf]
      %v4520 = vld [vmem:[%s4505 + $0x38] sm:$0xf]
      %v4521 = vld [vmem:[%s4505 + $0x3c] sm:$0xf]
      %v4522 = vld [vmem:[%s4505 + $0x40] sm:$0xf]
      %v4523 = vld [vmem:[%s4505 + $0x44] sm:$0xf]
      %v4524 = vld [vmem:[%s4505 + $0x48] sm:$0xf]
      %v4525 = vld [vmem:[%s4505 + $0x4c] sm:$0xf]
      %v4526 = vld [vmem:[%s4505 + $0x50] sm:$0xf]
      %v4527 = vld [vmem:[%s4505 + $0x54] sm:$0xf]
      %v4528 = vld [vmem:[%s4505 + $0x58] sm:$0xf]
      %v4529 = vld [vmem:[%s4505 + $0x5c] sm:$0xf]
      %v4530 = vld [vmem:[%s4505 + $0x60] sm:$0xf]
      %v4531 = vld [vmem:[%s4505 + $0x64] sm:$0xf]
      %v4532 = vld [vmem:[%s4505 + $0x68] sm:$0xf]
      %v4533 = vld [vmem:[%s4505 + $0x6c] sm:$0xf]
      %v4534 = vld [vmem:[%s4505 + $0x70] sm:$0xf]
      %v4535 = vld [vmem:[%s4505 + $0x74] sm:$0xf]
      %v4536 = vld [vmem:[%s4505 + $0x78] sm:$0xf]
      %v4537 = vld [vmem:[%s4505 + $0x7c] sm:$0xf]
      %v4570 = vunpack.c.l.b16 %v4506
      %v4571 = vunpack.c.l.b16 %v4507
      %v4572 = vunpack.c.l.b16 %v4508
      %v4573 = vunpack.c.l.b16 %v4509
      %v4574 = vunpack.c.l.b16 %v4510
      %v4575 = vunpack.c.l.b16 %v4511
      %v4576 = vunpack.c.l.b16 %v4512
      %v4577 = vunpack.c.l.b16 %v4513
      %v4578 = vunpack.c.l.b16 %v4514
      %v4579 = vunpack.c.l.b16 %v4515
      %v4580 = vunpack.c.l.b16 %v4516
      %v4581 = vunpack.c.l.b16 %v4517
      %v4582 = vunpack.c.l.b16 %v4518
      %v4583 = vunpack.c.l.b16 %v4519
      %v4584 = vunpack.c.l.b16 %v4520
      %v4585 = vunpack.c.l.b16 %v4521
      %v4586 = vunpack.c.l.b16 %v4522
      %v4587 = vunpack.c.l.b16 %v4523
      %v4588 = vunpack.c.l.b16 %v4524
      %v4589 = vunpack.c.l.b16 %v4525
      %v4590 = vunpack.c.l.b16 %v4526
      %v4591 = vunpack.c.l.b16 %v4527
      %v4592 = vunpack.c.l.b16 %v4528
      %v4593 = vunpack.c.l.b16 %v4529
      %v4594 = vunpack.c.l.b16 %v4530
      %v4595 = vunpack.c.l.b16 %v4531
      %v4596 = vunpack.c.l.b16 %v4532
      %v4597 = vunpack.c.l.b16 %v4533
      %v4598 = vunpack.c.l.b16 %v4534
      %v4599 = vunpack.c.l.b16 %v4535
      %v4600 = vunpack.c.l.b16 %v4536
      %v4601 = vunpack.c.l.b16 %v4537
      %v4602 = vpack.c.b16 %v4571, %v4570
      %v4603 = vpack.c.b16 %v4573, %v4572
      %v4604 = vpack.c.b16 %v4575, %v4574
      %v4605 = vpack.c.b16 %v4577, %v4576
      %v4606 = vpack.c.b16 %v4579, %v4578
      %v4607 = vpack.c.b16 %v4581, %v4580
      %v4608 = vpack.c.b16 %v4583, %v4582
      %v4609 = vpack.c.b16 %v4585, %v4584
      %v4610 = vpack.c.b16 %v4587, %v4586
      %v4611 = vpack.c.b16 %v4589, %v4588
      %v4612 = vpack.c.b16 %v4591, %v4590
      %v4613 = vpack.c.b16 %v4593, %v4592
      %v4614 = vpack.c.b16 %v4595, %v4594
      %v4615 = vpack.c.b16 %v4597, %v4596
      %v4616 = vpack.c.b16 %v4599, %v4598
      %v4617 = vpack.c.b16 %v4601, %v4600
      %4634 = vmatprep.subr.bf16.mxu0 0
      %4635 = vmatpush1.bf16.msra.mxu0 %v4602
      %4636 = vmatprep.subr.bf16.mxu0 0
      %4637 = vmatpush1.bf16.msra.mxu0 %v4603
      %4638 = vmatprep.subr.bf16.mxu0 0
      %4639 = vmatpush1.bf16.msra.mxu0 %v4604
      %4640 = vmatprep.subr.bf16.mxu0 0
      %4641 = vmatpush1.bf16.msra.mxu0 %v4605
      %4642 = vmatprep.subr.bf16.mxu0 0
      %4643 = vmatpush1.bf16.msra.mxu0 %v4606
      %4644 = vmatprep.subr.bf16.mxu0 0
      %4645 = vmatpush1.bf16.msra.mxu0 %v4607
      %4646 = vmatprep.subr.bf16.mxu0 0
      %4647 = vmatpush1.bf16.msra.mxu0 %v4608
      %4648 = vmatprep.subr.bf16.mxu0 0
      %4649 = vmatpush1.bf16.msra.mxu0 %v4609
      %4650 = vmatprep.subr.bf16.mxu0 0
      %4651 = vmatpush1.bf16.msra.mxu0 %v4610
      %4652 = vmatprep.subr.bf16.mxu0 0
      %4653 = vmatpush1.bf16.msra.mxu0 %v4611
      %4654 = vmatprep.subr.bf16.mxu0 0
      %4655 = vmatpush1.bf16.msra.mxu0 %v4612
      %4656 = vmatprep.subr.bf16.mxu0 0
      %4657 = vmatpush1.bf16.msra.mxu0 %v4613
      %4658 = vmatprep.subr.bf16.mxu0 0
      %4659 = vmatpush1.bf16.msra.mxu0 %v4614
      %4660 = vmatprep.subr.bf16.mxu0 0
      %4661 = vmatpush1.bf16.msra.mxu0 %v4615
      %4662 = vmatprep.subr.bf16.mxu0 0
      %4663 = vmatpush1.bf16.msra.mxu0 %v4616
      %4664 = vmatprep.subr.bf16.mxu0 0
      %4665 = vmatpush1.bf16.msra.mxu0 %v4617
      %4666 = vmatprep.mubr.bf16.mxu0 %v4504
      %4667 = vmatmul.mubr.bf16.gmra.mrb[0].mxu0 %v4503
      %v4668 = vpop.f32.mrb[0].mxu0
      %v4669 = vadd.f32 0.0, %v4668
      %v4670 = vpop.f32.mrb[0].mxu0
      %v4671 = vpop.f32.mrb[0].mxu0
      %v4672 = vpop.f32.mrb[0].mxu0
      %4673 = vdwg.mxu0
      %v4674 = vadd.f32 %v4502, %v4669
      %v4675 = vpack.c.bf16 %v3644, %v3644
      %v4676 = vpack.c.bf16 %v3645, %v3645
      %s4677 = scalar_lea.vmem %s5, 768
      %v4678 = vld [vmem:[%s4677] sm:$0xf]
      %v4679 = vld [vmem:[%s4677 + $0x4] sm:$0xf]
      %v4680 = vld [vmem:[%s4677 + $0x8] sm:$0xf]
      %v4681 = vld [vmem:[%s4677 + $0xc] sm:$0xf]
      %v4682 = vld [vmem:[%s4677 + $0x10] sm:$0xf]
      %v4683 = vld [vmem:[%s4677 + $0x14] sm:$0xf]
      %v4684 = vld [vmem:[%s4677 + $0x18] sm:$0xf]
      %v4685 = vld [vmem:[%s4677 + $0x1c] sm:$0xf]
      %v4686 = vld [vmem:[%s4677 + $0x20] sm:$0xf]
      %v4687 = vld [vmem:[%s4677 + $0x24] sm:$0xf]
      %v4688 = vld [vmem:[%s4677 + $0x28] sm:$0xf]
      %v4689 = vld [vmem:[%s4677 + $0x2c] sm:$0xf]
      %v4690 = vld [vmem:[%s4677 + $0x30] sm:$0xf]
      %v4691 = vld [vmem:[%s4677 + $0x34] sm:$0xf]
      %v4692 = vld [vmem:[%s4677 + $0x38] sm:$0xf]
      %v4693 = vld [vmem:[%s4677 + $0x3c] sm:$0xf]
      %v4694 = vld [vmem:[%s4677 + $0x40] sm:$0xf]
      %v4695 = vld [vmem:[%s4677 + $0x44] sm:$0xf]
      %v4696 = vld [vmem:[%s4677 + $0x48] sm:$0xf]
      %v4697 = vld [vmem:[%s4677 + $0x4c] sm:$0xf]
      %v4698 = vld [vmem:[%s4677 + $0x50] sm:$0xf]
      %v4699 = vld [vmem:[%s4677 + $0x54] sm:$0xf]
      %v4700 = vld [vmem:[%s4677 + $0x58] sm:$0xf]
      %v4701 = vld [vmem:[%s4677 + $0x5c] sm:$0xf]
      %v4702 = vld [vmem:[%s4677 + $0x60] sm:$0xf]
      %v4703 = vld [vmem:[%s4677 + $0x64] sm:$0xf]
      %v4704 = vld [vmem:[%s4677 + $0x68] sm:$0xf]
      %v4705 = vld [vmem:[%s4677 + $0x6c] sm:$0xf]
      %v4706 = vld [vmem:[%s4677 + $0x70] sm:$0xf]
      %v4707 = vld [vmem:[%s4677 + $0x74] sm:$0xf]
      %v4708 = vld [vmem:[%s4677 + $0x78] sm:$0xf]
      %v4709 = vld [vmem:[%s4677 + $0x7c] sm:$0xf]
      %v4742 = vunpack.c.l.b16 %v4678
      %v4743 = vunpack.c.l.b16 %v4679
      %v4744 = vunpack.c.l.b16 %v4680
      %v4745 = vunpack.c.l.b16 %v4681
      %v4746 = vunpack.c.l.b16 %v4682
      %v4747 = vunpack.c.l.b16 %v4683
      %v4748 = vunpack.c.l.b16 %v4684
      %v4749 = vunpack.c.l.b16 %v4685
      %v4750 = vunpack.c.l.b16 %v4686
      %v4751 = vunpack.c.l.b16 %v4687
      %v4752 = vunpack.c.l.b16 %v4688
      %v4753 = vunpack.c.l.b16 %v4689
      %v4754 = vunpack.c.l.b16 %v4690
      %v4755 = vunpack.c.l.b16 %v4691
      %v4756 = vunpack.c.l.b16 %v4692
      %v4757 = vunpack.c.l.b16 %v4693
      %v4758 = vunpack.c.l.b16 %v4694
      %v4759 = vunpack.c.l.b16 %v4695
      %v4760 = vunpack.c.l.b16 %v4696
      %v4761 = vunpack.c.l.b16 %v4697
      %v4762 = vunpack.c.l.b16 %v4698
      %v4763 = vunpack.c.l.b16 %v4699
      %v4764 = vunpack.c.l.b16 %v4700
      %v4765 = vunpack.c.l.b16 %v4701
      %v4766 = vunpack.c.l.b16 %v4702
      %v4767 = vunpack.c.l.b16 %v4703
      %v4768 = vunpack.c.l.b16 %v4704
      %v4769 = vunpack.c.l.b16 %v4705
      %v4770 = vunpack.c.l.b16 %v4706
      %v4771 = vunpack.c.l.b16 %v4707
      %v4772 = vunpack.c.l.b16 %v4708
      %v4773 = vunpack.c.l.b16 %v4709
      %v4774 = vpack.c.b16 %v4743, %v4742
      %v4775 = vpack.c.b16 %v4745, %v4744
      %v4776 = vpack.c.b16 %v4747, %v4746
      %v4777 = vpack.c.b16 %v4749, %v4748
      %v4778 = vpack.c.b16 %v4751, %v4750
      %v4779 = vpack.c.b16 %v4753, %v4752
      %v4780 = vpack.c.b16 %v4755, %v4754
      %v4781 = vpack.c.b16 %v4757, %v4756
      %v4782 = vpack.c.b16 %v4759, %v4758
      %v4783 = vpack.c.b16 %v4761, %v4760
      %v4784 = vpack.c.b16 %v4763, %v4762
      %v4785 = vpack.c.b16 %v4765, %v4764
      %v4786 = vpack.c.b16 %v4767, %v4766
      %v4787 = vpack.c.b16 %v4769, %v4768
      %v4788 = vpack.c.b16 %v4771, %v4770
      %v4789 = vpack.c.b16 %v4773, %v4772
      %4806 = vmatprep.subr.bf16.mxu0 0
      %4807 = vmatpush1.bf16.msra.mxu0 %v4774
      %4808 = vmatprep.subr.bf16.mxu0 0
      %4809 = vmatpush1.bf16.msra.mxu0 %v4775
      %4810 = vmatprep.subr.bf16.mxu0 0
      %4811 = vmatpush1.bf16.msra.mxu0 %v4776
      %4812 = vmatprep.subr.bf16.mxu0 0
      %4813 = vmatpush1.bf16.msra.mxu0 %v4777
      %4814 = vmatprep.subr.bf16.mxu0 0
      %4815 = vmatpush1.bf16.msra.mxu0 %v4778
      %4816 = vmatprep.subr.bf16.mxu0 0
      %4817 = vmatpush1.bf16.msra.mxu0 %v4779
      %4818 = vmatprep.subr.bf16.mxu0 0
      %4819 = vmatpush1.bf16.msra.mxu0 %v4780
      %4820 = vmatprep.subr.bf16.mxu0 0
      %4821 = vmatpush1.bf16.msra.mxu0 %v4781
      %4822 = vmatprep.subr.bf16.mxu0 0
      %4823 = vmatpush1.bf16.msra.mxu0 %v4782
      %4824 = vmatprep.subr.bf16.mxu0 0
      %4825 = vmatpush1.bf16.msra.mxu0 %v4783
      %4826 = vmatprep.subr.bf16.mxu0 0
      %4827 = vmatpush1.bf16.msra.mxu0 %v4784
      %4828 = vmatprep.subr.bf16.mxu0 0
      %4829 = vmatpush1.bf16.msra.mxu0 %v4785
      %4830 = vmatprep.subr.bf16.mxu0 0
      %4831 = vmatpush1.bf16.msra.mxu0 %v4786
      %4832 = vmatprep.subr.bf16.mxu0 0
      %4833 = vmatpush1.bf16.msra.mxu0 %v4787
      %4834 = vmatprep.subr.bf16.mxu0 0
      %4835 = vmatpush1.bf16.msra.mxu0 %v4788
      %4836 = vmatprep.subr.bf16.mxu0 0
      %4837 = vmatpush1.bf16.msra.mxu0 %v4789
      %4838 = vmatprep.mubr.bf16.mxu0 %v4676
      %4839 = vmatmul.mubr.bf16.gmra.mrb[0].mxu0 %v4675
      %v4840 = vpop.f32.mrb[0].mxu0
      %v4841 = vadd.f32 0.0, %v4840
      %v4842 = vpop.f32.mrb[0].mxu0
      %v4843 = vpop.f32.mrb[0].mxu0
      %v4844 = vpop.f32.mrb[0].mxu0
      %4845 = vdwg.mxu0
      %v4846 = vadd.f32 %v4674, %v4841
      %v4847 = vld [vmem:[%s6] sm:$0x1]
      %v4849 = vlaneseq
      %v4850 = vshrl.u32 %v4849, 7
      %v4851 = vsub.s32 0, %v4850
      %v4852 = vrot.slane %v4847, %v4851
      %v4854 = vadd.f32 %v4846, %v4852
      %v4855 = vmax.f32 %v4854, 0.0
      %v4856 = vld [vmem:[%s7] sm:$0x1]
      %v4858 = vlaneseq
      %v4859 = vshrl.u32 %v4858, 7
      %v4860 = vsub.s32 0, %v4859
      %v4861 = vrot.slane %v4856, %v4860
      %v4863 = vmul.f32 %v4855, %v4861
      %vm4864 = vcmask 523264
      %v4865 = vsel %vm4864, %v4863, 0.0
      %4866 = vadd.xlane.f32.xlu0 %v4865
      %v4867 = vpop.xlane.xlu0 %4866
      %v4868 = vld [vmem:[#allocation2] sm:$0x1]
      %v4870 = vlaneseq
      %v4871 = vshrl.u32 %v4870, 7
      %v4872 = vsub.s32 0, %v4871
      %v4873 = vrot.slane %v4868, %v4872
      %v4875 = vadd.f32 %v4867, %v4873
      %vm4876 = vcmask 7168
      %4877 = vst.msk [vmem:[%s332] sm:$0xff] %vm4876, %v4875
      %p4878 = scmp.lt.s32.totalorder %s22, 1
      %s4879 = scalar_select %p4878, %s22, 1
      %s4880 = smul.addr %s4879, 8
      %s4881 = scalar_lea.vmem %s9, %s4880
      // Predicated region
      $region57: #{small_conv_mnist_forward.1} parent=55 // pred_check
        %p4882 = pneg %p234
      $region58: #{small_conv_mnist_forward.1} parent=55 // pred_check_branch
        %4884 = sbr.rel (%p4882) target = $region60
      $region59: #{small_conv_mnist_forward.1} parent=55 // pred_region
        _
      $region60: #{small_conv_mnist_forward.1} parent=55 // pred_fallthru
        _
    $region56: #{small_conv_mnist_forward.1} parent=5 // pred_fallthru
      _
    %p4885 = scmp.le.s32.totalorder 2, %s17
    // Predicated region
    $region61: #{small_conv_mnist_forward.1} parent=5 // pred_check
      %p4886 = pneg %p4885
    $region62: #{small_conv_mnist_forward.1} parent=5 // pred_check_branch
      %4888 = sbr.rel (%p4886) target = $region64
    $region63: #{small_conv_mnist_forward.1} parent=5 // pred_region
      %s4889 = ssub.s32 %s17, 2
      // Predicated region
      $region65: #{small_conv_mnist_forward.1} parent=63 // pred_check
        %p4890 = pneg %p240
      $region66: #{small_conv_mnist_forward.1} parent=63 // pred_check_branch
        %4892 = sbr.rel (%p4890) target = $region68
      $region67: #{small_conv_mnist_forward.1} parent=63 // pred_region
        %p4893 = scmp.lt.s32.totalorder %s23, 1
        %s4894 = scalar_select %p4893, %s23, 1
        %s4895 = smul.addr %s4894, 8
        %s4896 = scalar_lea.vmem %s9, %s4895
      $region68: #{small_conv_mnist_forward.1} parent=63 // pred_fallthru
        _
    $region64: #{small_conv_mnist_forward.1} parent=5 // pred_fallthru
      _
  $region6: #{small_conv_mnist_forward.1} parent=0 // loop_footer
    %s21 = sadd.s32 1, %s17
  $region7: #{small_conv_mnist_forward.1} parent=0 // loop_footer_branch
    %16 = sbr.rel target = $region3
  $region8: #{small_conv_mnist_forward.1} parent=0 // loop_exit
    _

</llo_original>
